<compile_context>
chip_gen: v7x
topology: tpu7x:2x2x1
jax: 0.10.0
libtpu: 0.0.40
codegen_flags: <defaults>
</compile_context>

<pallas_src>
import functools

import jax
import jax.numpy as jnp
from jax import lax
from jax.experimental import pallas as pl
from jax.experimental.pallas import tpu as pltpu


def gru_seq_tile_kernel(x_ref, wih_ref, whh_ref, bgi_ref, bhn_ref, o_ref,
                        gi_ref, *, t_total, tile_t):
    """One tile of `tile_t` timesteps of a single-layer GRU (PyTorch semantics).

    x_ref   : (tile_t*B, D)   bf16 embedded tokens, time-major within the tile
    wih_ref : (D, 3H)         bf16 W_ih^T, gate order [r, z, n]   (Buffered(1))
    whh_ref : (H, 3H)         bf16 W_hh^T                         (Buffered(1))
    bgi_ref : (1, 3H)         f32  b_ih + [b_hh_r, b_hh_z, 0]     (Buffered(1))
    bhn_ref : (1, H)          f32  b_hh_n (stays inside r*(...))  (Buffered(1))
    o_ref   : (B, H)          f32  grid-resident; running hidden-state carry
    gi_ref  : (tile_t*B, 3H)  f32  VMEM scratch for the tile's input projection
    """
    i = pl.program_id(0)
    B, H = o_ref.shape

    # h_0 = 0 (PyTorch default); output block is grid-resident, so init once.
    @pl.when(i == 0)
    def _init():
        o_ref[...] = jnp.zeros_like(o_ref)

    # ---- Phase 1: one big MXU matmul for the whole tile, into VMEM scratch.
    # Keeping gi in scratch (not as live SSA values across the unrolled loop)
    # bounds vreg live ranges -> no spill traffic on the serial critical path.
    gi_ref[...] = (jnp.dot(x_ref[...], wih_ref[...],
                           preferred_element_type=jnp.float32)
                   + bgi_ref[...])

    # ---- Phase 2: serial recurrence over this tile, h carried in registers.
    bhn = jnp.broadcast_to(bhn_ref[...], (B, H))   # hoisted (no CSE in loops)
    whh = whh_ref[...]                             # (H, 3H) bf16

    needs_mask = (t_total % tile_t) != 0           # static Python bool

    def step(t, h):
        gh = jnp.dot(h.astype(jnp.bfloat16), whh,
                     preferred_element_type=jnp.float32)        # (B, 3H)
        row = pl.multiple_of(t * B, B)                          # B % 8 == 0
        g = gi_ref[pl.ds(row, B), :]                            # (B, 3H)
        # r and z share one contiguous sigmoid (halves EUP/VPU issues).
        rz = jax.nn.sigmoid(g[:, :2 * H] + gh[:, :2 * H])
        r = rz[:, :H]
        z = rz[:, H:]
        n = jnp.tanh(g[:, 2 * H:] + r * (gh[:, 2 * H:] + bhn))
        h_new = n + z * (h - n)                                 # == (1-z)*n + z*h
        if needs_mask:
            valid = (i * tile_t + t) < t_total                  # mask pad steps
            h_new = jnp.where(valid, h_new, h)
        return h_new

    # TODO(synk): the final (padded) tile still runs full matmuls on masked pad
    # steps; clamping the trip count there would save a little MXU work.
    h = lax.fori_loop(0, tile_t, step, o_ref[...], unroll=True)
    o_ref[...] = h                                              # carry to next tile


def _vmem_limit_bytes():
    # Right-size the scoped VMEM request (~32 MiB) with headroom; never ask for
    # the full physical VMEM (v7x has only 64 MiB per TensorCore).
    try:
        cap = pltpu.get_tpu_info().vmem_capacity_bytes
    except Exception:  # pragma: no cover - conservative fallback
        cap = 128 * 1024 * 1024
    return min(32 * 1024 * 1024, cap // 2)


def gru_final_hidden(x_emb_bf16, w_ih_t, w_hh_t, b_gi, b_hn, *, tile_t=32):
    """x_emb_bf16: (T, B, D) bf16 time-major embeddings. Returns (B, H) f32."""
    T, B, D = x_emb_bf16.shape
    H = w_hh_t.shape[0]

    if B % 8 != 0:
        raise ValueError(
            f"batch must be a multiple of 8 (f32 sublane packing), got B={B}; "
            "pad the batch before calling gru_final_hidden")

    tt = min(tile_t, T)
    # bf16 x-block row count (tt*B) must be a multiple of 16 (sublane packing).
    while (tt * B) % 16 != 0:
        tt += 1
    num_tiles = pl.cdiv(T, tt)
    t_pad = num_tiles * tt

    x2d = x_emb_bf16.reshape(T * B, D)
    if t_pad != T:
        x2d = jnp.pad(x2d, ((0, (t_pad - T) * B), (0, 0)))

    kernel = functools.partial(gru_seq_tile_kernel, t_total=T, tile_t=tt)

    # Grid-invariant operands: constant index_map, so a second pipeline buffer
    # would be dead VMEM -> single-buffer them.
    inv = dict(pipeline_mode=pl.Buffered(1))

    return pl.pallas_call(
        kernel,
        out_shape=jax.ShapeDtypeStruct((B, H), jnp.float32),
        grid_spec=pltpu.PrefetchScalarGridSpec(
            num_scalar_prefetch=0,
            grid=(num_tiles,),
            in_specs=[
                # x tiled over the sequence -> Pallas pipelines its DMA against
                # the recurrence of the previous tile.
                pl.BlockSpec((tt * B, D), lambda i: (i, 0)),
                pl.BlockSpec((D, 3 * H), lambda i: (0, 0), **inv),
                pl.BlockSpec((H, 3 * H), lambda i: (0, 0), **inv),
                pl.BlockSpec((1, 3 * H), lambda i: (0, 0), **inv),
                pl.BlockSpec((1, H), lambda i: (0, 0), **inv),
            ],
            # Constant index_map => output block stays resident in VMEM across
            # the whole grid and doubles as the hidden-state carry.
            out_specs=pl.BlockSpec((B, H), lambda i: (0, 0)),
            scratch_shapes=[pltpu.VMEM((tt * B, 3 * H), jnp.float32)],
        ),
        compiler_params=pltpu.CompilerParams(
            dimension_semantics=("arbitrary",),     # serial dependency over T
            vmem_limit_bytes=_vmem_limit_bytes(),
        ),
    )(x2d, w_ih_t, w_hh_t, b_gi, b_hn)


class QuestionParserJAX:
    """JAX/Pallas re-implementation of QuestionParser.forward (eval mode, GRU)."""

    def __init__(self, vocab_size, word_dim, ques_dim, key):
        self.vocab_size = vocab_size
        self.word_dim = word_dim      # NOTE: prod D=300 -> pad to 384 (lane-dense)
        self.ques_dim = ques_dim

        k_emb, k_wih, k_whh, k_bih, k_bhh = jax.random.split(key, 5)
        # Embedding table: rows [0, vocab) stand in for the glove init,
        # row `vocab` is the padding_idx row (zeros). Stored in bf16 so the
        # gather directly produces the MXU operand (no f32 (T,B,D) pass).
        glove_like = 0.1 * jax.random.normal(
            k_emb, (vocab_size, word_dim), dtype=jnp.float32)
        pad_row = jnp.zeros((1, word_dim), dtype=jnp.float32)
        self.embd = jnp.concatenate([glove_like, pad_row],
                                    axis=0).astype(jnp.bfloat16)

        s = 1.0 / jnp.sqrt(ques_dim)
        H = ques_dim
        # PyTorch stores weight_ih_l0 as (3H, D); keep transposed for x @ W^T.
        # MXU operands in bf16 (f32 accumulation happens in the kernel).
        self.w_ih_t = (s * jax.random.normal(
            k_wih, (word_dim, 3 * H), dtype=jnp.float32)).astype(jnp.bfloat16)
        self.w_hh_t = (s * jax.random.normal(
            k_whh, (H, 3 * H), dtype=jnp.float32)).astype(jnp.bfloat16)
        self.b_ih = s * jax.random.normal(k_bih, (1, 3 * H), dtype=jnp.float32)
        self.b_hh = s * jax.random.normal(k_bhh, (1, 3 * H), dtype=jnp.float32)

        # Folded biases for the kernel: r/z parts of b_hh merge with b_ih,
        # the n part of b_hh must stay separate (applied inside r*(...)).
        fold = jnp.concatenate(
            [self.b_hh[:, 0:2 * H], jnp.zeros((1, H), jnp.float32)], axis=1)
        self.b_gi = self.b_ih + fold          # (1, 3H) f32
        self.b_hn = self.b_hh[:, 2 * H:]      # (1, H)  f32

    def forward(self, questions, *, tile_t=32):
        # questions: (B, T) int32 token ids
        questions_t = questions.T                                  # (T, B)
        x_emb = jnp.take(self.embd, questions_t, axis=0)           # (T,B,D) bf16
        q_emb = gru_final_hidden(x_emb, self.w_ih_t, self.w_hh_t,
                                 self.b_gi, self.b_hn,
                                 tile_t=tile_t)                    # (B, H) f32
        # self.drop: nn.Dropout in eval mode is identity.
        # TODO(synk): rnn_type='LSTM' branch of the original module not implemented.
        return q_emb


def _gru_reference(x_emb_bf16, w_ih_t, w_hh_t, b_ih, b_hh):
    """Pure-JAX reference GRU (PyTorch gate order, bf16 matmul operands)."""
    T, B, D = x_emb_bf16.shape
    H = w_hh_t.shape[0]

    def step(h, x_t):
        gi = jnp.dot(x_t, w_ih_t, preferred_element_type=jnp.float32) + b_ih
        gh = jnp.dot(h.astype(jnp.bfloat16), w_hh_t,
                     preferred_element_type=jnp.float32) + b_hh
        i_r, i_z, i_n = gi[:, :H], gi[:, H:2 * H], gi[:, 2 * H:]
        h_r, h_z, h_n = gh[:, :H], gh[:, H:2 * H], gh[:, 2 * H:]
        r = jax.nn.sigmoid(i_r + h_r)
        z = jax.nn.sigmoid(i_z + h_z)
        n = jnp.tanh(i_n + r * h_n)
        h_new = (1.0 - z) * n + z * h
        return h_new, None

    h0 = jnp.zeros((B, H), dtype=jnp.float32)
    h_final, _ = lax.scan(step, h0, x_emb_bf16)
    return h_final


if __name__ == "__main__":
    key = jax.random.PRNGKey(0)
    k_params, k_tok1, k_tok2 = jax.random.split(key, 3)

    VOCAB_SIZE = 50
    WORD_DIM = 128    # small lane-dense stand-in for 300 (prod: pad to 384)
    QUES_DIM = 256    # small stand-in for 1024
    BATCH = 8

    parser = QuestionParserJAX(VOCAB_SIZE, WORD_DIM, QUES_DIM, k_params)

    def run_and_check(questions, tile_t):
        q_emb = parser.forward(questions, tile_t=tile_t)
        q_emb = jax.block_until_ready(q_emb)
        x_emb = jnp.take(parser.embd, questions.T, axis=0)         # bf16
        ref = _gru_reference(x_emb, parser.w_ih_t, parser.w_hh_t,
                             parser.b_ih, parser.b_hh)
        assert q_emb.shape == (questions.shape[0], QUES_DIM)
        max_err = float(jnp.max(jnp.abs(q_emb - ref)))
        assert jnp.allclose(q_emb, ref, atol=2e-3, rtol=2e-3), max_err
        return q_emb

    # Case 1: T=20 with tile_t=16 -> 2 sequence tiles, exercises the pad-step
    # masking path on the final tile.
    q1 = jax.random.randint(
        k_tok1, (BATCH, 20), 0, VOCAB_SIZE + 1, dtype=jnp.int32)
    run_and_check(q1, tile_t=16)

    # Case 2: T=32 with tile_t=16 -> 2 full pipelined tiles, no masking.
    q2 = jax.random.randint(
        k_tok2, (BATCH, 32), 0, VOCAB_SIZE + 1, dtype=jnp.int32)
    run_and_check(q2, tile_t=16)

    print("KERNEL_OK")
</pallas_src>

<mosaic_0001>
module attributes {stable_mosaic.version = 11 : i64} {
  func.func @gru_seq_tile_kernel(%arg0: i32, %arg1: memref<128x128xbf16, #tpu.memory_space<vmem>>, %arg2: memref<128x768xbf16, #tpu.memory_space<vmem>>, %arg3: memref<256x768xbf16, #tpu.memory_space<vmem>>, %arg4: memref<1x768xf32, #tpu.memory_space<vmem>>, %arg5: memref<1x256xf32, #tpu.memory_space<vmem>>, %arg6: memref<8x256xf32, #tpu.memory_space<vmem>>, %arg7: memref<128x768xf32, #tpu.memory_space<vmem>>) attributes {dimension_semantics = [#tpu.dimension_semantics<arbitrary>], iteration_bounds = array<i64: 2>, scalar_prefetch = 0 : i64, scratch_operands = 1 : i64, tpu.core_type = #tpu.core_type<tc>, window_params = [{transform_indices = @transform_0, window_bounds = array<i64: 128, 128>}, {pipeline_mode = #tpu.pipeline_mode<synchronous>, transform_indices = @transform_1, window_bounds = array<i64: 128, 768>}, {pipeline_mode = #tpu.pipeline_mode<synchronous>, transform_indices = @transform_2, window_bounds = array<i64: 256, 768>}, {pipeline_mode = #tpu.pipeline_mode<synchronous>, transform_indices = @transform_3, window_bounds = array<i64: 1, 768>}, {pipeline_mode = #tpu.pipeline_mode<synchronous>, transform_indices = @transform_4, window_bounds = array<i64: 1, 256>}, {pipeline_mode = #tpu.pipeline_mode<synchronous>, transform_indices = @transform_5, window_bounds = array<i64: 8, 256>}]} {
    %c0_i32 = arith.constant 0 : i32
    %0 = arith.cmpi eq, %arg0, %c0_i32 : i32
    %1 = arith.extui %0 : i1 to i32
    %c0_i32_0 = arith.constant 0 : i32
    %2 = arith.cmpi ne, %1, %c0_i32_0 : i32
    scf.if %2 {
      %cst_112 = arith.constant 0.000000e+00 : f32
      %480 = vector.broadcast %cst_112 : f32 to vector<8x256xf32>
      %c0_113 = arith.constant 0 : index
      %c0_114 = arith.constant 0 : index
      %481 = vector.load %arg6[%c0_113, %c0_114] : memref<8x256xf32, #tpu.memory_space<vmem>>, vector<8x256xf32>
      tpu.vector_store %arg6[%c0_113, %c0_114], %480 {strides = array<i32>} : memref<8x256xf32, #tpu.memory_space<vmem>>, vector<8x256xf32>,
    } else {
    }
    %c0 = arith.constant 0 : index
    %c0_1 = arith.constant 0 : index
    %3 = vector.load %arg1[%c0, %c0_1] : memref<128x128xbf16, #tpu.memory_space<vmem>>, vector<128x128xbf16>
    %c0_2 = arith.constant 0 : index
    %c0_3 = arith.constant 0 : index
    %4 = vector.load %arg2[%c0_2, %c0_3] : memref<128x768xbf16, #tpu.memory_space<vmem>>, vector<128x768xbf16>
    %cst = arith.constant dense<0.000000e+00> : vector<128x768xf32>
    %5 = tpu.matmul %3, %4, %cst {dimension_numbers = #tpu.dot_dimension_numbers<[1], [0], [0], [1], [0, 0, 1, 1], [], []>} : vector<128x128xbf16>, vector<128x768xbf16>, vector<128x768xf32> -> vector<128x768xf32>
    %c0_4 = arith.constant 0 : index
    %c0_5 = arith.constant 0 : index
    %6 = vector.load %arg4[%c0_4, %c0_5] : memref<1x768xf32, #tpu.memory_space<vmem>>, vector<1x768xf32>
    %7 = vector.broadcast %6 : vector<1x768xf32> to vector<128x768xf32>
    %8 = arith.addf %5, %7 : vector<128x768xf32>
    %c0_6 = arith.constant 0 : index
    %c0_7 = arith.constant 0 : index
    %9 = vector.load %arg7[%c0_6, %c0_7] : memref<128x768xf32, #tpu.memory_space<vmem>>, vector<128x768xf32>
    tpu.vector_store %arg7[%c0_6, %c0_7], %8 {strides = array<i32>} : memref<128x768xf32, #tpu.memory_space<vmem>>, vector<128x768xf32>,
    %c0_8 = arith.constant 0 : index
    %c0_9 = arith.constant 0 : index
    %10 = vector.load %arg5[%c0_8, %c0_9] : memref<1x256xf32, #tpu.memory_space<vmem>>, vector<1x256xf32>
    %11 = vector.shape_cast %10 : vector<1x256xf32> to vector<1x256xf32>
    %12 = vector.broadcast %11 : vector<1x256xf32> to vector<8x256xf32>
    %c0_10 = arith.constant 0 : index
    %c0_11 = arith.constant 0 : index
    %13 = vector.load %arg3[%c0_10, %c0_11] : memref<256x768xbf16, #tpu.memory_space<vmem>>, vector<256x768xbf16>
    %c0_12 = arith.constant 0 : index
    %c0_13 = arith.constant 0 : index
    %14 = vector.load %arg6[%c0_12, %c0_13] : memref<8x256xf32, #tpu.memory_space<vmem>>, vector<8x256xf32>
    %c0_i32_14 = arith.constant 0 : i32
    %15 = arith.truncf %14 : vector<8x256xf32> to vector<8x256xbf16>
    %cst_15 = arith.constant dense<0.000000e+00> : vector<8x768xf32>
    %16 = tpu.matmul %15, %13, %cst_15 {dimension_numbers = #tpu.dot_dimension_numbers<[1], [0], [0], [1], [0, 0, 1, 1], [], []>} : vector<8x256xbf16>, vector<256x768xbf16>, vector<8x768xf32> -> vector<8x768xf32>
    %c8_i32 = arith.constant 8 : i32
    %17 = arith.muli %c0_i32_14, %c8_i32 : i32
    %18 = tpu.assume_multiple %17, 8 : i32
    %19 = arith.index_cast %18 : i32 to index
    %c0_16 = arith.constant 0 : index
    %20 = vector.load %arg7[%19, %c0_16] : memref<128x768xf32, #tpu.memory_space<vmem>>, vector<8x768xf32>
    %21 = vector.extract_strided_slice %20 {offsets = [0, 0], sizes = [8, 512], strides = [1, 1]} : vector<8x768xf32> to vector<8x512xf32>
    %22 = vector.extract_strided_slice %16 {offsets = [0, 0], sizes = [8, 512], strides = [1, 1]} : vector<8x768xf32> to vector<8x512xf32>
    %23 = arith.addf %21, %22 : vector<8x512xf32>
    %24 = arith.negf %23 : vector<8x512xf32>
    %25 = math.exp %24 : vector<8x512xf32>
    %cst_17 = arith.constant 1.000000e+00 : f32
    %26 = vector.broadcast %cst_17 : f32 to vector<8x512xf32>
    %27 = arith.addf %26, %25 : vector<8x512xf32>
    %28 = arith.divf %26, %27 : vector<8x512xf32>
    %29 = vector.extract_strided_slice %28 {offsets = [0, 0], sizes = [8, 256], strides = [1, 1]} : vector<8x512xf32> to vector<8x256xf32>
    %30 = vector.extract_strided_slice %28 {offsets = [0, 256], sizes = [8, 256], strides = [1, 1]} : vector<8x512xf32> to vector<8x256xf32>
    %31 = vector.extract_strided_slice %20 {offsets = [0, 512], sizes = [8, 256], strides = [1, 1]} : vector<8x768xf32> to vector<8x256xf32>
    %32 = vector.extract_strided_slice %16 {offsets = [0, 512], sizes = [8, 256], strides = [1, 1]} : vector<8x768xf32> to vector<8x256xf32>
    %33 = arith.addf %32, %12 : vector<8x256xf32>
    %34 = arith.mulf %29, %33 : vector<8x256xf32>
    %35 = arith.addf %31, %34 : vector<8x256xf32>
    %36 = math.tanh %35 : vector<8x256xf32>
    %37 = arith.subf %14, %36 : vector<8x256xf32>
    %38 = arith.mulf %30, %37 : vector<8x256xf32>
    %39 = arith.addf %36, %38 : vector<8x256xf32>
    %c16_i32 = arith.constant 16 : i32
    %40 = arith.muli %arg0, %c16_i32 : i32
    %41 = arith.addi %40, %c0_i32_14 : i32
    %c20_i32 = arith.constant 20 : i32
    %42 = arith.cmpi slt, %41, %c20_i32 : i32
    %43 = arith.select %42, %39, %14 : vector<8x256xf32>
    %c1_i32 = arith.constant 1 : i32
    %44 = arith.truncf %43 : vector<8x256xf32> to vector<8x256xbf16>
    %cst_18 = arith.constant dense<0.000000e+00> : vector<8x768xf32>
    %45 = tpu.matmul %44, %13, %cst_18 {dimension_numbers = #tpu.dot_dimension_numbers<[1], [0], [0], [1], [0, 0, 1, 1], [], []>} : vector<8x256xbf16>, vector<256x768xbf16>, vector<8x768xf32> -> vector<8x768xf32>
    %c8_i32_19 = arith.constant 8 : i32
    %46 = arith.muli %c1_i32, %c8_i32_19 : i32
    %47 = tpu.assume_multiple %46, 8 : i32
    %48 = arith.index_cast %47 : i32 to index
    %c0_20 = arith.constant 0 : index
    %49 = vector.load %arg7[%48, %c0_20] : memref<128x768xf32, #tpu.memory_space<vmem>>, vector<8x768xf32>
    %50 = vector.extract_strided_slice %49 {offsets = [0, 0], sizes = [8, 512], strides = [1, 1]} : vector<8x768xf32> to vector<8x512xf32>
    %51 = vector.extract_strided_slice %45 {offsets = [0, 0], sizes = [8, 512], strides = [1, 1]} : vector<8x768xf32> to vector<8x512xf32>
    %52 = arith.addf %50, %51 : vector<8x512xf32>
    %53 = arith.negf %52 : vector<8x512xf32>
    %54 = math.exp %53 : vector<8x512xf32>
    %cst_21 = arith.constant 1.000000e+00 : f32
    %55 = vector.broadcast %cst_21 : f32 to vector<8x512xf32>
    %56 = arith.addf %55, %54 : vector<8x512xf32>
    %57 = arith.divf %55, %56 : vector<8x512xf32>
    %58 = vector.extract_strided_slice %57 {offsets = [0, 0], sizes = [8, 256], strides = [1, 1]} : vector<8x512xf32> to vector<8x256xf32>
    %59 = vector.extract_strided_slice %57 {offsets = [0, 256], sizes = [8, 256], strides = [1, 1]} : vector<8x512xf32> to vector<8x256xf32>
    %60 = vector.extract_strided_slice %49 {offsets = [0, 512], sizes = [8, 256], strides = [1, 1]} : vector<8x768xf32> to vector<8x256xf32>
    %61 = vector.extract_strided_slice %45 {offsets = [0, 512], sizes = [8, 256], strides = [1, 1]} : vector<8x768xf32> to vector<8x256xf32>
    %62 = arith.addf %61, %12 : vector<8x256xf32>
    %63 = arith.mulf %58, %62 : vector<8x256xf32>
    %64 = arith.addf %60, %63 : vector<8x256xf32>
    %65 = math.tanh %64 : vector<8x256xf32>
    %66 = arith.subf %43, %65 : vector<8x256xf32>
    %67 = arith.mulf %59, %66 : vector<8x256xf32>
    %68 = arith.addf %65, %67 : vector<8x256xf32>
    %c16_i32_22 = arith.constant 16 : i32
    %69 = arith.muli %arg0, %c16_i32_22 : i32
    %70 = arith.addi %69, %c1_i32 : i32
    %c20_i32_23 = arith.constant 20 : i32
    %71 = arith.cmpi slt, %70, %c20_i32_23 : i32
    %72 = arith.select %71, %68, %43 : vector<8x256xf32>
    %c2_i32 = arith.constant 2 : i32
    %73 = arith.truncf %72 : vector<8x256xf32> to vector<8x256xbf16>
    %cst_24 = arith.constant dense<0.000000e+00> : vector<8x768xf32>
    %74 = tpu.matmul %73, %13, %cst_24 {dimension_numbers = #tpu.dot_dimension_numbers<[1], [0], [0], [1], [0, 0, 1, 1], [], []>} : vector<8x256xbf16>, vector<256x768xbf16>, vector<8x768xf32> -> vector<8x768xf32>
    %c8_i32_25 = arith.constant 8 : i32
    %75 = arith.muli %c2_i32, %c8_i32_25 : i32
    %76 = tpu.assume_multiple %75, 8 : i32
    %77 = arith.index_cast %76 : i32 to index
    %c0_26 = arith.constant 0 : index
    %78 = vector.load %arg7[%77, %c0_26] : memref<128x768xf32, #tpu.memory_space<vmem>>, vector<8x768xf32>
    %79 = vector.extract_strided_slice %78 {offsets = [0, 0], sizes = [8, 512], strides = [1, 1]} : vector<8x768xf32> to vector<8x512xf32>
    %80 = vector.extract_strided_slice %74 {offsets = [0, 0], sizes = [8, 512], strides = [1, 1]} : vector<8x768xf32> to vector<8x512xf32>
    %81 = arith.addf %79, %80 : vector<8x512xf32>
    %82 = arith.negf %81 : vector<8x512xf32>
    %83 = math.exp %82 : vector<8x512xf32>
    %cst_27 = arith.constant 1.000000e+00 : f32
    %84 = vector.broadcast %cst_27 : f32 to vector<8x512xf32>
    %85 = arith.addf %84, %83 : vector<8x512xf32>
    %86 = arith.divf %84, %85 : vector<8x512xf32>
    %87 = vector.extract_strided_slice %86 {offsets = [0, 0], sizes = [8, 256], strides = [1, 1]} : vector<8x512xf32> to vector<8x256xf32>
    %88 = vector.extract_strided_slice %86 {offsets = [0, 256], sizes = [8, 256], strides = [1, 1]} : vector<8x512xf32> to vector<8x256xf32>
    %89 = vector.extract_strided_slice %78 {offsets = [0, 512], sizes = [8, 256], strides = [1, 1]} : vector<8x768xf32> to vector<8x256xf32>
    %90 = vector.extract_strided_slice %74 {offsets = [0, 512], sizes = [8, 256], strides = [1, 1]} : vector<8x768xf32> to vector<8x256xf32>
    %91 = arith.addf %90, %12 : vector<8x256xf32>
    %92 = arith.mulf %87, %91 : vector<8x256xf32>
    %93 = arith.addf %89, %92 : vector<8x256xf32>
    %94 = math.tanh %93 : vector<8x256xf32>
    %95 = arith.subf %72, %94 : vector<8x256xf32>
    %96 = arith.mulf %88, %95 : vector<8x256xf32>
    %97 = arith.addf %94, %96 : vector<8x256xf32>
    %c16_i32_28 = arith.constant 16 : i32
    %98 = arith.muli %arg0, %c16_i32_28 : i32
    %99 = arith.addi %98, %c2_i32 : i32
    %c20_i32_29 = arith.constant 20 : i32
    %100 = arith.cmpi slt, %99, %c20_i32_29 : i32
    %101 = arith.select %100, %97, %72 : vector<8x256xf32>
    %c3_i32 = arith.constant 3 : i32
    %102 = arith.truncf %101 : vector<8x256xf32> to vector<8x256xbf16>
    %cst_30 = arith.constant dense<0.000000e+00> : vector<8x768xf32>
    %103 = tpu.matmul %102, %13, %cst_30 {dimension_numbers = #tpu.dot_dimension_numbers<[1], [0], [0], [1], [0, 0, 1, 1], [], []>} : vector<8x256xbf16>, vector<256x768xbf16>, vector<8x768xf32> -> vector<8x768xf32>
    %c8_i32_31 = arith.constant 8 : i32
    %104 = arith.muli %c3_i32, %c8_i32_31 : i32
    %105 = tpu.assume_multiple %104, 8 : i32
    %106 = arith.index_cast %105 : i32 to index
    %c0_32 = arith.constant 0 : index
    %107 = vector.load %arg7[%106, %c0_32] : memref<128x768xf32, #tpu.memory_space<vmem>>, vector<8x768xf32>
    %108 = vector.extract_strided_slice %107 {offsets = [0, 0], sizes = [8, 512], strides = [1, 1]} : vector<8x768xf32> to vector<8x512xf32>
    %109 = vector.extract_strided_slice %103 {offsets = [0, 0], sizes = [8, 512], strides = [1, 1]} : vector<8x768xf32> to vector<8x512xf32>
    %110 = arith.addf %108, %109 : vector<8x512xf32>
    %111 = arith.negf %110 : vector<8x512xf32>
    %112 = math.exp %111 : vector<8x512xf32>
    %cst_33 = arith.constant 1.000000e+00 : f32
    %113 = vector.broadcast %cst_33 : f32 to vector<8x512xf32>
    %114 = arith.addf %113, %112 : vector<8x512xf32>
    %115 = arith.divf %113, %114 : vector<8x512xf32>
    %116 = vector.extract_strided_slice %115 {offsets = [0, 0], sizes = [8, 256], strides = [1, 1]} : vector<8x512xf32> to vector<8x256xf32>
    %117 = vector.extract_strided_slice %115 {offsets = [0, 256], sizes = [8, 256], strides = [1, 1]} : vector<8x512xf32> to vector<8x256xf32>
    %118 = vector.extract_strided_slice %107 {offsets = [0, 512], sizes = [8, 256], strides = [1, 1]} : vector<8x768xf32> to vector<8x256xf32>
    %119 = vector.extract_strided_slice %103 {offsets = [0, 512], sizes = [8, 256], strides = [1, 1]} : vector<8x768xf32> to vector<8x256xf32>
    %120 = arith.addf %119, %12 : vector<8x256xf32>
    %121 = arith.mulf %116, %120 : vector<8x256xf32>
    %122 = arith.addf %118, %121 : vector<8x256xf32>
    %123 = math.tanh %122 : vector<8x256xf32>
    %124 = arith.subf %101, %123 : vector<8x256xf32>
    %125 = arith.mulf %117, %124 : vector<8x256xf32>
    %126 = arith.addf %123, %125 : vector<8x256xf32>
    %c16_i32_34 = arith.constant 16 : i32
    %127 = arith.muli %arg0, %c16_i32_34 : i32
    %128 = arith.addi %127, %c3_i32 : i32
    %c20_i32_35 = arith.constant 20 : i32
    %129 = arith.cmpi slt, %128, %c20_i32_35 : i32
    %130 = arith.select %129, %126, %101 : vector<8x256xf32>
    %c4_i32 = arith.constant 4 : i32
    %131 = arith.truncf %130 : vector<8x256xf32> to vector<8x256xbf16>
    %cst_36 = arith.constant dense<0.000000e+00> : vector<8x768xf32>
    %132 = tpu.matmul %131, %13, %cst_36 {dimension_numbers = #tpu.dot_dimension_numbers<[1], [0], [0], [1], [0, 0, 1, 1], [], []>} : vector<8x256xbf16>, vector<256x768xbf16>, vector<8x768xf32> -> vector<8x768xf32>
    %c8_i32_37 = arith.constant 8 : i32
    %133 = arith.muli %c4_i32, %c8_i32_37 : i32
    %134 = tpu.assume_multiple %133, 8 : i32
    %135 = arith.index_cast %134 : i32 to index
    %c0_38 = arith.constant 0 : index
    %136 = vector.load %arg7[%135, %c0_38] : memref<128x768xf32, #tpu.memory_space<vmem>>, vector<8x768xf32>
    %137 = vector.extract_strided_slice %136 {offsets = [0, 0], sizes = [8, 512], strides = [1, 1]} : vector<8x768xf32> to vector<8x512xf32>
    %138 = vector.extract_strided_slice %132 {offsets = [0, 0], sizes = [8, 512], strides = [1, 1]} : vector<8x768xf32> to vector<8x512xf32>
    %139 = arith.addf %137, %138 : vector<8x512xf32>
    %140 = arith.negf %139 : vector<8x512xf32>
    %141 = math.exp %140 : vector<8x512xf32>
    %cst_39 = arith.constant 1.000000e+00 : f32
    %142 = vector.broadcast %cst_39 : f32 to vector<8x512xf32>
    %143 = arith.addf %142, %141 : vector<8x512xf32>
    %144 = arith.divf %142, %143 : vector<8x512xf32>
    %145 = vector.extract_strided_slice %144 {offsets = [0, 0], sizes = [8, 256], strides = [1, 1]} : vector<8x512xf32> to vector<8x256xf32>
    %146 = vector.extract_strided_slice %144 {offsets = [0, 256], sizes = [8, 256], strides = [1, 1]} : vector<8x512xf32> to vector<8x256xf32>
    %147 = vector.extract_strided_slice %136 {offsets = [0, 512], sizes = [8, 256], strides = [1, 1]} : vector<8x768xf32> to vector<8x256xf32>
    %148 = vector.extract_strided_slice %132 {offsets = [0, 512], sizes = [8, 256], strides = [1, 1]} : vector<8x768xf32> to vector<8x256xf32>
    %149 = arith.addf %148, %12 : vector<8x256xf32>
    %150 = arith.mulf %145, %149 : vector<8x256xf32>
    %151 = arith.addf %147, %150 : vector<8x256xf32>
    %152 = math.tanh %151 : vector<8x256xf32>
    %153 = arith.subf %130, %152 : vector<8x256xf32>
    %154 = arith.mulf %146, %153 : vector<8x256xf32>
    %155 = arith.addf %152, %154 : vector<8x256xf32>
    %c16_i32_40 = arith.constant 16 : i32
    %156 = arith.muli %arg0, %c16_i32_40 : i32
    %157 = arith.addi %156, %c4_i32 : i32
    %c20_i32_41 = arith.constant 20 : i32
    %158 = arith.cmpi slt, %157, %c20_i32_41 : i32
    %159 = arith.select %158, %155, %130 : vector<8x256xf32>
    %c5_i32 = arith.constant 5 : i32
    %160 = arith.truncf %159 : vector<8x256xf32> to vector<8x256xbf16>
    %cst_42 = arith.constant dense<0.000000e+00> : vector<8x768xf32>
    %161 = tpu.matmul %160, %13, %cst_42 {dimension_numbers = #tpu.dot_dimension_numbers<[1], [0], [0], [1], [0, 0, 1, 1], [], []>} : vector<8x256xbf16>, vector<256x768xbf16>, vector<8x768xf32> -> vector<8x768xf32>
    %c8_i32_43 = arith.constant 8 : i32
    %162 = arith.muli %c5_i32, %c8_i32_43 : i32
    %163 = tpu.assume_multiple %162, 8 : i32
    %164 = arith.index_cast %163 : i32 to index
    %c0_44 = arith.constant 0 : index
    %165 = vector.load %arg7[%164, %c0_44] : memref<128x768xf32, #tpu.memory_space<vmem>>, vector<8x768xf32>
    %166 = vector.extract_strided_slice %165 {offsets = [0, 0], sizes = [8, 512], strides = [1, 1]} : vector<8x768xf32> to vector<8x512xf32>
    %167 = vector.extract_strided_slice %161 {offsets = [0, 0], sizes = [8, 512], strides = [1, 1]} : vector<8x768xf32> to vector<8x512xf32>
    %168 = arith.addf %166, %167 : vector<8x512xf32>
    %169 = arith.negf %168 : vector<8x512xf32>
    %170 = math.exp %169 : vector<8x512xf32>
    %cst_45 = arith.constant 1.000000e+00 : f32
    %171 = vector.broadcast %cst_45 : f32 to vector<8x512xf32>
    %172 = arith.addf %171, %170 : vector<8x512xf32>
    %173 = arith.divf %171, %172 : vector<8x512xf32>
    %174 = vector.extract_strided_slice %173 {offsets = [0, 0], sizes = [8, 256], strides = [1, 1]} : vector<8x512xf32> to vector<8x256xf32>
    %175 = vector.extract_strided_slice %173 {offsets = [0, 256], sizes = [8, 256], strides = [1, 1]} : vector<8x512xf32> to vector<8x256xf32>
    %176 = vector.extract_strided_slice %165 {offsets = [0, 512], sizes = [8, 256], strides = [1, 1]} : vector<8x768xf32> to vector<8x256xf32>
    %177 = vector.extract_strided_slice %161 {offsets = [0, 512], sizes = [8, 256], strides = [1, 1]} : vector<8x768xf32> to vector<8x256xf32>
    %178 = arith.addf %177, %12 : vector<8x256xf32>
    %179 = arith.mulf %174, %178 : vector<8x256xf32>
    %180 = arith.addf %176, %179 : vector<8x256xf32>
    %181 = math.tanh %180 : vector<8x256xf32>
    %182 = arith.subf %159, %181 : vector<8x256xf32>
    %183 = arith.mulf %175, %182 : vector<8x256xf32>
    %184 = arith.addf %181, %183 : vector<8x256xf32>
    %c16_i32_46 = arith.constant 16 : i32
    %185 = arith.muli %arg0, %c16_i32_46 : i32
    %186 = arith.addi %185, %c5_i32 : i32
    %c20_i32_47 = arith.constant 20 : i32
    %187 = arith.cmpi slt, %186, %c20_i32_47 : i32
    %188 = arith.select %187, %184, %159 : vector<8x256xf32>
    %c6_i32 = arith.constant 6 : i32
    %189 = arith.truncf %188 : vector<8x256xf32> to vector<8x256xbf16>
    %cst_48 = arith.constant dense<0.000000e+00> : vector<8x768xf32>
    %190 = tpu.matmul %189, %13, %cst_48 {dimension_numbers = #tpu.dot_dimension_numbers<[1], [0], [0], [1], [0, 0, 1, 1], [], []>} : vector<8x256xbf16>, vector<256x768xbf16>, vector<8x768xf32> -> vector<8x768xf32>
    %c8_i32_49 = arith.constant 8 : i32
    %191 = arith.muli %c6_i32, %c8_i32_49 : i32
    %192 = tpu.assume_multiple %191, 8 : i32
    %193 = arith.index_cast %192 : i32 to index
    %c0_50 = arith.constant 0 : index
    %194 = vector.load %arg7[%193, %c0_50] : memref<128x768xf32, #tpu.memory_space<vmem>>, vector<8x768xf32>
    %195 = vector.extract_strided_slice %194 {offsets = [0, 0], sizes = [8, 512], strides = [1, 1]} : vector<8x768xf32> to vector<8x512xf32>
    %196 = vector.extract_strided_slice %190 {offsets = [0, 0], sizes = [8, 512], strides = [1, 1]} : vector<8x768xf32> to vector<8x512xf32>
    %197 = arith.addf %195, %196 : vector<8x512xf32>
    %198 = arith.negf %197 : vector<8x512xf32>
    %199 = math.exp %198 : vector<8x512xf32>
    %cst_51 = arith.constant 1.000000e+00 : f32
    %200 = vector.broadcast %cst_51 : f32 to vector<8x512xf32>
    %201 = arith.addf %200, %199 : vector<8x512xf32>
    %202 = arith.divf %200, %201 : vector<8x512xf32>
    %203 = vector.extract_strided_slice %202 {offsets = [0, 0], sizes = [8, 256], strides = [1, 1]} : vector<8x512xf32> to vector<8x256xf32>
    %204 = vector.extract_strided_slice %202 {offsets = [0, 256], sizes = [8, 256], strides = [1, 1]} : vector<8x512xf32> to vector<8x256xf32>
    %205 = vector.extract_strided_slice %194 {offsets = [0, 512], sizes = [8, 256], strides = [1, 1]} : vector<8x768xf32> to vector<8x256xf32>
    %206 = vector.extract_strided_slice %190 {offsets = [0, 512], sizes = [8, 256], strides = [1, 1]} : vector<8x768xf32> to vector<8x256xf32>
    %207 = arith.addf %206, %12 : vector<8x256xf32>
    %208 = arith.mulf %203, %207 : vector<8x256xf32>
    %209 = arith.addf %205, %208 : vector<8x256xf32>
    %210 = math.tanh %209 : vector<8x256xf32>
    %211 = arith.subf %188, %210 : vector<8x256xf32>
    %212 = arith.mulf %204, %211 : vector<8x256xf32>
    %213 = arith.addf %210, %212 : vector<8x256xf32>
    %c16_i32_52 = arith.constant 16 : i32
    %214 = arith.muli %arg0, %c16_i32_52 : i32
    %215 = arith.addi %214, %c6_i32 : i32
    %c20_i32_53 = arith.constant 20 : i32
    %216 = arith.cmpi slt, %215, %c20_i32_53 : i32
    %217 = arith.select %216, %213, %188 : vector<8x256xf32>
    %c7_i32 = arith.constant 7 : i32
    %218 = arith.truncf %217 : vector<8x256xf32> to vector<8x256xbf16>
    %cst_54 = arith.constant dense<0.000000e+00> : vector<8x768xf32>
    %219 = tpu.matmul %218, %13, %cst_54 {dimension_numbers = #tpu.dot_dimension_numbers<[1], [0], [0], [1], [0, 0, 1, 1], [], []>} : vector<8x256xbf16>, vector<256x768xbf16>, vector<8x768xf32> -> vector<8x768xf32>
    %c8_i32_55 = arith.constant 8 : i32
    %220 = arith.muli %c7_i32, %c8_i32_55 : i32
    %221 = tpu.assume_multiple %220, 8 : i32
    %222 = arith.index_cast %221 : i32 to index
    %c0_56 = arith.constant 0 : index
    %223 = vector.load %arg7[%222, %c0_56] : memref<128x768xf32, #tpu.memory_space<vmem>>, vector<8x768xf32>
    %224 = vector.extract_strided_slice %223 {offsets = [0, 0], sizes = [8, 512], strides = [1, 1]} : vector<8x768xf32> to vector<8x512xf32>
    %225 = vector.extract_strided_slice %219 {offsets = [0, 0], sizes = [8, 512], strides = [1, 1]} : vector<8x768xf32> to vector<8x512xf32>
    %226 = arith.addf %224, %225 : vector<8x512xf32>
    %227 = arith.negf %226 : vector<8x512xf32>
    %228 = math.exp %227 : vector<8x512xf32>
    %cst_57 = arith.constant 1.000000e+00 : f32
    %229 = vector.broadcast %cst_57 : f32 to vector<8x512xf32>
    %230 = arith.addf %229, %228 : vector<8x512xf32>
    %231 = arith.divf %229, %230 : vector<8x512xf32>
    %232 = vector.extract_strided_slice %231 {offsets = [0, 0], sizes = [8, 256], strides = [1, 1]} : vector<8x512xf32> to vector<8x256xf32>
    %233 = vector.extract_strided_slice %231 {offsets = [0, 256], sizes = [8, 256], strides = [1, 1]} : vector<8x512xf32> to vector<8x256xf32>
    %234 = vector.extract_strided_slice %223 {offsets = [0, 512], sizes = [8, 256], strides = [1, 1]} : vector<8x768xf32> to vector<8x256xf32>
    %235 = vector.extract_strided_slice %219 {offsets = [0, 512], sizes = [8, 256], strides = [1, 1]} : vector<8x768xf32> to vector<8x256xf32>
    %236 = arith.addf %235, %12 : vector<8x256xf32>
    %237 = arith.mulf %232, %236 : vector<8x256xf32>
    %238 = arith.addf %234, %237 : vector<8x256xf32>
    %239 = math.tanh %238 : vector<8x256xf32>
    %240 = arith.subf %217, %239 : vector<8x256xf32>
    %241 = arith.mulf %233, %240 : vector<8x256xf32>
    %242 = arith.addf %239, %241 : vector<8x256xf32>
    %c16_i32_58 = arith.constant 16 : i32
    %243 = arith.muli %arg0, %c16_i32_58 : i32
    %244 = arith.addi %243, %c7_i32 : i32
    %c20_i32_59 = arith.constant 20 : i32
    %245 = arith.cmpi slt, %244, %c20_i32_59 : i32
    %246 = arith.select %245, %242, %217 : vector<8x256xf32>
    %c8_i32_60 = arith.constant 8 : i32
    %247 = arith.truncf %246 : vector<8x256xf32> to vector<8x256xbf16>
    %cst_61 = arith.constant dense<0.000000e+00> : vector<8x768xf32>
    %248 = tpu.matmul %247, %13, %cst_61 {dimension_numbers = #tpu.dot_dimension_numbers<[1], [0], [0], [1], [0, 0, 1, 1], [], []>} : vector<8x256xbf16>, vector<256x768xbf16>, vector<8x768xf32> -> vector<8x768xf32>
    %c8_i32_62 = arith.constant 8 : i32
    %249 = arith.muli %c8_i32_60, %c8_i32_62 : i32
    %250 = tpu.assume_multiple %249, 8 : i32
    %251 = arith.index_cast %250 : i32 to index
    %c0_63 = arith.constant 0 : index
    %252 = vector.load %arg7[%251, %c0_63] : memref<128x768xf32, #tpu.memory_space<vmem>>, vector<8x768xf32>
    %253 = vector.extract_strided_slice %252 {offsets = [0, 0], sizes = [8, 512], strides = [1, 1]} : vector<8x768xf32> to vector<8x512xf32>
    %254 = vector.extract_strided_slice %248 {offsets = [0, 0], sizes = [8, 512], strides = [1, 1]} : vector<8x768xf32> to vector<8x512xf32>
    %255 = arith.addf %253, %254 : vector<8x512xf32>
    %256 = arith.negf %255 : vector<8x512xf32>
    %257 = math.exp %256 : vector<8x512xf32>
    %cst_64 = arith.constant 1.000000e+00 : f32
    %258 = vector.broadcast %cst_64 : f32 to vector<8x512xf32>
    %259 = arith.addf %258, %257 : vector<8x512xf32>
    %260 = arith.divf %258, %259 : vector<8x512xf32>
    %261 = vector.extract_strided_slice %260 {offsets = [0, 0], sizes = [8, 256], strides = [1, 1]} : vector<8x512xf32> to vector<8x256xf32>
    %262 = vector.extract_strided_slice %260 {offsets = [0, 256], sizes = [8, 256], strides = [1, 1]} : vector<8x512xf32> to vector<8x256xf32>
    %263 = vector.extract_strided_slice %252 {offsets = [0, 512], sizes = [8, 256], strides = [1, 1]} : vector<8x768xf32> to vector<8x256xf32>
    %264 = vector.extract_strided_slice %248 {offsets = [0, 512], sizes = [8, 256], strides = [1, 1]} : vector<8x768xf32> to vector<8x256xf32>
    %265 = arith.addf %264, %12 : vector<8x256xf32>
    %266 = arith.mulf %261, %265 : vector<8x256xf32>
    %267 = arith.addf %263, %266 : vector<8x256xf32>
    %268 = math.tanh %267 : vector<8x256xf32>
    %269 = arith.subf %246, %268 : vector<8x256xf32>
    %270 = arith.mulf %262, %269 : vector<8x256xf32>
    %271 = arith.addf %268, %270 : vector<8x256xf32>
    %c16_i32_65 = arith.constant 16 : i32
    %272 = arith.muli %arg0, %c16_i32_65 : i32
    %273 = arith.addi %272, %c8_i32_60 : i32
    %c20_i32_66 = arith.constant 20 : i32
    %274 = arith.cmpi slt, %273, %c20_i32_66 : i32
    %275 = arith.select %274, %271, %246 : vector<8x256xf32>
    %c9_i32 = arith.constant 9 : i32
    %276 = arith.truncf %275 : vector<8x256xf32> to vector<8x256xbf16>
    %cst_67 = arith.constant dense<0.000000e+00> : vector<8x768xf32>
    %277 = tpu.matmul %276, %13, %cst_67 {dimension_numbers = #tpu.dot_dimension_numbers<[1], [0], [0], [1], [0, 0, 1, 1], [], []>} : vector<8x256xbf16>, vector<256x768xbf16>, vector<8x768xf32> -> vector<8x768xf32>
    %c8_i32_68 = arith.constant 8 : i32
    %278 = arith.muli %c9_i32, %c8_i32_68 : i32
    %279 = tpu.assume_multiple %278, 8 : i32
    %280 = arith.index_cast %279 : i32 to index
    %c0_69 = arith.constant 0 : index
    %281 = vector.load %arg7[%280, %c0_69] : memref<128x768xf32, #tpu.memory_space<vmem>>, vector<8x768xf32>
    %282 = vector.extract_strided_slice %281 {offsets = [0, 0], sizes = [8, 512], strides = [1, 1]} : vector<8x768xf32> to vector<8x512xf32>
    %283 = vector.extract_strided_slice %277 {offsets = [0, 0], sizes = [8, 512], strides = [1, 1]} : vector<8x768xf32> to vector<8x512xf32>
    %284 = arith.addf %282, %283 : vector<8x512xf32>
    %285 = arith.negf %284 : vector<8x512xf32>
    %286 = math.exp %285 : vector<8x512xf32>
    %cst_70 = arith.constant 1.000000e+00 : f32
    %287 = vector.broadcast %cst_70 : f32 to vector<8x512xf32>
    %288 = arith.addf %287, %286 : vector<8x512xf32>
    %289 = arith.divf %287, %288 : vector<8x512xf32>
    %290 = vector.extract_strided_slice %289 {offsets = [0, 0], sizes = [8, 256], strides = [1, 1]} : vector<8x512xf32> to vector<8x256xf32>
    %291 = vector.extract_strided_slice %289 {offsets = [0, 256], sizes = [8, 256], strides = [1, 1]} : vector<8x512xf32> to vector<8x256xf32>
    %292 = vector.extract_strided_slice %281 {offsets = [0, 512], sizes = [8, 256], strides = [1, 1]} : vector<8x768xf32> to vector<8x256xf32>
    %293 = vector.extract_strided_slice %277 {offsets = [0, 512], sizes = [8, 256], strides = [1, 1]} : vector<8x768xf32> to vector<8x256xf32>
    %294 = arith.addf %293, %12 : vector<8x256xf32>
    %295 = arith.mulf %290, %294 : vector<8x256xf32>
    %296 = arith.addf %292, %295 : vector<8x256xf32>
    %297 = math.tanh %296 : vector<8x256xf32>
    %298 = arith.subf %275, %297 : vector<8x256xf32>
    %299 = arith.mulf %291, %298 : vector<8x256xf32>
    %300 = arith.addf %297, %299 : vector<8x256xf32>
    %c16_i32_71 = arith.constant 16 : i32
    %301 = arith.muli %arg0, %c16_i32_71 : i32
    %302 = arith.addi %301, %c9_i32 : i32
    %c20_i32_72 = arith.constant 20 : i32
    %303 = arith.cmpi slt, %302, %c20_i32_72 : i32
    %304 = arith.select %303, %300, %275 : vector<8x256xf32>
    %c10_i32 = arith.constant 10 : i32
    %305 = arith.truncf %304 : vector<8x256xf32> to vector<8x256xbf16>
    %cst_73 = arith.constant dense<0.000000e+00> : vector<8x768xf32>
    %306 = tpu.matmul %305, %13, %cst_73 {dimension_numbers = #tpu.dot_dimension_numbers<[1], [0], [0], [1], [0, 0, 1, 1], [], []>} : vector<8x256xbf16>, vector<256x768xbf16>, vector<8x768xf32> -> vector<8x768xf32>
    %c8_i32_74 = arith.constant 8 : i32
    %307 = arith.muli %c10_i32, %c8_i32_74 : i32
    %308 = tpu.assume_multiple %307, 8 : i32
    %309 = arith.index_cast %308 : i32 to index
    %c0_75 = arith.constant 0 : index
    %310 = vector.load %arg7[%309, %c0_75] : memref<128x768xf32, #tpu.memory_space<vmem>>, vector<8x768xf32>
    %311 = vector.extract_strided_slice %310 {offsets = [0, 0], sizes = [8, 512], strides = [1, 1]} : vector<8x768xf32> to vector<8x512xf32>
    %312 = vector.extract_strided_slice %306 {offsets = [0, 0], sizes = [8, 512], strides = [1, 1]} : vector<8x768xf32> to vector<8x512xf32>
    %313 = arith.addf %311, %312 : vector<8x512xf32>
    %314 = arith.negf %313 : vector<8x512xf32>
    %315 = math.exp %314 : vector<8x512xf32>
    %cst_76 = arith.constant 1.000000e+00 : f32
    %316 = vector.broadcast %cst_76 : f32 to vector<8x512xf32>
    %317 = arith.addf %316, %315 : vector<8x512xf32>
    %318 = arith.divf %316, %317 : vector<8x512xf32>
    %319 = vector.extract_strided_slice %318 {offsets = [0, 0], sizes = [8, 256], strides = [1, 1]} : vector<8x512xf32> to vector<8x256xf32>
    %320 = vector.extract_strided_slice %318 {offsets = [0, 256], sizes = [8, 256], strides = [1, 1]} : vector<8x512xf32> to vector<8x256xf32>
    %321 = vector.extract_strided_slice %310 {offsets = [0, 512], sizes = [8, 256], strides = [1, 1]} : vector<8x768xf32> to vector<8x256xf32>
    %322 = vector.extract_strided_slice %306 {offsets = [0, 512], sizes = [8, 256], strides = [1, 1]} : vector<8x768xf32> to vector<8x256xf32>
    %323 = arith.addf %322, %12 : vector<8x256xf32>
    %324 = arith.mulf %319, %323 : vector<8x256xf32>
    %325 = arith.addf %321, %324 : vector<8x256xf32>
    %326 = math.tanh %325 : vector<8x256xf32>
    %327 = arith.subf %304, %326 : vector<8x256xf32>
    %328 = arith.mulf %320, %327 : vector<8x256xf32>
    %329 = arith.addf %326, %328 : vector<8x256xf32>
    %c16_i32_77 = arith.constant 16 : i32
    %330 = arith.muli %arg0, %c16_i32_77 : i32
    %331 = arith.addi %330, %c10_i32 : i32
    %c20_i32_78 = arith.constant 20 : i32
    %332 = arith.cmpi slt, %331, %c20_i32_78 : i32
    %333 = arith.select %332, %329, %304 : vector<8x256xf32>
    %c11_i32 = arith.constant 11 : i32
    %334 = arith.truncf %333 : vector<8x256xf32> to vector<8x256xbf16>
    %cst_79 = arith.constant dense<0.000000e+00> : vector<8x768xf32>
    %335 = tpu.matmul %334, %13, %cst_79 {dimension_numbers = #tpu.dot_dimension_numbers<[1], [0], [0], [1], [0, 0, 1, 1], [], []>} : vector<8x256xbf16>, vector<256x768xbf16>, vector<8x768xf32> -> vector<8x768xf32>
    %c8_i32_80 = arith.constant 8 : i32
    %336 = arith.muli %c11_i32, %c8_i32_80 : i32
    %337 = tpu.assume_multiple %336, 8 : i32
    %338 = arith.index_cast %337 : i32 to index
    %c0_81 = arith.constant 0 : index
    %339 = vector.load %arg7[%338, %c0_81] : memref<128x768xf32, #tpu.memory_space<vmem>>, vector<8x768xf32>
    %340 = vector.extract_strided_slice %339 {offsets = [0, 0], sizes = [8, 512], strides = [1, 1]} : vector<8x768xf32> to vector<8x512xf32>
    %341 = vector.extract_strided_slice %335 {offsets = [0, 0], sizes = [8, 512], strides = [1, 1]} : vector<8x768xf32> to vector<8x512xf32>
    %342 = arith.addf %340, %341 : vector<8x512xf32>
    %343 = arith.negf %342 : vector<8x512xf32>
    %344 = math.exp %343 : vector<8x512xf32>
    %cst_82 = arith.constant 1.000000e+00 : f32
    %345 = vector.broadcast %cst_82 : f32 to vector<8x512xf32>
    %346 = arith.addf %345, %344 : vector<8x512xf32>
    %347 = arith.divf %345, %346 : vector<8x512xf32>
    %348 = vector.extract_strided_slice %347 {offsets = [0, 0], sizes = [8, 256], strides = [1, 1]} : vector<8x512xf32> to vector<8x256xf32>
    %349 = vector.extract_strided_slice %347 {offsets = [0, 256], sizes = [8, 256], strides = [1, 1]} : vector<8x512xf32> to vector<8x256xf32>
    %350 = vector.extract_strided_slice %339 {offsets = [0, 512], sizes = [8, 256], strides = [1, 1]} : vector<8x768xf32> to vector<8x256xf32>
    %351 = vector.extract_strided_slice %335 {offsets = [0, 512], sizes = [8, 256], strides = [1, 1]} : vector<8x768xf32> to vector<8x256xf32>
    %352 = arith.addf %351, %12 : vector<8x256xf32>
    %353 = arith.mulf %348, %352 : vector<8x256xf32>
    %354 = arith.addf %350, %353 : vector<8x256xf32>
    %355 = math.tanh %354 : vector<8x256xf32>
    %356 = arith.subf %333, %355 : vector<8x256xf32>
    %357 = arith.mulf %349, %356 : vector<8x256xf32>
    %358 = arith.addf %355, %357 : vector<8x256xf32>
    %c16_i32_83 = arith.constant 16 : i32
    %359 = arith.muli %arg0, %c16_i32_83 : i32
    %360 = arith.addi %359, %c11_i32 : i32
    %c20_i32_84 = arith.constant 20 : i32
    %361 = arith.cmpi slt, %360, %c20_i32_84 : i32
    %362 = arith.select %361, %358, %333 : vector<8x256xf32>
    %c12_i32 = arith.constant 12 : i32
    %363 = arith.truncf %362 : vector<8x256xf32> to vector<8x256xbf16>
    %cst_85 = arith.constant dense<0.000000e+00> : vector<8x768xf32>
    %364 = tpu.matmul %363, %13, %cst_85 {dimension_numbers = #tpu.dot_dimension_numbers<[1], [0], [0], [1], [0, 0, 1, 1], [], []>} : vector<8x256xbf16>, vector<256x768xbf16>, vector<8x768xf32> -> vector<8x768xf32>
    %c8_i32_86 = arith.constant 8 : i32
    %365 = arith.muli %c12_i32, %c8_i32_86 : i32
    %366 = tpu.assume_multiple %365, 8 : i32
    %367 = arith.index_cast %366 : i32 to index
    %c0_87 = arith.constant 0 : index
    %368 = vector.load %arg7[%367, %c0_87] : memref<128x768xf32, #tpu.memory_space<vmem>>, vector<8x768xf32>
    %369 = vector.extract_strided_slice %368 {offsets = [0, 0], sizes = [8, 512], strides = [1, 1]} : vector<8x768xf32> to vector<8x512xf32>
    %370 = vector.extract_strided_slice %364 {offsets = [0, 0], sizes = [8, 512], strides = [1, 1]} : vector<8x768xf32> to vector<8x512xf32>
    %371 = arith.addf %369, %370 : vector<8x512xf32>
    %372 = arith.negf %371 : vector<8x512xf32>
    %373 = math.exp %372 : vector<8x512xf32>
    %cst_88 = arith.constant 1.000000e+00 : f32
    %374 = vector.broadcast %cst_88 : f32 to vector<8x512xf32>
    %375 = arith.addf %374, %373 : vector<8x512xf32>
    %376 = arith.divf %374, %375 : vector<8x512xf32>
    %377 = vector.extract_strided_slice %376 {offsets = [0, 0], sizes = [8, 256], strides = [1, 1]} : vector<8x512xf32> to vector<8x256xf32>
    %378 = vector.extract_strided_slice %376 {offsets = [0, 256], sizes = [8, 256], strides = [1, 1]} : vector<8x512xf32> to vector<8x256xf32>
    %379 = vector.extract_strided_slice %368 {offsets = [0, 512], sizes = [8, 256], strides = [1, 1]} : vector<8x768xf32> to vector<8x256xf32>
    %380 = vector.extract_strided_slice %364 {offsets = [0, 512], sizes = [8, 256], strides = [1, 1]} : vector<8x768xf32> to vector<8x256xf32>
    %381 = arith.addf %380, %12 : vector<8x256xf32>
    %382 = arith.mulf %377, %381 : vector<8x256xf32>
    %383 = arith.addf %379, %382 : vector<8x256xf32>
    %384 = math.tanh %383 : vector<8x256xf32>
    %385 = arith.subf %362, %384 : vector<8x256xf32>
    %386 = arith.mulf %378, %385 : vector<8x256xf32>
    %387 = arith.addf %384, %386 : vector<8x256xf32>
    %c16_i32_89 = arith.constant 16 : i32
    %388 = arith.muli %arg0, %c16_i32_89 : i32
    %389 = arith.addi %388, %c12_i32 : i32
    %c20_i32_90 = arith.constant 20 : i32
    %390 = arith.cmpi slt, %389, %c20_i32_90 : i32
    %391 = arith.select %390, %387, %362 : vector<8x256xf32>
    %c13_i32 = arith.constant 13 : i32
    %392 = arith.truncf %391 : vector<8x256xf32> to vector<8x256xbf16>
    %cst_91 = arith.constant dense<0.000000e+00> : vector<8x768xf32>
    %393 = tpu.matmul %392, %13, %cst_91 {dimension_numbers = #tpu.dot_dimension_numbers<[1], [0], [0], [1], [0, 0, 1, 1], [], []>} : vector<8x256xbf16>, vector<256x768xbf16>, vector<8x768xf32> -> vector<8x768xf32>
    %c8_i32_92 = arith.constant 8 : i32
    %394 = arith.muli %c13_i32, %c8_i32_92 : i32
    %395 = tpu.assume_multiple %394, 8 : i32
    %396 = arith.index_cast %395 : i32 to index
    %c0_93 = arith.constant 0 : index
    %397 = vector.load %arg7[%396, %c0_93] : memref<128x768xf32, #tpu.memory_space<vmem>>, vector<8x768xf32>
    %398 = vector.extract_strided_slice %397 {offsets = [0, 0], sizes = [8, 512], strides = [1, 1]} : vector<8x768xf32> to vector<8x512xf32>
    %399 = vector.extract_strided_slice %393 {offsets = [0, 0], sizes = [8, 512], strides = [1, 1]} : vector<8x768xf32> to vector<8x512xf32>
    %400 = arith.addf %398, %399 : vector<8x512xf32>
    %401 = arith.negf %400 : vector<8x512xf32>
    %402 = math.exp %401 : vector<8x512xf32>
    %cst_94 = arith.constant 1.000000e+00 : f32
    %403 = vector.broadcast %cst_94 : f32 to vector<8x512xf32>
    %404 = arith.addf %403, %402 : vector<8x512xf32>
    %405 = arith.divf %403, %404 : vector<8x512xf32>
    %406 = vector.extract_strided_slice %405 {offsets = [0, 0], sizes = [8, 256], strides = [1, 1]} : vector<8x512xf32> to vector<8x256xf32>
    %407 = vector.extract_strided_slice %405 {offsets = [0, 256], sizes = [8, 256], strides = [1, 1]} : vector<8x512xf32> to vector<8x256xf32>
    %408 = vector.extract_strided_slice %397 {offsets = [0, 512], sizes = [8, 256], strides = [1, 1]} : vector<8x768xf32> to vector<8x256xf32>
    %409 = vector.extract_strided_slice %393 {offsets = [0, 512], sizes = [8, 256], strides = [1, 1]} : vector<8x768xf32> to vector<8x256xf32>
    %410 = arith.addf %409, %12 : vector<8x256xf32>
    %411 = arith.mulf %406, %410 : vector<8x256xf32>
    %412 = arith.addf %408, %411 : vector<8x256xf32>
    %413 = math.tanh %412 : vector<8x256xf32>
    %414 = arith.subf %391, %413 : vector<8x256xf32>
    %415 = arith.mulf %407, %414 : vector<8x256xf32>
    %416 = arith.addf %413, %415 : vector<8x256xf32>
    %c16_i32_95 = arith.constant 16 : i32
    %417 = arith.muli %arg0, %c16_i32_95 : i32
    %418 = arith.addi %417, %c13_i32 : i32
    %c20_i32_96 = arith.constant 20 : i32
    %419 = arith.cmpi slt, %418, %c20_i32_96 : i32
    %420 = arith.select %419, %416, %391 : vector<8x256xf32>
    %c14_i32 = arith.constant 14 : i32
    %421 = arith.truncf %420 : vector<8x256xf32> to vector<8x256xbf16>
    %cst_97 = arith.constant dense<0.000000e+00> : vector<8x768xf32>
    %422 = tpu.matmul %421, %13, %cst_97 {dimension_numbers = #tpu.dot_dimension_numbers<[1], [0], [0], [1], [0, 0, 1, 1], [], []>} : vector<8x256xbf16>, vector<256x768xbf16>, vector<8x768xf32> -> vector<8x768xf32>
    %c8_i32_98 = arith.constant 8 : i32
    %423 = arith.muli %c14_i32, %c8_i32_98 : i32
    %424 = tpu.assume_multiple %423, 8 : i32
    %425 = arith.index_cast %424 : i32 to index
    %c0_99 = arith.constant 0 : index
    %426 = vector.load %arg7[%425, %c0_99] : memref<128x768xf32, #tpu.memory_space<vmem>>, vector<8x768xf32>
    %427 = vector.extract_strided_slice %426 {offsets = [0, 0], sizes = [8, 512], strides = [1, 1]} : vector<8x768xf32> to vector<8x512xf32>
    %428 = vector.extract_strided_slice %422 {offsets = [0, 0], sizes = [8, 512], strides = [1, 1]} : vector<8x768xf32> to vector<8x512xf32>
    %429 = arith.addf %427, %428 : vector<8x512xf32>
    %430 = arith.negf %429 : vector<8x512xf32>
    %431 = math.exp %430 : vector<8x512xf32>
    %cst_100 = arith.constant 1.000000e+00 : f32
    %432 = vector.broadcast %cst_100 : f32 to vector<8x512xf32>
    %433 = arith.addf %432, %431 : vector<8x512xf32>
    %434 = arith.divf %432, %433 : vector<8x512xf32>
    %435 = vector.extract_strided_slice %434 {offsets = [0, 0], sizes = [8, 256], strides = [1, 1]} : vector<8x512xf32> to vector<8x256xf32>
    %436 = vector.extract_strided_slice %434 {offsets = [0, 256], sizes = [8, 256], strides = [1, 1]} : vector<8x512xf32> to vector<8x256xf32>
    %437 = vector.extract_strided_slice %426 {offsets = [0, 512], sizes = [8, 256], strides = [1, 1]} : vector<8x768xf32> to vector<8x256xf32>
    %438 = vector.extract_strided_slice %422 {offsets = [0, 512], sizes = [8, 256], strides = [1, 1]} : vector<8x768xf32> to vector<8x256xf32>
    %439 = arith.addf %438, %12 : vector<8x256xf32>
    %440 = arith.mulf %435, %439 : vector<8x256xf32>
    %441 = arith.addf %437, %440 : vector<8x256xf32>
    %442 = math.tanh %441 : vector<8x256xf32>
    %443 = arith.subf %420, %442 : vector<8x256xf32>
    %444 = arith.mulf %436, %443 : vector<8x256xf32>
    %445 = arith.addf %442, %444 : vector<8x256xf32>
    %c16_i32_101 = arith.constant 16 : i32
    %446 = arith.muli %arg0, %c16_i32_101 : i32
    %447 = arith.addi %446, %c14_i32 : i32
    %c20_i32_102 = arith.constant 20 : i32
    %448 = arith.cmpi slt, %447, %c20_i32_102 : i32
    %449 = arith.select %448, %445, %420 : vector<8x256xf32>
    %c15_i32 = arith.constant 15 : i32
    %450 = arith.truncf %449 : vector<8x256xf32> to vector<8x256xbf16>
    %cst_103 = arith.constant dense<0.000000e+00> : vector<8x768xf32>
    %451 = tpu.matmul %450, %13, %cst_103 {dimension_numbers = #tpu.dot_dimension_numbers<[1], [0], [0], [1], [0, 0, 1, 1], [], []>} : vector<8x256xbf16>, vector<256x768xbf16>, vector<8x768xf32> -> vector<8x768xf32>
    %c8_i32_104 = arith.constant 8 : i32
    %452 = arith.muli %c15_i32, %c8_i32_104 : i32
    %453 = tpu.assume_multiple %452, 8 : i32
    %454 = arith.index_cast %453 : i32 to index
    %c0_105 = arith.constant 0 : index
    %455 = vector.load %arg7[%454, %c0_105] : memref<128x768xf32, #tpu.memory_space<vmem>>, vector<8x768xf32>
    %456 = vector.extract_strided_slice %455 {offsets = [0, 0], sizes = [8, 512], strides = [1, 1]} : vector<8x768xf32> to vector<8x512xf32>
    %457 = vector.extract_strided_slice %451 {offsets = [0, 0], sizes = [8, 512], strides = [1, 1]} : vector<8x768xf32> to vector<8x512xf32>
    %458 = arith.addf %456, %457 : vector<8x512xf32>
    %459 = arith.negf %458 : vector<8x512xf32>
    %460 = math.exp %459 : vector<8x512xf32>
    %cst_106 = arith.constant 1.000000e+00 : f32
    %461 = vector.broadcast %cst_106 : f32 to vector<8x512xf32>
    %462 = arith.addf %461, %460 : vector<8x512xf32>
    %463 = arith.divf %461, %462 : vector<8x512xf32>
    %464 = vector.extract_strided_slice %463 {offsets = [0, 0], sizes = [8, 256], strides = [1, 1]} : vector<8x512xf32> to vector<8x256xf32>
    %465 = vector.extract_strided_slice %463 {offsets = [0, 256], sizes = [8, 256], strides = [1, 1]} : vector<8x512xf32> to vector<8x256xf32>
    %466 = vector.extract_strided_slice %455 {offsets = [0, 512], sizes = [8, 256], strides = [1, 1]} : vector<8x768xf32> to vector<8x256xf32>
    %467 = vector.extract_strided_slice %451 {offsets = [0, 512], sizes = [8, 256], strides = [1, 1]} : vector<8x768xf32> to vector<8x256xf32>
    %468 = arith.addf %467, %12 : vector<8x256xf32>
    %469 = arith.mulf %464, %468 : vector<8x256xf32>
    %470 = arith.addf %466, %469 : vector<8x256xf32>
    %471 = math.tanh %470 : vector<8x256xf32>
    %472 = arith.subf %449, %471 : vector<8x256xf32>
    %473 = arith.mulf %465, %472 : vector<8x256xf32>
    %474 = arith.addf %471, %473 : vector<8x256xf32>
    %c16_i32_107 = arith.constant 16 : i32
    %475 = arith.muli %arg0, %c16_i32_107 : i32
    %476 = arith.addi %475, %c15_i32 : i32
    %c20_i32_108 = arith.constant 20 : i32
    %477 = arith.cmpi slt, %476, %c20_i32_108 : i32
    %478 = arith.select %477, %474, %449 : vector<8x256xf32>
    %c16_i32_109 = arith.constant 16 : i32
    %c0_110 = arith.constant 0 : index
    %c0_111 = arith.constant 0 : index
    %479 = vector.load %arg6[%c0_110, %c0_111] : memref<8x256xf32, #tpu.memory_space<vmem>>, vector<8x256xf32>
    tpu.vector_store %arg6[%c0_110, %c0_111], %478 {strides = array<i32>} : memref<8x256xf32, #tpu.memory_space<vmem>>, vector<8x256xf32>,
    return
  }
  func.func @transform_0(%arg0: i32) -> (i32, i32) {
    %c0_i32 = arith.constant 0 : i32
    %c0_i32_0 = arith.constant 0 : i32
    return %arg0, %c0_i32 : i32, i32
  }
  func.func @transform_1(%arg0: i32) -> (i32, i32) {
    %c0_i32 = arith.constant 0 : i32
    %c0_i32_0 = arith.constant 0 : i32
    %c0_i32_1 = arith.constant 0 : i32
    return %c0_i32, %c0_i32_0 : i32, i32
  }
  func.func @transform_2(%arg0: i32) -> (i32, i32) {
    %c0_i32 = arith.constant 0 : i32
    %c0_i32_0 = arith.constant 0 : i32
    %c0_i32_1 = arith.constant 0 : i32
    return %c0_i32, %c0_i32_0 : i32, i32
  }
  func.func @transform_3(%arg0: i32) -> (i32, i32) {
    %c0_i32 = arith.constant 0 : i32
    %c0_i32_0 = arith.constant 0 : i32
    %c0_i32_1 = arith.constant 0 : i32
    return %c0_i32, %c0_i32_0 : i32, i32
  }
  func.func @transform_4(%arg0: i32) -> (i32, i32) {
    %c0_i32 = arith.constant 0 : i32
    %c0_i32_0 = arith.constant 0 : i32
    %c0_i32_1 = arith.constant 0 : i32
    return %c0_i32, %c0_i32_0 : i32, i32
  }
  func.func @transform_5(%arg0: i32) -> (i32, i32) {
    %c0_i32 = arith.constant 0 : i32
    %c0_i32_0 = arith.constant 0 : i32
    %c0_i32_1 = arith.constant 0 : i32
    return %c0_i32, %c0_i32_0 : i32, i32
  }
}

</mosaic_0001>

<llo_original>
// kernel: tpu_custom_call.1
$region0: #{tpu_custom_call.1}
  #allocation0 [shape = 'u32[]', space=smem, size = 0x4, offset = 0x4, fixed_abs, tag = 'smem constant byte address 0x4 - core index']
  #allocation1 [shape = 'u32[144,128]{1,0:T(1,128)}', space=vmem, size = 0x12000, scoped, tag = 'internal scratch']
  #allocation2 [shape = 'f32[128,768]{1,0:T(8,128)}', space=vmem, size = 0x60000, scoped, tag = 'scratch operand']
  %s0 = inlined_call_operand.hbm [shape: bf16[256,128], index: 0, kind: input, shape index: {}]
  %s1 = inlined_call_operand.hbm [shape: bf16[128,768], index: 1, kind: input, shape index: {}]
  %s2 = inlined_call_operand.hbm [shape: bf16[256,768], index: 2, kind: input, shape index: {}]
  %s3 = inlined_call_operand.vmem [shape: f32[1,768], index: 3, kind: input, shape index: {}]
  %s4 = inlined_call_operand.vmem [shape: f32[1,256], index: 4, kind: input, shape index: {}]
  %s5 = inlined_call_operand.hbm [shape: f32[8,256], index: 5, kind: output, shape index: {}]
  %s6 = sld [smem:[#allocation0]]
  $region69: #{tpu_custom_call.1} parent=0
    _
  %s8 = ssub.s32 1, %s6
  %s9 = scalar_select 0, %s8, %s6
  $region1: #{tpu_custom_call.1} parent=0
    #allocation3 [shape = 'u8[65536]{0}', space=vmem, size = 0x10000, scoped, tag = 'input window, operand 0']
    #allocation4 [shape = 's32[2]{0}', space=sflag, size = 0x8, scoped, tag = 'scoped memory for tpu_custom_call.1']
    #allocation5 [shape = 's32[2]{0}', space=sflag, size = 0x8, scoped, tag = 'scoped memory for tpu_custom_call.1']
    #allocation6 [shape = 'u8[196608]{0}', space=vmem, size = 0x30000, scoped, tag = 'input window, operand 1, single buffered']
    #allocation7 [shape = 's32[1]{0}', space=sflag, size = 0x4, scoped, tag = 'scoped memory for tpu_custom_call.1']
    #allocation8 [shape = 'u8[393216]{0}', space=vmem, size = 0x60000, scoped, tag = 'input window, operand 2, single buffered']
    #allocation9 [shape = 'u8[8192]{0}', space=vmem, size = 0x2000, scoped, tag = 'output window, operand 0, single buffered']
    %10 = vsyncpa [#allocation4], 0
    %s11 = scalar_lea.sflag [#allocation4], 1
    %12 = vsyncpa %s11, 0
    %13 = vsyncpa [#allocation7], 0
    %14 = vsyncpa [#allocation5], 0
    loop: start=0, step=1, limit=4
    $region2: #{tpu_custom_call.1} parent=1 // loop_pre_header
      _
    $region3: #{tpu_custom_call.1} parent=1 // loop_header
      %s16 = sphi 0, %s20
      %p17 = scmp.ge.s32.totalorder %s16, 4
      %s26 = sphi 0, %s28
      %s29 = sphi 0, %s26
      %s30 = sphi 0, %s29
      %s46 = sphi 0, %s30
      %s50 = sphi 0, %s50
      %s52 = sphi 0, %s50
      %s53 = sphi 0, %s52
      %s67 = sphi 0, %s53
      %s71 = sphi 0, %s71
      %s73 = sphi 0, %s71
      %s74 = sphi 0, %s73
      %s88 = sphi 0, %s74
      %s92 = sphi 0, %s92
      %s94 = sphi 0, %s92
      %s95 = sphi 0, %s94
      %s109 = sphi 0, %s95
      %s113 = sphi 0, %s113
      %s115 = sphi 0, %s113
      %s116 = sphi 0, %s115
      %s130 = sphi 0, %s116
      %s134 = sphi 0, %s134
      %s136 = sphi 0, %s134
      %s137 = sphi 0, %s136
      %s151 = sphi 0, %s137
    $region4: #{tpu_custom_call.1} parent=1 // loop_header_branch
      %19 = sbr.rel (%p17) target = $region8
    $region5: #{tpu_custom_call.1} parent=1 // loop_body
      %s21 = ssub.s32 %s16, 1
      %s22 = ssub.s32 %s16, 2
      %s23 = sadd.s32 %s16, 1
      %s24 = ssub.s32 %s16, %s23
      %p25 = scmp.eq.s32.totalorder %s24, 0
      %s27 = sadd.s32 %s26, 1
      %s28 = scalar_select %p25, %s26, %s27
      %p31 = pneg %p25
      %p32 = scmp.eq.s32.totalorder %s16, 1
      %p33 = por %p31, %p32
      %p34 = scmp.ne.s32.totalorder %s26, %s29
      %p35 = scmp.eq.s32.totalorder %s16, 0
      %p36 = por %p34, %p35
      %p37 = scmp.ne.s32.totalorder %s26, %s29
      %p38 = scmp.eq.s32.totalorder %s21, 1
      %p39 = por %p37, %p38
      %p40 = scmp.ne.s32.totalorder %s29, %s30
      %p41 = scmp.eq.s32.totalorder %s21, 0
      %p42 = por %p40, %p41
      %p43 = scmp.ne.s32.totalorder %s29, %s30
      %p44 = scmp.eq.s32.totalorder %s22, 1
      %p45 = por %p43, %p44
      %p47 = scmp.ne.s32.totalorder %s30, %s46
      %p48 = scmp.eq.s32.totalorder %s22, 0
      %p49 = por %p47, %p48
      %s51 = sadd.s32 %s50, 1
      %p54 = scmp.eq.s32.totalorder %s16, 1
      %p55 = scmp.ne.s32.totalorder %s50, %s52
      %p56 = scmp.eq.s32.totalorder %s16, 0
      %p57 = por %p55, %p56
      %p58 = scmp.ne.s32.totalorder %s50, %s52
      %p59 = scmp.eq.s32.totalorder %s21, 1
      %p60 = por %p58, %p59
      %p61 = scmp.ne.s32.totalorder %s52, %s53
      %p62 = scmp.eq.s32.totalorder %s21, 0
      %p63 = por %p61, %p62
      %p64 = scmp.ne.s32.totalorder %s52, %s53
      %p65 = scmp.eq.s32.totalorder %s22, 1
      %p66 = por %p64, %p65
      %p68 = scmp.ne.s32.totalorder %s53, %s67
      %p69 = scmp.eq.s32.totalorder %s22, 0
      %p70 = por %p68, %p69
      %s72 = sadd.s32 %s71, 1
      %p75 = scmp.eq.s32.totalorder %s16, 1
      %p76 = scmp.ne.s32.totalorder %s71, %s73
      %p77 = scmp.eq.s32.totalorder %s16, 0
      %p78 = por %p76, %p77
      %p79 = scmp.ne.s32.totalorder %s71, %s73
      %p80 = scmp.eq.s32.totalorder %s21, 1
      %p81 = por %p79, %p80
      %p82 = scmp.ne.s32.totalorder %s73, %s74
      %p83 = scmp.eq.s32.totalorder %s21, 0
      %p84 = por %p82, %p83
      %p85 = scmp.ne.s32.totalorder %s73, %s74
      %p86 = scmp.eq.s32.totalorder %s22, 1
      %p87 = por %p85, %p86
      %p89 = scmp.ne.s32.totalorder %s74, %s88
      %p90 = scmp.eq.s32.totalorder %s22, 0
      %p91 = por %p89, %p90
      %s93 = sadd.s32 %s92, 1
      %p96 = scmp.eq.s32.totalorder %s16, 1
      %p97 = scmp.ne.s32.totalorder %s92, %s94
      %p98 = scmp.eq.s32.totalorder %s16, 0
      %p99 = por %p97, %p98
      %p100 = scmp.ne.s32.totalorder %s92, %s94
      %p101 = scmp.eq.s32.totalorder %s21, 1
      %p102 = por %p100, %p101
      %p103 = scmp.ne.s32.totalorder %s94, %s95
      %p104 = scmp.eq.s32.totalorder %s21, 0
      %p105 = por %p103, %p104
      %p106 = scmp.ne.s32.totalorder %s94, %s95
      %p107 = scmp.eq.s32.totalorder %s22, 1
      %p108 = por %p106, %p107
      %p110 = scmp.ne.s32.totalorder %s95, %s109
      %p111 = scmp.eq.s32.totalorder %s22, 0
      %p112 = por %p110, %p111
      %s114 = sadd.s32 %s113, 1
      %p117 = scmp.eq.s32.totalorder %s16, 1
      %p118 = scmp.ne.s32.totalorder %s113, %s115
      %p119 = scmp.eq.s32.totalorder %s16, 0
      %p120 = por %p118, %p119
      %p121 = scmp.ne.s32.totalorder %s113, %s115
      %p122 = scmp.eq.s32.totalorder %s21, 1
      %p123 = por %p121, %p122
      %p124 = scmp.ne.s32.totalorder %s115, %s116
      %p125 = scmp.eq.s32.totalorder %s21, 0
      %p126 = por %p124, %p125
      %p127 = scmp.ne.s32.totalorder %s115, %s116
      %p128 = scmp.eq.s32.totalorder %s22, 1
      %p129 = por %p127, %p128
      %p131 = scmp.ne.s32.totalorder %s116, %s130
      %p132 = scmp.eq.s32.totalorder %s22, 0
      %p133 = por %p131, %p132
      %s135 = sadd.s32 %s134, 1
      %p138 = scmp.eq.s32.totalorder %s16, 1
      %p139 = scmp.ne.s32.totalorder %s134, %s136
      %p140 = scmp.eq.s32.totalorder %s16, 0
      %p141 = por %p139, %p140
      %p142 = scmp.ne.s32.totalorder %s134, %s136
      %p143 = scmp.eq.s32.totalorder %s21, 1
      %p144 = por %p142, %p143
      %p145 = scmp.ne.s32.totalorder %s136, %s137
      %p146 = scmp.eq.s32.totalorder %s21, 0
      %p147 = por %p145, %p146
      %p148 = scmp.ne.s32.totalorder %s136, %s137
      %p149 = scmp.eq.s32.totalorder %s22, 1
      %p150 = por %p148, %p149
      %p152 = scmp.ne.s32.totalorder %s137, %s151
      %p153 = scmp.eq.s32.totalorder %s22, 0
      %p154 = por %p152, %p153
      %p155 = scmp.le.s32.totalorder 1, %s16
      %p156 = scmp.lt.s32.totalorder %s16, 3
      %p157 = pnand %p155, %p156
      %p158 = pneg %p157
      // Predicated region
      $region9: #{tpu_custom_call.1} parent=5 // pred_check
        _
      $region10: #{tpu_custom_call.1} parent=5 // pred_check_branch
        %160 = sbr.rel (%p157) target = $region12
      $region11: #{tpu_custom_call.1} parent=5 // pred_region
        %s161 = ssub.s32 %s16, 1
        // Predicated region
        $region13: #{tpu_custom_call.1} parent=11 // pred_check
          %p162 = pneg %p63
        $region14: #{tpu_custom_call.1} parent=11 // pred_check_branch
          %164 = sbr.rel (%p162) target = $region16
        $region15: #{tpu_custom_call.1} parent=11 // pred_region
          %s166 = ssub.s32 6144, 6144
          %167 = vsyncadd [#allocation7], %s166
          %s168 = sshll.u32 [#allocation6], 4
          %s169 = int_to_ptr.vmem [resolvable:$true] %s168
          %174 = dma.hbm_to_vmem [thread:$0]  %s1, 6144, %s169, [#allocation7], 384, 384, 24
        $region16: #{tpu_custom_call.1} parent=11 // pred_fallthru
          _
        // Predicated region
        $region17: #{tpu_custom_call.1} parent=11 // pred_check
          %p175 = pneg %p84
        $region18: #{tpu_custom_call.1} parent=11 // pred_check_branch
          %177 = sbr.rel (%p175) target = $region20
        $region19: #{tpu_custom_call.1} parent=11 // pred_region
          %s179 = ssub.s32 12288, 12288
          %180 = vsyncadd [#allocation7], %s179
          %s181 = sshll.u32 [#allocation8], 4
          %s182 = int_to_ptr.vmem [resolvable:$true] %s181
          %187 = dma.hbm_to_vmem [thread:$0]  %s2, 12288, %s182, [#allocation7], 384, 384, 24
        $region20: #{tpu_custom_call.1} parent=11 // pred_fallthru
          _
        // Predicated region
        $region21: #{tpu_custom_call.1} parent=11 // pred_check
          %p188 = pneg %p105
        $region22: #{tpu_custom_call.1} parent=11 // pred_check_branch
          %190 = sbr.rel (%p188) target = $region24
        $region23: #{tpu_custom_call.1} parent=11 // pred_region
          _
        $region24: #{tpu_custom_call.1} parent=11 // pred_fallthru
          _
        // Predicated region
        $region25: #{tpu_custom_call.1} parent=11 // pred_check
          %p191 = pneg %p126
        $region26: #{tpu_custom_call.1} parent=11 // pred_check_branch
          %193 = sbr.rel (%p191) target = $region28
        $region27: #{tpu_custom_call.1} parent=11 // pred_region
          _
        $region28: #{tpu_custom_call.1} parent=11 // pred_fallthru
          _
      $region12: #{tpu_custom_call.1} parent=5 // pred_fallthru
        _
      %p194 = scmp.lt.s32.totalorder %s16, 2
      // Predicated region
      $region29: #{tpu_custom_call.1} parent=5 // pred_check
        %p195 = pneg %p194
      $region30: #{tpu_custom_call.1} parent=5 // pred_check_branch
        %197 = sbr.rel (%p195) target = $region32
      $region31: #{tpu_custom_call.1} parent=5 // pred_region
        // Predicated region
        $region33: #{tpu_custom_call.1} parent=31 // pred_check
          %p198 = pneg %p36
        $region34: #{tpu_custom_call.1} parent=31 // pred_check_branch
          %200 = sbr.rel (%p198) target = $region36
        $region35: #{tpu_custom_call.1} parent=31 // pred_region
          %s201 = sand.u32 %s26, 1
          %s202 = scalar_lea.sflag [#allocation4], %s201
          %s203 = sand.u32 %s26, 1
          %s204 = smul.addr %s203, 64
          %s205 = scalar_lea.vmem [#allocation3], %s204
          %s206 = smul.u32 16, %s16
          %s208 = ssub.s32 1024, 1024
          %209 = vsyncadd %s202, %s208
          %s210 = smul.addr %s206, 64
          %s211 = scalar_lea.hbm %s0, %s210
          %s212 = sshll.u32 %s205, 4
          %s213 = int_to_ptr.vmem [resolvable:$true] %s212
          %218 = dma.hbm_to_vmem [thread:$0]  %s211, 1024, %s213, %s202, 64, 64, 4
        $region36: #{tpu_custom_call.1} parent=31 // pred_fallthru
          _
      $region32: #{tpu_custom_call.1} parent=5 // pred_fallthru
        _
      %p219 = scmp.le.s32.totalorder 1, %s16
      %p220 = scmp.lt.s32.totalorder %s16, 3
      %p221 = pnand %p219, %p220
      %p222 = pneg %p221
      // Predicated region
      $region37: #{tpu_custom_call.1} parent=5 // pred_check
        _
      $region38: #{tpu_custom_call.1} parent=5 // pred_check_branch
        %224 = sbr.rel (%p221) target = $region40
      $region39: #{tpu_custom_call.1} parent=5 // pred_region
        %s225 = ssub.s32 %s16, 1
        %s226 = sand.u32 %s29, 1
        %s227 = scalar_lea.sflag [#allocation4], %s226
        %s228 = sand.u32 %s29, 1
        %s229 = smul.addr %s228, 64
        %s230 = scalar_lea.vmem [#allocation3], %s229
        // Predicated region
        $region41: #{tpu_custom_call.1} parent=39 // pred_check
          %p231 = pneg %p42
        $region42: #{tpu_custom_call.1} parent=39 // pred_check_branch
          %233 = sbr.rel (%p231) target = $region44
        $region43: #{tpu_custom_call.1} parent=39 // pred_region
          %234 = dma.done %s227, 1024
        $region44: #{tpu_custom_call.1} parent=39 // pred_fallthru
          _
        // Predicated region
        $region45: #{tpu_custom_call.1} parent=39 // pred_check
          %p235 = pneg %p63
        $region46: #{tpu_custom_call.1} parent=39 // pred_check_branch
          %237 = sbr.rel (%p235) target = $region48
        $region47: #{tpu_custom_call.1} parent=39 // pred_region
          %238 = dma.done [#allocation7], 6144
        $region48: #{tpu_custom_call.1} parent=39 // pred_fallthru
          _
        // Predicated region
        $region49: #{tpu_custom_call.1} parent=39 // pred_check
          %p239 = pneg %p84
        $region50: #{tpu_custom_call.1} parent=39 // pred_check_branch
          %241 = sbr.rel (%p239) target = $region52
        $region51: #{tpu_custom_call.1} parent=39 // pred_region
          %242 = dma.done [#allocation7], 12288
        $region52: #{tpu_custom_call.1} parent=39 // pred_fallthru
          _
        %s243 = sand.u32 %s29, 1
        %s244 = scalar_lea.sflag [#allocation4], %s243
        %s245 = sand.u32 %s29, 1
        %s246 = smul.addr %s245, 64
        %s247 = scalar_lea.vmem [#allocation3], %s246
        %p248 = pneg %p42
        %p249 = pneg %p39
        %p250 = pneg %p63
        %p251 = pneg %p60
        %p252 = pneg %p84
        %p253 = pneg %p81
        %p254 = pneg %p105
        %p255 = pneg %p102
        %p256 = pneg %p126
        %p257 = pneg %p123
        %p258 = pneg %p147
        %p259 = pneg %p144
        %s260 = smul.u32 16, %s21
        %p262 = scmp.eq.s32.totalorder %s21, 0
        // Predicated region
        $region53: #{tpu_custom_call.1} parent=39 // pred_check
          %p263 = pneg %p262
        $region54: #{tpu_custom_call.1} parent=39 // pred_check_branch
          %265 = sbr.rel (%p263) target = $region56
        $region55: #{tpu_custom_call.1} parent=39 // pred_region
          %266 = vst [vmem:[#allocation9] sm:$0xff] 0.0
          %267 = vst [vmem:[#allocation9 + $0x8] sm:$0xff] 0.0
        $region56: #{tpu_custom_call.1} parent=39 // pred_fallthru
          _
        %v268 = vld [vmem:[%s230] sm:$0xf]
        %v269 = vld [vmem:[%s230 + $0x4] sm:$0xf]
        %v270 = vld [vmem:[%s230 + $0x8] sm:$0xf]
        %v271 = vld [vmem:[%s230 + $0xc] sm:$0xf]
        %v272 = vld [vmem:[%s230 + $0x10] sm:$0xf]
        %v273 = vld [vmem:[%s230 + $0x14] sm:$0xf]
        %v274 = vld [vmem:[%s230 + $0x18] sm:$0xf]
        %v275 = vld [vmem:[%s230 + $0x1c] sm:$0xf]
        %v276 = vld [vmem:[%s230 + $0x20] sm:$0xf]
        %v277 = vld [vmem:[%s230 + $0x24] sm:$0xf]
        %v278 = vld [vmem:[%s230 + $0x28] sm:$0xf]
        %v279 = vld [vmem:[%s230 + $0x2c] sm:$0xf]
        %v280 = vld [vmem:[%s230 + $0x30] sm:$0xf]
        %v281 = vld [vmem:[%s230 + $0x34] sm:$0xf]
        %v282 = vld [vmem:[%s230 + $0x38] sm:$0xf]
        %v283 = vld [vmem:[%s230 + $0x3c] sm:$0xf]
        %v284 = vld [vmem:[#allocation6] sm:$0xff]
        %v285 = vld [vmem:[#allocation6 + $0x8] sm:$0xff]
        %v286 = vld [vmem:[#allocation6 + $0x10] sm:$0xff]
        %v287 = vld [vmem:[#allocation6 + $0x18] sm:$0xff]
        %v288 = vld [vmem:[#allocation6 + $0x20] sm:$0xff]
        %v289 = vld [vmem:[#allocation6 + $0x28] sm:$0xff]
        %v290 = vld [vmem:[#allocation6 + $0x30] sm:$0xff]
        %v291 = vld [vmem:[#allocation6 + $0x38] sm:$0xff]
        %v292 = vld [vmem:[#allocation6 + $0x40] sm:$0xff]
        %v293 = vld [vmem:[#allocation6 + $0x48] sm:$0xff]
        %v294 = vld [vmem:[#allocation6 + $0x50] sm:$0xff]
        %v295 = vld [vmem:[#allocation6 + $0x58] sm:$0xff]
        %v296 = vld [vmem:[#allocation6 + $0x60] sm:$0xff]
        %v297 = vld [vmem:[#allocation6 + $0x68] sm:$0xff]
        %v298 = vld [vmem:[#allocation6 + $0x70] sm:$0xff]
        %v299 = vld [vmem:[#allocation6 + $0x78] sm:$0xff]
        %v300 = vld [vmem:[#allocation6 + $0x80] sm:$0xff]
        %v301 = vld [vmem:[#allocation6 + $0x88] sm:$0xff]
        %v302 = vld [vmem:[#allocation6 + $0x90] sm:$0xff]
        %v303 = vld [vmem:[#allocation6 + $0x98] sm:$0xff]
        %v304 = vld [vmem:[#allocation6 + $0xa0] sm:$0xff]
        %v305 = vld [vmem:[#allocation6 + $0xa8] sm:$0xff]
        %v306 = vld [vmem:[#allocation6 + $0xb0] sm:$0xff]
        %v307 = vld [vmem:[#allocation6 + $0xb8] sm:$0xff]
        %v308 = vld [vmem:[#allocation6 + $0xc0] sm:$0xff]
        %v309 = vld [vmem:[#allocation6 + $0xc8] sm:$0xff]
        %v310 = vld [vmem:[#allocation6 + $0xd0] sm:$0xff]
        %v311 = vld [vmem:[#allocation6 + $0xd8] sm:$0xff]
        %v312 = vld [vmem:[#allocation6 + $0xe0] sm:$0xff]
        %v313 = vld [vmem:[#allocation6 + $0xe8] sm:$0xff]
        %v314 = vld [vmem:[#allocation6 + $0xf0] sm:$0xff]
        %v315 = vld [vmem:[#allocation6 + $0xf8] sm:$0xff]
        %v316 = vld [vmem:[#allocation6 + $0x100] sm:$0xff]
        %v317 = vld [vmem:[#allocation6 + $0x108] sm:$0xff]
        %v318 = vld [vmem:[#allocation6 + $0x110] sm:$0xff]
        %v319 = vld [vmem:[#allocation6 + $0x118] sm:$0xff]
        %v320 = vld [vmem:[#allocation6 + $0x120] sm:$0xff]
        %v321 = vld [vmem:[#allocation6 + $0x128] sm:$0xff]
        %v322 = vld [vmem:[#allocation6 + $0x130] sm:$0xff]
        %v323 = vld [vmem:[#allocation6 + $0x138] sm:$0xff]
        %v324 = vld [vmem:[#allocation6 + $0x140] sm:$0xff]
        %v325 = vld [vmem:[#allocation6 + $0x148] sm:$0xff]
        %v326 = vld [vmem:[#allocation6 + $0x150] sm:$0xff]
        %v327 = vld [vmem:[#allocation6 + $0x158] sm:$0xff]
        %v328 = vld [vmem:[#allocation6 + $0x160] sm:$0xff]
        %v329 = vld [vmem:[#allocation6 + $0x168] sm:$0xff]
        %v330 = vld [vmem:[#allocation6 + $0x170] sm:$0xff]
        %v331 = vld [vmem:[#allocation6 + $0x178] sm:$0xff]
        %v332 = vld [vmem:[%s3] sm:$0x3f]
        %v334 = vlaneseq
        %v335 = vshrl.u32 %v334, 7
        %v336 = vsub.s32 0, %v335
        %v337 = vrot.slane %v332, %v336
        %v338 = vlaneseq
        %v339 = vshrl.u32 %v338, 7
        %v340 = vsub.s32 1, %v339
        %v341 = vrot.slane %v332, %v340
        %v342 = vlaneseq
        %v343 = vshrl.u32 %v342, 7
        %v344 = vsub.s32 2, %v343
        %v345 = vrot.slane %v332, %v344
        %v346 = vlaneseq
        %v347 = vshrl.u32 %v346, 7
        %v348 = vsub.s32 3, %v347
        %v349 = vrot.slane %v332, %v348
        %v350 = vlaneseq
        %v351 = vshrl.u32 %v350, 7
        %v352 = vsub.s32 4, %v351
        %v353 = vrot.slane %v332, %v352
        %v354 = vlaneseq
        %v355 = vshrl.u32 %v354, 7
        %v356 = vsub.s32 5, %v355
        %v357 = vrot.slane %v332, %v356
        %v380 = vunpack.c.l.b16 %v268
        %v381 = vunpack.c.l.b16 %v269
        %v382 = vunpack.c.l.b16 %v270
        %v383 = vunpack.c.l.b16 %v271
        %v384 = vunpack.c.l.b16 %v272
        %v385 = vunpack.c.l.b16 %v273
        %v386 = vunpack.c.l.b16 %v274
        %v387 = vunpack.c.l.b16 %v275
        %v388 = vunpack.c.l.b16 %v276
        %v389 = vunpack.c.l.b16 %v277
        %v390 = vunpack.c.l.b16 %v278
        %v391 = vunpack.c.l.b16 %v279
        %v392 = vunpack.c.l.b16 %v280
        %v393 = vunpack.c.l.b16 %v281
        %v394 = vunpack.c.l.b16 %v282
        %v395 = vunpack.c.l.b16 %v283
        %v396 = vpack.c.b16 %v381, %v380
        %v397 = vpack.c.b16 %v383, %v382
        %v398 = vpack.c.b16 %v385, %v384
        %v399 = vpack.c.b16 %v387, %v386
        %v400 = vpack.c.b16 %v389, %v388
        %v401 = vpack.c.b16 %v391, %v390
        %v402 = vpack.c.b16 %v393, %v392
        %v403 = vpack.c.b16 %v395, %v394
        %v460 = vunpack.c.l.b16 %v284
        %v461 = vunpack.c.h.b16 %v284
        %v462 = vunpack.c.l.b16 %v285
        %v463 = vunpack.c.h.b16 %v285
        %v464 = vunpack.c.l.b16 %v286
        %v465 = vunpack.c.h.b16 %v286
        %v466 = vunpack.c.l.b16 %v287
        %v467 = vunpack.c.h.b16 %v287
        %v468 = vunpack.c.l.b16 %v288
        %v469 = vunpack.c.h.b16 %v288
        %v470 = vunpack.c.l.b16 %v289
        %v471 = vunpack.c.h.b16 %v289
        %v472 = vunpack.c.l.b16 %v290
        %v473 = vunpack.c.h.b16 %v290
        %v474 = vunpack.c.l.b16 %v291
        %v475 = vunpack.c.h.b16 %v291
        %v476 = vunpack.c.l.b16 %v292
        %v477 = vunpack.c.h.b16 %v292
        %v478 = vunpack.c.l.b16 %v293
        %v479 = vunpack.c.h.b16 %v293
        %v480 = vunpack.c.l.b16 %v294
        %v481 = vunpack.c.h.b16 %v294
        %v482 = vunpack.c.l.b16 %v295
        %v483 = vunpack.c.h.b16 %v295
        %v484 = vunpack.c.l.b16 %v296
        %v485 = vunpack.c.h.b16 %v296
        %v486 = vunpack.c.l.b16 %v297
        %v487 = vunpack.c.h.b16 %v297
        %v488 = vunpack.c.l.b16 %v298
        %v489 = vunpack.c.h.b16 %v298
        %v490 = vunpack.c.l.b16 %v299
        %v491 = vunpack.c.h.b16 %v299
        %v492 = vunpack.c.l.b16 %v300
        %v493 = vunpack.c.h.b16 %v300
        %v494 = vunpack.c.l.b16 %v301
        %v495 = vunpack.c.h.b16 %v301
        %v496 = vunpack.c.l.b16 %v302
        %v497 = vunpack.c.h.b16 %v302
        %v498 = vunpack.c.l.b16 %v303
        %v499 = vunpack.c.h.b16 %v303
        %v500 = vunpack.c.l.b16 %v304
        %v501 = vunpack.c.h.b16 %v304
        %v502 = vunpack.c.l.b16 %v305
        %v503 = vunpack.c.h.b16 %v305
        %v504 = vunpack.c.l.b16 %v306
        %v505 = vunpack.c.h.b16 %v306
        %v506 = vunpack.c.l.b16 %v307
        %v507 = vunpack.c.h.b16 %v307
        %v508 = vunpack.c.l.b16 %v308
        %v509 = vunpack.c.h.b16 %v308
        %v510 = vunpack.c.l.b16 %v309
        %v511 = vunpack.c.h.b16 %v309
        %v512 = vunpack.c.l.b16 %v310
        %v513 = vunpack.c.h.b16 %v310
        %v514 = vunpack.c.l.b16 %v311
        %v515 = vunpack.c.h.b16 %v311
        %v516 = vunpack.c.l.b16 %v312
        %v517 = vunpack.c.h.b16 %v312
        %v518 = vunpack.c.l.b16 %v313
        %v519 = vunpack.c.h.b16 %v313
        %v520 = vunpack.c.l.b16 %v314
        %v521 = vunpack.c.h.b16 %v314
        %v522 = vunpack.c.l.b16 %v315
        %v523 = vunpack.c.h.b16 %v315
        %v524 = vunpack.c.l.b16 %v316
        %v525 = vunpack.c.h.b16 %v316
        %v526 = vunpack.c.l.b16 %v317
        %v527 = vunpack.c.h.b16 %v317
        %v528 = vunpack.c.l.b16 %v318
        %v529 = vunpack.c.h.b16 %v318
        %v530 = vunpack.c.l.b16 %v319
        %v531 = vunpack.c.h.b16 %v319
        %v532 = vunpack.c.l.b16 %v320
        %v533 = vunpack.c.h.b16 %v320
        %v534 = vunpack.c.l.b16 %v321
        %v535 = vunpack.c.h.b16 %v321
        %v536 = vunpack.c.l.b16 %v322
        %v537 = vunpack.c.h.b16 %v322
        %v538 = vunpack.c.l.b16 %v323
        %v539 = vunpack.c.h.b16 %v323
        %v540 = vunpack.c.l.b16 %v324
        %v541 = vunpack.c.h.b16 %v324
        %v542 = vunpack.c.l.b16 %v325
        %v543 = vunpack.c.h.b16 %v325
        %v544 = vunpack.c.l.b16 %v326
        %v545 = vunpack.c.h.b16 %v326
        %v546 = vunpack.c.l.b16 %v327
        %v547 = vunpack.c.h.b16 %v327
        %v548 = vunpack.c.l.b16 %v328
        %v549 = vunpack.c.h.b16 %v328
        %v550 = vunpack.c.l.b16 %v329
        %v551 = vunpack.c.h.b16 %v329
        %v552 = vunpack.c.l.b16 %v330
        %v553 = vunpack.c.h.b16 %v330
        %v554 = vunpack.c.l.b16 %v331
        %v555 = vunpack.c.h.b16 %v331
        %v556 = vpack.c.b16 %v466, %v460
        %v557 = vpack.c.b16 %v467, %v461
        %v558 = vpack.c.b16 %v468, %v462
        %v559 = vpack.c.b16 %v469, %v463
        %v560 = vpack.c.b16 %v470, %v464
        %v561 = vpack.c.b16 %v471, %v465
        %v562 = vpack.c.b16 %v478, %v472
        %v563 = vpack.c.b16 %v479, %v473
        %v564 = vpack.c.b16 %v480, %v474
        %v565 = vpack.c.b16 %v481, %v475
        %v566 = vpack.c.b16 %v482, %v476
        %v567 = vpack.c.b16 %v483, %v477
        %v568 = vpack.c.b16 %v490, %v484
        %v569 = vpack.c.b16 %v491, %v485
        %v570 = vpack.c.b16 %v492, %v486
        %v571 = vpack.c.b16 %v493, %v487
        %v572 = vpack.c.b16 %v494, %v488
        %v573 = vpack.c.b16 %v495, %v489
        %v574 = vpack.c.b16 %v502, %v496
        %v575 = vpack.c.b16 %v503, %v497
        %v576 = vpack.c.b16 %v504, %v498
        %v577 = vpack.c.b16 %v505, %v499
        %v578 = vpack.c.b16 %v506, %v500
        %v579 = vpack.c.b16 %v507, %v501
        %v580 = vpack.c.b16 %v514, %v508
        %v581 = vpack.c.b16 %v515, %v509
        %v582 = vpack.c.b16 %v516, %v510
        %v583 = vpack.c.b16 %v517, %v511
        %v584 = vpack.c.b16 %v518, %v512
        %v585 = vpack.c.b16 %v519, %v513
        %v586 = vpack.c.b16 %v526, %v520
        %v587 = vpack.c.b16 %v527, %v521
        %v588 = vpack.c.b16 %v528, %v522
        %v589 = vpack.c.b16 %v529, %v523
        %v590 = vpack.c.b16 %v530, %v524
        %v591 = vpack.c.b16 %v531, %v525
        %v592 = vpack.c.b16 %v538, %v532
        %v593 = vpack.c.b16 %v539, %v533
        %v594 = vpack.c.b16 %v540, %v534
        %v595 = vpack.c.b16 %v541, %v535
        %v596 = vpack.c.b16 %v542, %v536
        %v597 = vpack.c.b16 %v543, %v537
        %v598 = vpack.c.b16 %v550, %v544
        %v599 = vpack.c.b16 %v551, %v545
        %v600 = vpack.c.b16 %v552, %v546
        %v601 = vpack.c.b16 %v553, %v547
        %v602 = vpack.c.b16 %v554, %v548
        %v603 = vpack.c.b16 %v555, %v549
        %652 = vmatprep.subr.bf16.mxu0 %v557
        %653 = vmatpush1.bf16.msra.mxu0 %v556
        %654 = vmatprep.subr.bf16.mxu0 %v563
        %655 = vmatpush1.bf16.msra.mxu0 %v562
        %656 = vmatprep.subr.bf16.mxu0 %v569
        %657 = vmatpush1.bf16.msra.mxu0 %v568
        %658 = vmatprep.subr.bf16.mxu0 %v575
        %659 = vmatpush1.bf16.msra.mxu0 %v574
        %660 = vmatprep.subr.bf16.mxu0 %v581
        %661 = vmatpush1.bf16.msra.mxu0 %v580
        %662 = vmatprep.subr.bf16.mxu0 %v587
        %663 = vmatpush1.bf16.msra.mxu0 %v586
        %664 = vmatprep.subr.bf16.mxu0 %v593
        %665 = vmatpush1.bf16.msra.mxu0 %v592
        %666 = vmatprep.subr.bf16.mxu0 %v599
        %667 = vmatpush1.bf16.msra.mxu0 %v598
        %668 = vmatprep.subr.bf16.mxu0 0
        %669 = vmatpush1.bf16.msra.mxu0 0
        %670 = vmatprep.subr.bf16.mxu0 0
        %671 = vmatpush1.bf16.msra.mxu0 0
        %672 = vmatprep.subr.bf16.mxu0 0
        %673 = vmatpush1.bf16.msra.mxu0 0
        %674 = vmatprep.subr.bf16.mxu0 0
        %675 = vmatpush1.bf16.msra.mxu0 0
        %676 = vmatprep.subr.bf16.mxu0 0
        %677 = vmatpush1.bf16.msra.mxu0 0
        %678 = vmatprep.subr.bf16.mxu0 0
        %679 = vmatpush1.bf16.msra.mxu0 0
        %680 = vmatprep.subr.bf16.mxu0 0
        %681 = vmatpush1.bf16.msra.mxu0 0
        %682 = vmatprep.subr.bf16.mxu0 0
        %683 = vmatpush1.bf16.msra.mxu0 0
        %684 = vmatprep.mubr.bf16.mxu0 0
        %685 = vmatmul.mubr.bf16.gmra.mrb[0].mxu0 %v396
        %v686 = vpop.f32.mrb[0].mxu0
        %v687 = vadd.f32 %v337, %v686
        %v688 = vpop.f32.mrb[0].mxu0
        %v689 = vadd.f32 %v341, %v688
        %v690 = vpop.f32.mrb[0].mxu0
        %v691 = vadd.f32 %v337, %v690
        %v692 = vpop.f32.mrb[0].mxu0
        %v693 = vadd.f32 %v341, %v692
        %694 = vmatprep.mubr.bf16.mxu0 0
        %695 = vmatmul.mubr.bf16.gmra.mrb[0].mxu0 %v397
        %v696 = vpop.f32.mrb[0].mxu0
        %v697 = vadd.f32 %v337, %v696
        %v698 = vpop.f32.mrb[0].mxu0
        %v699 = vadd.f32 %v341, %v698
        %v700 = vpop.f32.mrb[0].mxu0
        %v701 = vadd.f32 %v337, %v700
        %v702 = vpop.f32.mrb[0].mxu0
        %v703 = vadd.f32 %v341, %v702
        %704 = vmatprep.mubr.bf16.mxu0 0
        %705 = vmatmul.mubr.bf16.gmra.mrb[0].mxu0 %v398
        %v706 = vpop.f32.mrb[0].mxu0
        %v707 = vadd.f32 %v337, %v706
        %v708 = vpop.f32.mrb[0].mxu0
        %v709 = vadd.f32 %v341, %v708
        %v710 = vpop.f32.mrb[0].mxu0
        %v711 = vadd.f32 %v337, %v710
        %v712 = vpop.f32.mrb[0].mxu0
        %v713 = vadd.f32 %v341, %v712
        %714 = vmatprep.mubr.bf16.mxu0 0
        %715 = vmatmul.mubr.bf16.gmra.mrb[0].mxu0 %v399
        %v716 = vpop.f32.mrb[0].mxu0
        %v717 = vadd.f32 %v337, %v716
        %v718 = vpop.f32.mrb[0].mxu0
        %v719 = vadd.f32 %v341, %v718
        %v720 = vpop.f32.mrb[0].mxu0
        %v721 = vadd.f32 %v337, %v720
        %v722 = vpop.f32.mrb[0].mxu0
        %v723 = vadd.f32 %v341, %v722
        %724 = vmatprep.mubr.bf16.mxu0 0
        %725 = vmatmul.mubr.bf16.gmra.mrb[0].mxu0 %v400
        %v726 = vpop.f32.mrb[0].mxu0
        %v727 = vadd.f32 %v337, %v726
        %v728 = vpop.f32.mrb[0].mxu0
        %v729 = vadd.f32 %v341, %v728
        %v730 = vpop.f32.mrb[0].mxu0
        %v731 = vadd.f32 %v337, %v730
        %v732 = vpop.f32.mrb[0].mxu0
        %v733 = vadd.f32 %v341, %v732
        %734 = vmatprep.mubr.bf16.mxu0 0
        %735 = vmatmul.mubr.bf16.gmra.mrb[0].mxu0 %v401
        %v736 = vpop.f32.mrb[0].mxu0
        %v737 = vadd.f32 %v337, %v736
        %v738 = vpop.f32.mrb[0].mxu0
        %v739 = vadd.f32 %v341, %v738
        %v740 = vpop.f32.mrb[0].mxu0
        %v741 = vadd.f32 %v337, %v740
        %v742 = vpop.f32.mrb[0].mxu0
        %v743 = vadd.f32 %v341, %v742
        %744 = vmatprep.mubr.bf16.mxu0 0
        %745 = vmatmul.mubr.bf16.gmra.mrb[0].mxu0 %v402
        %v746 = vpop.f32.mrb[0].mxu0
        %v747 = vadd.f32 %v337, %v746
        %v748 = vpop.f32.mrb[0].mxu0
        %v749 = vadd.f32 %v341, %v748
        %v750 = vpop.f32.mrb[0].mxu0
        %v751 = vadd.f32 %v337, %v750
        %v752 = vpop.f32.mrb[0].mxu0
        %v753 = vadd.f32 %v341, %v752
        %754 = vmatprep.mubr.bf16.mxu0 0
        %755 = vmatmul.mubr.bf16.gmra.mrb[0].mxu0 %v403
        %v756 = vpop.f32.mrb[0].mxu0
        %v757 = vadd.f32 %v337, %v756
        %v758 = vpop.f32.mrb[0].mxu0
        %v759 = vadd.f32 %v341, %v758
        %v760 = vpop.f32.mrb[0].mxu0
        %v761 = vadd.f32 %v337, %v760
        %v762 = vpop.f32.mrb[0].mxu0
        %v763 = vadd.f32 %v341, %v762
        %764 = vdwg.mxu0
        %765 = vmatprep.subr.bf16.mxu0 %v559
        %766 = vmatpush1.bf16.msra.mxu0 %v558
        %767 = vmatprep.subr.bf16.mxu0 %v565
        %768 = vmatpush1.bf16.msra.mxu0 %v564
        %769 = vmatprep.subr.bf16.mxu0 %v571
        %770 = vmatpush1.bf16.msra.mxu0 %v570
        %771 = vmatprep.subr.bf16.mxu0 %v577
        %772 = vmatpush1.bf16.msra.mxu0 %v576
        %773 = vmatprep.subr.bf16.mxu0 %v583
        %774 = vmatpush1.bf16.msra.mxu0 %v582
        %775 = vmatprep.subr.bf16.mxu0 %v589
        %776 = vmatpush1.bf16.msra.mxu0 %v588
        %777 = vmatprep.subr.bf16.mxu0 %v595
        %778 = vmatpush1.bf16.msra.mxu0 %v594
        %779 = vmatprep.subr.bf16.mxu0 %v601
        %780 = vmatpush1.bf16.msra.mxu0 %v600
        %781 = vmatprep.subr.bf16.mxu0 0
        %782 = vmatpush1.bf16.msra.mxu0 0
        %783 = vmatprep.subr.bf16.mxu0 0
        %784 = vmatpush1.bf16.msra.mxu0 0
        %785 = vmatprep.subr.bf16.mxu0 0
        %786 = vmatpush1.bf16.msra.mxu0 0
        %787 = vmatprep.subr.bf16.mxu0 0
        %788 = vmatpush1.bf16.msra.mxu0 0
        %789 = vmatprep.subr.bf16.mxu0 0
        %790 = vmatpush1.bf16.msra.mxu0 0
        %791 = vmatprep.subr.bf16.mxu0 0
        %792 = vmatpush1.bf16.msra.mxu0 0
        %793 = vmatprep.subr.bf16.mxu0 0
        %794 = vmatpush1.bf16.msra.mxu0 0
        %795 = vmatprep.subr.bf16.mxu0 0
        %796 = vmatpush1.bf16.msra.mxu0 0
        %797 = vmatprep.mubr.bf16.mxu0 0
        %798 = vmatmul.mubr.bf16.gmra.mrb[0].mxu0 %v396
        %v799 = vpop.f32.mrb[0].mxu0
        %v800 = vadd.f32 %v345, %v799
        %v801 = vpop.f32.mrb[0].mxu0
        %v802 = vadd.f32 %v349, %v801
        %v803 = vpop.f32.mrb[0].mxu0
        %v804 = vadd.f32 %v345, %v803
        %v805 = vpop.f32.mrb[0].mxu0
        %v806 = vadd.f32 %v349, %v805
        %807 = vmatprep.mubr.bf16.mxu0 0
        %808 = vmatmul.mubr.bf16.gmra.mrb[0].mxu0 %v397
        %v809 = vpop.f32.mrb[0].mxu0
        %v810 = vadd.f32 %v345, %v809
        %v811 = vpop.f32.mrb[0].mxu0
        %v812 = vadd.f32 %v349, %v811
        %v813 = vpop.f32.mrb[0].mxu0
        %v814 = vadd.f32 %v345, %v813
        %v815 = vpop.f32.mrb[0].mxu0
        %v816 = vadd.f32 %v349, %v815
        %817 = vmatprep.mubr.bf16.mxu0 0
        %818 = vmatmul.mubr.bf16.gmra.mrb[0].mxu0 %v398
        %v819 = vpop.f32.mrb[0].mxu0
        %v820 = vadd.f32 %v345, %v819
        %v821 = vpop.f32.mrb[0].mxu0
        %v822 = vadd.f32 %v349, %v821
        %v823 = vpop.f32.mrb[0].mxu0
        %v824 = vadd.f32 %v345, %v823
        %v825 = vpop.f32.mrb[0].mxu0
        %v826 = vadd.f32 %v349, %v825
        %827 = vmatprep.mubr.bf16.mxu0 0
        %828 = vmatmul.mubr.bf16.gmra.mrb[0].mxu0 %v399
        %v829 = vpop.f32.mrb[0].mxu0
        %v830 = vadd.f32 %v345, %v829
        %v831 = vpop.f32.mrb[0].mxu0
        %v832 = vadd.f32 %v349, %v831
        %v833 = vpop.f32.mrb[0].mxu0
        %v834 = vadd.f32 %v345, %v833
        %v835 = vpop.f32.mrb[0].mxu0
        %v836 = vadd.f32 %v349, %v835
        %837 = vmatprep.mubr.bf16.mxu0 0
        %838 = vmatmul.mubr.bf16.gmra.mrb[0].mxu0 %v400
        %v839 = vpop.f32.mrb[0].mxu0
        %v840 = vadd.f32 %v345, %v839
        %v841 = vpop.f32.mrb[0].mxu0
        %v842 = vadd.f32 %v349, %v841
        %v843 = vpop.f32.mrb[0].mxu0
        %v844 = vadd.f32 %v345, %v843
        %v845 = vpop.f32.mrb[0].mxu0
        %v846 = vadd.f32 %v349, %v845
        %847 = vmatprep.mubr.bf16.mxu0 0
        %848 = vmatmul.mubr.bf16.gmra.mrb[0].mxu0 %v401
        %v849 = vpop.f32.mrb[0].mxu0
        %v850 = vadd.f32 %v345, %v849
        %v851 = vpop.f32.mrb[0].mxu0
        %v852 = vadd.f32 %v349, %v851
        %v853 = vpop.f32.mrb[0].mxu0
        %v854 = vadd.f32 %v345, %v853
        %v855 = vpop.f32.mrb[0].mxu0
        %v856 = vadd.f32 %v349, %v855
        %857 = vmatprep.mubr.bf16.mxu0 0
        %858 = vmatmul.mubr.bf16.gmra.mrb[0].mxu0 %v402
        %v859 = vpop.f32.mrb[0].mxu0
        %v860 = vadd.f32 %v345, %v859
        %v861 = vpop.f32.mrb[0].mxu0
        %v862 = vadd.f32 %v349, %v861
        %v863 = vpop.f32.mrb[0].mxu0
        %v864 = vadd.f32 %v345, %v863
        %v865 = vpop.f32.mrb[0].mxu0
        %v866 = vadd.f32 %v349, %v865
        %867 = vmatprep.mubr.bf16.mxu0 0
        %868 = vmatmul.mubr.bf16.gmra.mrb[0].mxu0 %v403
        %v869 = vpop.f32.mrb[0].mxu0
        %v870 = vadd.f32 %v345, %v869
        %v871 = vpop.f32.mrb[0].mxu0
        %v872 = vadd.f32 %v349, %v871
        %v873 = vpop.f32.mrb[0].mxu0
        %v874 = vadd.f32 %v345, %v873
        %v875 = vpop.f32.mrb[0].mxu0
        %v876 = vadd.f32 %v349, %v875
        %877 = vdwg.mxu0
        %878 = vmatprep.subr.bf16.mxu0 %v561
        %879 = vmatpush1.bf16.msra.mxu0 %v560
        %880 = vmatprep.subr.bf16.mxu0 %v567
        %881 = vmatpush1.bf16.msra.mxu0 %v566
        %882 = vmatprep.subr.bf16.mxu0 %v573
        %883 = vmatpush1.bf16.msra.mxu0 %v572
        %884 = vmatprep.subr.bf16.mxu0 %v579
        %885 = vmatpush1.bf16.msra.mxu0 %v578
        %886 = vmatprep.subr.bf16.mxu0 %v585
        %887 = vmatpush1.bf16.msra.mxu0 %v584
        %888 = vmatprep.subr.bf16.mxu0 %v591
        %889 = vmatpush1.bf16.msra.mxu0 %v590
        %890 = vmatprep.subr.bf16.mxu0 %v597
        %891 = vmatpush1.bf16.msra.mxu0 %v596
        %892 = vmatprep.subr.bf16.mxu0 %v603
        %893 = vmatpush1.bf16.msra.mxu0 %v602
        %894 = vmatprep.subr.bf16.mxu0 0
        %895 = vmatpush1.bf16.msra.mxu0 0
        %896 = vmatprep.subr.bf16.mxu0 0
        %897 = vmatpush1.bf16.msra.mxu0 0
        %898 = vmatprep.subr.bf16.mxu0 0
        %899 = vmatpush1.bf16.msra.mxu0 0
        %900 = vmatprep.subr.bf16.mxu0 0
        %901 = vmatpush1.bf16.msra.mxu0 0
        %902 = vmatprep.subr.bf16.mxu0 0
        %903 = vmatpush1.bf16.msra.mxu0 0
        %904 = vmatprep.subr.bf16.mxu0 0
        %905 = vmatpush1.bf16.msra.mxu0 0
        %906 = vmatprep.subr.bf16.mxu0 0
        %907 = vmatpush1.bf16.msra.mxu0 0
        %908 = vmatprep.subr.bf16.mxu0 0
        %909 = vmatpush1.bf16.msra.mxu0 0
        %910 = vmatprep.mubr.bf16.mxu0 0
        %911 = vmatmul.mubr.bf16.gmra.mrb[0].mxu0 %v396
        %v912 = vpop.f32.mrb[0].mxu0
        %v913 = vadd.f32 %v353, %v912
        %v914 = vpop.f32.mrb[0].mxu0
        %v915 = vadd.f32 %v357, %v914
        %v916 = vpop.f32.mrb[0].mxu0
        %v917 = vadd.f32 %v353, %v916
        %v918 = vpop.f32.mrb[0].mxu0
        %v919 = vadd.f32 %v357, %v918
        %920 = vmatprep.mubr.bf16.mxu0 0
        %921 = vmatmul.mubr.bf16.gmra.mrb[0].mxu0 %v397
        %v922 = vpop.f32.mrb[0].mxu0
        %v923 = vadd.f32 %v353, %v922
        %v924 = vpop.f32.mrb[0].mxu0
        %v925 = vadd.f32 %v357, %v924
        %v926 = vpop.f32.mrb[0].mxu0
        %v927 = vadd.f32 %v353, %v926
        %v928 = vpop.f32.mrb[0].mxu0
        %v929 = vadd.f32 %v357, %v928
        %930 = vmatprep.mubr.bf16.mxu0 0
        %931 = vmatmul.mubr.bf16.gmra.mrb[0].mxu0 %v398
        %v932 = vpop.f32.mrb[0].mxu0
        %v933 = vadd.f32 %v353, %v932
        %v934 = vpop.f32.mrb[0].mxu0
        %v935 = vadd.f32 %v357, %v934
        %v936 = vpop.f32.mrb[0].mxu0
        %v937 = vadd.f32 %v353, %v936
        %v938 = vpop.f32.mrb[0].mxu0
        %v939 = vadd.f32 %v357, %v938
        %940 = vmatprep.mubr.bf16.mxu0 0
        %941 = vmatmul.mubr.bf16.gmra.mrb[0].mxu0 %v399
        %v942 = vpop.f32.mrb[0].mxu0
        %v943 = vadd.f32 %v353, %v942
        %v944 = vpop.f32.mrb[0].mxu0
        %v945 = vadd.f32 %v357, %v944
        %v946 = vpop.f32.mrb[0].mxu0
        %v947 = vadd.f32 %v353, %v946
        %v948 = vpop.f32.mrb[0].mxu0
        %v949 = vadd.f32 %v357, %v948
        %950 = vmatprep.mubr.bf16.mxu0 0
        %951 = vmatmul.mubr.bf16.gmra.mrb[0].mxu0 %v400
        %v952 = vpop.f32.mrb[0].mxu0
        %v953 = vadd.f32 %v353, %v952
        %v954 = vpop.f32.mrb[0].mxu0
        %v955 = vadd.f32 %v357, %v954
        %v956 = vpop.f32.mrb[0].mxu0
        %v957 = vadd.f32 %v353, %v956
        %v958 = vpop.f32.mrb[0].mxu0
        %v959 = vadd.f32 %v357, %v958
        %960 = vmatprep.mubr.bf16.mxu0 0
        %961 = vmatmul.mubr.bf16.gmra.mrb[0].mxu0 %v401
        %v962 = vpop.f32.mrb[0].mxu0
        %v963 = vadd.f32 %v353, %v962
        %v964 = vpop.f32.mrb[0].mxu0
        %v965 = vadd.f32 %v357, %v964
        %v966 = vpop.f32.mrb[0].mxu0
        %v967 = vadd.f32 %v353, %v966
        %v968 = vpop.f32.mrb[0].mxu0
        %v969 = vadd.f32 %v357, %v968
        %970 = vmatprep.mubr.bf16.mxu0 0
        %971 = vmatmul.mubr.bf16.gmra.mrb[0].mxu0 %v402
        %v972 = vpop.f32.mrb[0].mxu0
        %v973 = vadd.f32 %v353, %v972
        %v974 = vpop.f32.mrb[0].mxu0
        %v975 = vadd.f32 %v357, %v974
        %v976 = vpop.f32.mrb[0].mxu0
        %v977 = vadd.f32 %v353, %v976
        %v978 = vpop.f32.mrb[0].mxu0
        %v979 = vadd.f32 %v357, %v978
        %980 = vmatprep.mubr.bf16.mxu0 0
        %981 = vmatmul.mubr.bf16.gmra.mrb[0].mxu0 %v403
        %v982 = vpop.f32.mrb[0].mxu0
        %v983 = vadd.f32 %v353, %v982
        %v984 = vpop.f32.mrb[0].mxu0
        %v985 = vadd.f32 %v357, %v984
        %v986 = vpop.f32.mrb[0].mxu0
        %v987 = vadd.f32 %v353, %v986
        %v988 = vpop.f32.mrb[0].mxu0
        %v989 = vadd.f32 %v357, %v988
        %990 = vdwg.mxu0
        %991 = vst [vmem:[#allocation2] sm:$0xff] %v687
        %992 = vst [vmem:[#allocation2 + $0x8] sm:$0xff] %v689
        %993 = vst [vmem:[#allocation2 + $0x10] sm:$0xff] %v800
        %994 = vst [vmem:[#allocation2 + $0x18] sm:$0xff] %v802
        %995 = vst [vmem:[#allocation2 + $0x20] sm:$0xff] %v913
        %996 = vst [vmem:[#allocation2 + $0x28] sm:$0xff] %v915
        %997 = vst [vmem:[#allocation2 + $0x30] sm:$0xff] %v691
        %998 = vst [vmem:[#allocation2 + $0x38] sm:$0xff] %v693
        %999 = vst [vmem:[#allocation2 + $0x40] sm:$0xff] %v804
        %1000 = vst [vmem:[#allocation2 + $0x48] sm:$0xff] %v806
        %1001 = vst [vmem:[#allocation2 + $0x50] sm:$0xff] %v917
        %1002 = vst [vmem:[#allocation2 + $0x58] sm:$0xff] %v919
        %1003 = vst [vmem:[#allocation2 + $0x60] sm:$0xff] %v697
        %1004 = vst [vmem:[#allocation2 + $0x68] sm:$0xff] %v699
        %1005 = vst [vmem:[#allocation2 + $0x70] sm:$0xff] %v810
        %1006 = vst [vmem:[#allocation2 + $0x78] sm:$0xff] %v812
        %1007 = vst [vmem:[#allocation2 + $0x80] sm:$0xff] %v923
        %1008 = vst [vmem:[#allocation2 + $0x88] sm:$0xff] %v925
        %1009 = vst [vmem:[#allocation2 + $0x90] sm:$0xff] %v701
        %1010 = vst [vmem:[#allocation2 + $0x98] sm:$0xff] %v703
        %1011 = vst [vmem:[#allocation2 + $0xa0] sm:$0xff] %v814
        %1012 = vst [vmem:[#allocation2 + $0xa8] sm:$0xff] %v816
        %1013 = vst [vmem:[#allocation2 + $0xb0] sm:$0xff] %v927
        %1014 = vst [vmem:[#allocation2 + $0xb8] sm:$0xff] %v929
        %1015 = vst [vmem:[#allocation2 + $0xc0] sm:$0xff] %v707
        %1016 = vst [vmem:[#allocation2 + $0xc8] sm:$0xff] %v709
        %1017 = vst [vmem:[#allocation2 + $0xd0] sm:$0xff] %v820
        %1018 = vst [vmem:[#allocation2 + $0xd8] sm:$0xff] %v822
        %1019 = vst [vmem:[#allocation2 + $0xe0] sm:$0xff] %v933
        %1020 = vst [vmem:[#allocation2 + $0xe8] sm:$0xff] %v935
        %1021 = vst [vmem:[#allocation2 + $0xf0] sm:$0xff] %v711
        %1022 = vst [vmem:[#allocation2 + $0xf8] sm:$0xff] %v713
        %1023 = vst [vmem:[#allocation2 + $0x100] sm:$0xff] %v824
        %1024 = vst [vmem:[#allocation2 + $0x108] sm:$0xff] %v826
        %1025 = vst [vmem:[#allocation2 + $0x110] sm:$0xff] %v937
        %1026 = vst [vmem:[#allocation2 + $0x118] sm:$0xff] %v939
        %1027 = vst [vmem:[#allocation2 + $0x120] sm:$0xff] %v717
        %1028 = vst [vmem:[#allocation2 + $0x128] sm:$0xff] %v719
        %1029 = vst [vmem:[#allocation2 + $0x130] sm:$0xff] %v830
        %1030 = vst [vmem:[#allocation2 + $0x138] sm:$0xff] %v832
        %1031 = vst [vmem:[#allocation2 + $0x140] sm:$0xff] %v943
        %1032 = vst [vmem:[#allocation2 + $0x148] sm:$0xff] %v945
        %1033 = vst [vmem:[#allocation2 + $0x150] sm:$0xff] %v721
        %1034 = vst [vmem:[#allocation2 + $0x158] sm:$0xff] %v723
        %1035 = vst [vmem:[#allocation2 + $0x160] sm:$0xff] %v834
        %1036 = vst [vmem:[#allocation2 + $0x168] sm:$0xff] %v836
        %1037 = vst [vmem:[#allocation2 + $0x170] sm:$0xff] %v947
        %1038 = vst [vmem:[#allocation2 + $0x178] sm:$0xff] %v949
        %1039 = vst [vmem:[#allocation2 + $0x180] sm:$0xff] %v727
        %1040 = vst [vmem:[#allocation2 + $0x188] sm:$0xff] %v729
        %1041 = vst [vmem:[#allocation2 + $0x190] sm:$0xff] %v840
        %1042 = vst [vmem:[#allocation2 + $0x198] sm:$0xff] %v842
        %1043 = vst [vmem:[#allocation2 + $0x1a0] sm:$0xff] %v953
        %1044 = vst [vmem:[#allocation2 + $0x1a8] sm:$0xff] %v955
        %1045 = vst [vmem:[#allocation2 + $0x1b0] sm:$0xff] %v731
        %1046 = vst [vmem:[#allocation2 + $0x1b8] sm:$0xff] %v733
        %1047 = vst [vmem:[#allocation2 + $0x1c0] sm:$0xff] %v844
        %1048 = vst [vmem:[#allocation2 + $0x1c8] sm:$0xff] %v846
        %1049 = vst [vmem:[#allocation2 + $0x1d0] sm:$0xff] %v957
        %1050 = vst [vmem:[#allocation2 + $0x1d8] sm:$0xff] %v959
        %1051 = vst [vmem:[#allocation2 + $0x1e0] sm:$0xff] %v737
        %1052 = vst [vmem:[#allocation2 + $0x1e8] sm:$0xff] %v739
        %1053 = vst [vmem:[#allocation2 + $0x1f0] sm:$0xff] %v850
        %1054 = vst [vmem:[#allocation2 + $0x1f8] sm:$0xff] %v852
        %1055 = vst [vmem:[#allocation2 + $0x200] sm:$0xff] %v963
        %1056 = vst [vmem:[#allocation2 + $0x208] sm:$0xff] %v965
        %1057 = vst [vmem:[#allocation2 + $0x210] sm:$0xff] %v741
        %1058 = vst [vmem:[#allocation2 + $0x218] sm:$0xff] %v743
        %1059 = vst [vmem:[#allocation2 + $0x220] sm:$0xff] %v854
        %1060 = vst [vmem:[#allocation2 + $0x228] sm:$0xff] %v856
        %1061 = vst [vmem:[#allocation2 + $0x230] sm:$0xff] %v967
        %1062 = vst [vmem:[#allocation2 + $0x238] sm:$0xff] %v969
        %1063 = vst [vmem:[#allocation2 + $0x240] sm:$0xff] %v747
        %1064 = vst [vmem:[#allocation2 + $0x248] sm:$0xff] %v749
        %1065 = vst [vmem:[#allocation2 + $0x250] sm:$0xff] %v860
        %1066 = vst [vmem:[#allocation2 + $0x258] sm:$0xff] %v862
        %1067 = vst [vmem:[#allocation2 + $0x260] sm:$0xff] %v973
        %1068 = vst [vmem:[#allocation2 + $0x268] sm:$0xff] %v975
        %1069 = vst [vmem:[#allocation2 + $0x270] sm:$0xff] %v751
        %1070 = vst [vmem:[#allocation2 + $0x278] sm:$0xff] %v753
        %1071 = vst [vmem:[#allocation2 + $0x280] sm:$0xff] %v864
        %1072 = vst [vmem:[#allocation2 + $0x288] sm:$0xff] %v866
        %1073 = vst [vmem:[#allocation2 + $0x290] sm:$0xff] %v977
        %1074 = vst [vmem:[#allocation2 + $0x298] sm:$0xff] %v979
        %1075 = vst [vmem:[#allocation2 + $0x2a0] sm:$0xff] %v757
        %1076 = vst [vmem:[#allocation2 + $0x2a8] sm:$0xff] %v759
        %1077 = vst [vmem:[#allocation2 + $0x2b0] sm:$0xff] %v870
        %1078 = vst [vmem:[#allocation2 + $0x2b8] sm:$0xff] %v872
        %1079 = vst [vmem:[#allocation2 + $0x2c0] sm:$0xff] %v983
        %1080 = vst [vmem:[#allocation2 + $0x2c8] sm:$0xff] %v985
        %1081 = vst [vmem:[#allocation2 + $0x2d0] sm:$0xff] %v761
        %1082 = vst [vmem:[#allocation2 + $0x2d8] sm:$0xff] %v763
        %1083 = vst [vmem:[#allocation2 + $0x2e0] sm:$0xff] %v874
        %1084 = vst [vmem:[#allocation2 + $0x2e8] sm:$0xff] %v876
        %1085 = vst [vmem:[#allocation2 + $0x2f0] sm:$0xff] %v987
        %1086 = vst [vmem:[#allocation2 + $0x2f8] sm:$0xff] %v989
        %v1087 = vld [vmem:[%s4] sm:$0x3]
        %v1089 = vlaneseq
        %v1090 = vshrl.u32 %v1089, 7
        %v1091 = vsub.s32 0, %v1090
        %v1092 = vrot.slane %v1087, %v1091
        %v1093 = vlaneseq
        %v1094 = vshrl.u32 %v1093, 7
        %v1095 = vsub.s32 1, %v1094
        %v1096 = vrot.slane %v1087, %v1095
        %v1099 = vld [vmem:[#allocation8] sm:$0xff]
        %v1100 = vld [vmem:[#allocation8 + $0x8] sm:$0xff]
        %v1101 = vld [vmem:[#allocation8 + $0x10] sm:$0xff]
        %v1102 = vld [vmem:[#allocation8 + $0x18] sm:$0xff]
        %v1103 = vld [vmem:[#allocation8 + $0x20] sm:$0xff]
        %v1104 = vld [vmem:[#allocation8 + $0x28] sm:$0xff]
        %v1105 = vld [vmem:[#allocation8 + $0x30] sm:$0xff]
        %v1106 = vld [vmem:[#allocation8 + $0x38] sm:$0xff]
        %v1107 = vld [vmem:[#allocation8 + $0x40] sm:$0xff]
        %v1108 = vld [vmem:[#allocation8 + $0x48] sm:$0xff]
        %v1109 = vld [vmem:[#allocation8 + $0x50] sm:$0xff]
        %v1110 = vld [vmem:[#allocation8 + $0x58] sm:$0xff]
        %v1111 = vld [vmem:[#allocation8 + $0x60] sm:$0xff]
        %v1112 = vld [vmem:[#allocation8 + $0x68] sm:$0xff]
        %v1113 = vld [vmem:[#allocation8 + $0x70] sm:$0xff]
        %v1114 = vld [vmem:[#allocation8 + $0x78] sm:$0xff]
        %v1115 = vld [vmem:[#allocation8 + $0x80] sm:$0xff]
        %v1116 = vld [vmem:[#allocation8 + $0x88] sm:$0xff]
        %v1117 = vld [vmem:[#allocation8 + $0x90] sm:$0xff]
        %v1118 = vld [vmem:[#allocation8 + $0x98] sm:$0xff]
        %v1119 = vld [vmem:[#allocation8 + $0xa0] sm:$0xff]
        %v1120 = vld [vmem:[#allocation8 + $0xa8] sm:$0xff]
        %v1121 = vld [vmem:[#allocation8 + $0xb0] sm:$0xff]
        %v1122 = vld [vmem:[#allocation8 + $0xb8] sm:$0xff]
        %v1123 = vld [vmem:[#allocation8 + $0xc0] sm:$0xff]
        %v1124 = vld [vmem:[#allocation8 + $0xc8] sm:$0xff]
        %v1125 = vld [vmem:[#allocation8 + $0xd0] sm:$0xff]
        %v1126 = vld [vmem:[#allocation8 + $0xd8] sm:$0xff]
        %v1127 = vld [vmem:[#allocation8 + $0xe0] sm:$0xff]
        %v1128 = vld [vmem:[#allocation8 + $0xe8] sm:$0xff]
        %v1129 = vld [vmem:[#allocation8 + $0xf0] sm:$0xff]
        %v1130 = vld [vmem:[#allocation8 + $0xf8] sm:$0xff]
        %v1131 = vld [vmem:[#allocation8 + $0x100] sm:$0xff]
        %v1132 = vld [vmem:[#allocation8 + $0x108] sm:$0xff]
        %v1133 = vld [vmem:[#allocation8 + $0x110] sm:$0xff]
        %v1134 = vld [vmem:[#allocation8 + $0x118] sm:$0xff]
        %v1135 = vld [vmem:[#allocation8 + $0x120] sm:$0xff]
        %v1136 = vld [vmem:[#allocation8 + $0x128] sm:$0xff]
        %v1137 = vld [vmem:[#allocation8 + $0x130] sm:$0xff]
        %v1138 = vld [vmem:[#allocation8 + $0x138] sm:$0xff]
        %v1139 = vld [vmem:[#allocation8 + $0x140] sm:$0xff]
        %v1140 = vld [vmem:[#allocation8 + $0x148] sm:$0xff]
        %v1141 = vld [vmem:[#allocation8 + $0x150] sm:$0xff]
        %v1142 = vld [vmem:[#allocation8 + $0x158] sm:$0xff]
        %v1143 = vld [vmem:[#allocation8 + $0x160] sm:$0xff]
        %v1144 = vld [vmem:[#allocation8 + $0x168] sm:$0xff]
        %v1145 = vld [vmem:[#allocation8 + $0x170] sm:$0xff]
        %v1146 = vld [vmem:[#allocation8 + $0x178] sm:$0xff]
        %v1147 = vld [vmem:[#allocation8 + $0x180] sm:$0xff]
        %v1148 = vld [vmem:[#allocation8 + $0x188] sm:$0xff]
        %v1149 = vld [vmem:[#allocation8 + $0x190] sm:$0xff]
        %v1150 = vld [vmem:[#allocation8 + $0x198] sm:$0xff]
        %v1151 = vld [vmem:[#allocation8 + $0x1a0] sm:$0xff]
        %v1152 = vld [vmem:[#allocation8 + $0x1a8] sm:$0xff]
        %v1153 = vld [vmem:[#allocation8 + $0x1b0] sm:$0xff]
        %v1154 = vld [vmem:[#allocation8 + $0x1b8] sm:$0xff]
        %v1155 = vld [vmem:[#allocation8 + $0x1c0] sm:$0xff]
        %v1156 = vld [vmem:[#allocation8 + $0x1c8] sm:$0xff]
        %v1157 = vld [vmem:[#allocation8 + $0x1d0] sm:$0xff]
        %v1158 = vld [vmem:[#allocation8 + $0x1d8] sm:$0xff]
        %v1159 = vld [vmem:[#allocation8 + $0x1e0] sm:$0xff]
        %v1160 = vld [vmem:[#allocation8 + $0x1e8] sm:$0xff]
        %v1161 = vld [vmem:[#allocation8 + $0x1f0] sm:$0xff]
        %v1162 = vld [vmem:[#allocation8 + $0x1f8] sm:$0xff]
        %v1163 = vld [vmem:[#allocation8 + $0x200] sm:$0xff]
        %v1164 = vld [vmem:[#allocation8 + $0x208] sm:$0xff]
        %v1165 = vld [vmem:[#allocation8 + $0x210] sm:$0xff]
        %v1166 = vld [vmem:[#allocation8 + $0x218] sm:$0xff]
        %v1167 = vld [vmem:[#allocation8 + $0x220] sm:$0xff]
        %v1168 = vld [vmem:[#allocation8 + $0x228] sm:$0xff]
        %v1169 = vld [vmem:[#allocation8 + $0x230] sm:$0xff]
        %v1170 = vld [vmem:[#allocation8 + $0x238] sm:$0xff]
        %v1171 = vld [vmem:[#allocation8 + $0x240] sm:$0xff]
        %v1172 = vld [vmem:[#allocation8 + $0x248] sm:$0xff]
        %v1173 = vld [vmem:[#allocation8 + $0x250] sm:$0xff]
        %v1174 = vld [vmem:[#allocation8 + $0x258] sm:$0xff]
        %v1175 = vld [vmem:[#allocation8 + $0x260] sm:$0xff]
        %v1176 = vld [vmem:[#allocation8 + $0x268] sm:$0xff]
        %v1177 = vld [vmem:[#allocation8 + $0x270] sm:$0xff]
        %v1178 = vld [vmem:[#allocation8 + $0x278] sm:$0xff]
        %v1179 = vld [vmem:[#allocation8 + $0x280] sm:$0xff]
        %v1180 = vld [vmem:[#allocation8 + $0x288] sm:$0xff]
        %v1181 = vld [vmem:[#allocation8 + $0x290] sm:$0xff]
        %v1182 = vld [vmem:[#allocation8 + $0x298] sm:$0xff]
        %v1183 = vld [vmem:[#allocation8 + $0x2a0] sm:$0xff]
        %v1184 = vld [vmem:[#allocation8 + $0x2a8] sm:$0xff]
        %v1185 = vld [vmem:[#allocation8 + $0x2b0] sm:$0xff]
        %v1186 = vld [vmem:[#allocation8 + $0x2b8] sm:$0xff]
        %v1187 = vld [vmem:[#allocation8 + $0x2c0] sm:$0xff]
        %v1188 = vld [vmem:[#allocation8 + $0x2c8] sm:$0xff]
        %v1189 = vld [vmem:[#allocation8 + $0x2d0] sm:$0xff]
        %v1190 = vld [vmem:[#allocation8 + $0x2d8] sm:$0xff]
        %v1191 = vld [vmem:[#allocation8 + $0x2e0] sm:$0xff]
        %v1192 = vld [vmem:[#allocation8 + $0x2e8] sm:$0xff]
        %v1193 = vld [vmem:[#allocation8 + $0x2f0] sm:$0xff]
        %v1194 = vld [vmem:[#allocation8 + $0x2f8] sm:$0xff]
        %v1195 = vld [vmem:[#allocation9] sm:$0xff]
        %v1196 = vld [vmem:[#allocation9 + $0x8] sm:$0xff]
        %v1197 = vpack.c.bf16 %v1195, %v1195
        %v1198 = vpack.c.bf16 %v1196, %v1196
        %v1295 = vunpack.c.l.b16 %v1099
        %v1296 = vunpack.c.h.b16 %v1099
        %v1297 = vunpack.c.l.b16 %v1100
        %v1298 = vunpack.c.h.b16 %v1100
        %v1299 = vunpack.c.l.b16 %v1101
        %v1300 = vunpack.c.h.b16 %v1101
        %v1301 = vunpack.c.l.b16 %v1102
        %v1302 = vunpack.c.h.b16 %v1102
        %v1303 = vunpack.c.l.b16 %v1103
        %v1304 = vunpack.c.h.b16 %v1103
        %v1305 = vunpack.c.l.b16 %v1104
        %v1306 = vunpack.c.h.b16 %v1104
        %v1307 = vunpack.c.l.b16 %v1105
        %v1308 = vunpack.c.h.b16 %v1105
        %v1309 = vunpack.c.l.b16 %v1106
        %v1310 = vunpack.c.h.b16 %v1106
        %v1311 = vunpack.c.l.b16 %v1107
        %v1312 = vunpack.c.h.b16 %v1107
        %v1313 = vunpack.c.l.b16 %v1108
        %v1314 = vunpack.c.h.b16 %v1108
        %v1315 = vunpack.c.l.b16 %v1109
        %v1316 = vunpack.c.h.b16 %v1109
        %v1317 = vunpack.c.l.b16 %v1110
        %v1318 = vunpack.c.h.b16 %v1110
        %v1319 = vunpack.c.l.b16 %v1111
        %v1320 = vunpack.c.h.b16 %v1111
        %v1321 = vunpack.c.l.b16 %v1112
        %v1322 = vunpack.c.h.b16 %v1112
        %v1323 = vunpack.c.l.b16 %v1113
        %v1324 = vunpack.c.h.b16 %v1113
        %v1325 = vunpack.c.l.b16 %v1114
        %v1326 = vunpack.c.h.b16 %v1114
        %v1327 = vunpack.c.l.b16 %v1115
        %v1328 = vunpack.c.h.b16 %v1115
        %v1329 = vunpack.c.l.b16 %v1116
        %v1330 = vunpack.c.h.b16 %v1116
        %v1331 = vunpack.c.l.b16 %v1117
        %v1332 = vunpack.c.h.b16 %v1117
        %v1333 = vunpack.c.l.b16 %v1118
        %v1334 = vunpack.c.h.b16 %v1118
        %v1335 = vunpack.c.l.b16 %v1119
        %v1336 = vunpack.c.h.b16 %v1119
        %v1337 = vunpack.c.l.b16 %v1120
        %v1338 = vunpack.c.h.b16 %v1120
        %v1339 = vunpack.c.l.b16 %v1121
        %v1340 = vunpack.c.h.b16 %v1121
        %v1341 = vunpack.c.l.b16 %v1122
        %v1342 = vunpack.c.h.b16 %v1122
        %v1343 = vunpack.c.l.b16 %v1123
        %v1344 = vunpack.c.h.b16 %v1123
        %v1345 = vunpack.c.l.b16 %v1124
        %v1346 = vunpack.c.h.b16 %v1124
        %v1347 = vunpack.c.l.b16 %v1125
        %v1348 = vunpack.c.h.b16 %v1125
        %v1349 = vunpack.c.l.b16 %v1126
        %v1350 = vunpack.c.h.b16 %v1126
        %v1351 = vunpack.c.l.b16 %v1127
        %v1352 = vunpack.c.h.b16 %v1127
        %v1353 = vunpack.c.l.b16 %v1128
        %v1354 = vunpack.c.h.b16 %v1128
        %v1355 = vunpack.c.l.b16 %v1129
        %v1356 = vunpack.c.h.b16 %v1129
        %v1357 = vunpack.c.l.b16 %v1130
        %v1358 = vunpack.c.h.b16 %v1130
        %v1359 = vunpack.c.l.b16 %v1131
        %v1360 = vunpack.c.h.b16 %v1131
        %v1361 = vunpack.c.l.b16 %v1132
        %v1362 = vunpack.c.h.b16 %v1132
        %v1363 = vunpack.c.l.b16 %v1133
        %v1364 = vunpack.c.h.b16 %v1133
        %v1365 = vunpack.c.l.b16 %v1134
        %v1366 = vunpack.c.h.b16 %v1134
        %v1367 = vunpack.c.l.b16 %v1135
        %v1368 = vunpack.c.h.b16 %v1135
        %v1369 = vunpack.c.l.b16 %v1136
        %v1370 = vunpack.c.h.b16 %v1136
        %v1371 = vunpack.c.l.b16 %v1137
        %v1372 = vunpack.c.h.b16 %v1137
        %v1373 = vunpack.c.l.b16 %v1138
        %v1374 = vunpack.c.h.b16 %v1138
        %v1375 = vunpack.c.l.b16 %v1139
        %v1376 = vunpack.c.h.b16 %v1139
        %v1377 = vunpack.c.l.b16 %v1140
        %v1378 = vunpack.c.h.b16 %v1140
        %v1379 = vunpack.c.l.b16 %v1141
        %v1380 = vunpack.c.h.b16 %v1141
        %v1381 = vunpack.c.l.b16 %v1142
        %v1382 = vunpack.c.h.b16 %v1142
        %v1383 = vunpack.c.l.b16 %v1143
        %v1384 = vunpack.c.h.b16 %v1143
        %v1385 = vunpack.c.l.b16 %v1144
        %v1386 = vunpack.c.h.b16 %v1144
        %v1387 = vunpack.c.l.b16 %v1145
        %v1388 = vunpack.c.h.b16 %v1145
        %v1389 = vunpack.c.l.b16 %v1146
        %v1390 = vunpack.c.h.b16 %v1146
        %v1391 = vunpack.c.l.b16 %v1147
        %v1392 = vunpack.c.h.b16 %v1147
        %v1393 = vunpack.c.l.b16 %v1148
        %v1394 = vunpack.c.h.b16 %v1148
        %v1395 = vunpack.c.l.b16 %v1149
        %v1396 = vunpack.c.h.b16 %v1149
        %v1397 = vunpack.c.l.b16 %v1150
        %v1398 = vunpack.c.h.b16 %v1150
        %v1399 = vunpack.c.l.b16 %v1151
        %v1400 = vunpack.c.h.b16 %v1151
        %v1401 = vunpack.c.l.b16 %v1152
        %v1402 = vunpack.c.h.b16 %v1152
        %v1403 = vunpack.c.l.b16 %v1153
        %v1404 = vunpack.c.h.b16 %v1153
        %v1405 = vunpack.c.l.b16 %v1154
        %v1406 = vunpack.c.h.b16 %v1154
        %v1407 = vunpack.c.l.b16 %v1155
        %v1408 = vunpack.c.h.b16 %v1155
        %v1409 = vunpack.c.l.b16 %v1156
        %v1410 = vunpack.c.h.b16 %v1156
        %v1411 = vunpack.c.l.b16 %v1157
        %v1412 = vunpack.c.h.b16 %v1157
        %v1413 = vunpack.c.l.b16 %v1158
        %v1414 = vunpack.c.h.b16 %v1158
        %v1415 = vunpack.c.l.b16 %v1159
        %v1416 = vunpack.c.h.b16 %v1159
        %v1417 = vunpack.c.l.b16 %v1160
        %v1418 = vunpack.c.h.b16 %v1160
        %v1419 = vunpack.c.l.b16 %v1161
        %v1420 = vunpack.c.h.b16 %v1161
        %v1421 = vunpack.c.l.b16 %v1162
        %v1422 = vunpack.c.h.b16 %v1162
        %v1423 = vunpack.c.l.b16 %v1163
        %v1424 = vunpack.c.h.b16 %v1163
        %v1425 = vunpack.c.l.b16 %v1164
        %v1426 = vunpack.c.h.b16 %v1164
        %v1427 = vunpack.c.l.b16 %v1165
        %v1428 = vunpack.c.h.b16 %v1165
        %v1429 = vunpack.c.l.b16 %v1166
        %v1430 = vunpack.c.h.b16 %v1166
        %v1431 = vunpack.c.l.b16 %v1167
        %v1432 = vunpack.c.h.b16 %v1167
        %v1433 = vunpack.c.l.b16 %v1168
        %v1434 = vunpack.c.h.b16 %v1168
        %v1435 = vunpack.c.l.b16 %v1169
        %v1436 = vunpack.c.h.b16 %v1169
        %v1437 = vunpack.c.l.b16 %v1170
        %v1438 = vunpack.c.h.b16 %v1170
        %v1439 = vunpack.c.l.b16 %v1171
        %v1440 = vunpack.c.h.b16 %v1171
        %v1441 = vunpack.c.l.b16 %v1172
        %v1442 = vunpack.c.h.b16 %v1172
        %v1443 = vunpack.c.l.b16 %v1173
        %v1444 = vunpack.c.h.b16 %v1173
        %v1445 = vunpack.c.l.b16 %v1174
        %v1446 = vunpack.c.h.b16 %v1174
        %v1447 = vunpack.c.l.b16 %v1175
        %v1448 = vunpack.c.h.b16 %v1175
        %v1449 = vunpack.c.l.b16 %v1176
        %v1450 = vunpack.c.h.b16 %v1176
        %v1451 = vunpack.c.l.b16 %v1177
        %v1452 = vunpack.c.h.b16 %v1177
        %v1453 = vunpack.c.l.b16 %v1178
        %v1454 = vunpack.c.h.b16 %v1178
        %v1455 = vunpack.c.l.b16 %v1179
        %v1456 = vunpack.c.h.b16 %v1179
        %v1457 = vunpack.c.l.b16 %v1180
        %v1458 = vunpack.c.h.b16 %v1180
        %v1459 = vunpack.c.l.b16 %v1181
        %v1460 = vunpack.c.h.b16 %v1181
        %v1461 = vunpack.c.l.b16 %v1182
        %v1462 = vunpack.c.h.b16 %v1182
        %v1463 = vunpack.c.l.b16 %v1183
        %v1464 = vunpack.c.h.b16 %v1183
        %v1465 = vunpack.c.l.b16 %v1184
        %v1466 = vunpack.c.h.b16 %v1184
        %v1467 = vunpack.c.l.b16 %v1185
        %v1468 = vunpack.c.h.b16 %v1185
        %v1469 = vunpack.c.l.b16 %v1186
        %v1470 = vunpack.c.h.b16 %v1186
        %v1471 = vunpack.c.l.b16 %v1187
        %v1472 = vunpack.c.h.b16 %v1187
        %v1473 = vunpack.c.l.b16 %v1188
        %v1474 = vunpack.c.h.b16 %v1188
        %v1475 = vunpack.c.l.b16 %v1189
        %v1476 = vunpack.c.h.b16 %v1189
        %v1477 = vunpack.c.l.b16 %v1190
        %v1478 = vunpack.c.h.b16 %v1190
        %v1479 = vunpack.c.l.b16 %v1191
        %v1480 = vunpack.c.h.b16 %v1191
        %v1481 = vunpack.c.l.b16 %v1192
        %v1482 = vunpack.c.h.b16 %v1192
        %v1483 = vunpack.c.l.b16 %v1193
        %v1484 = vunpack.c.h.b16 %v1193
        %v1485 = vunpack.c.l.b16 %v1194
        %v1486 = vunpack.c.h.b16 %v1194
        %v1487 = vpack.c.b16 %v1301, %v1295
        %v1488 = vpack.c.b16 %v1302, %v1296
        %v1489 = vpack.c.b16 %v1303, %v1297
        %v1490 = vpack.c.b16 %v1304, %v1298
        %v1491 = vpack.c.b16 %v1305, %v1299
        %v1492 = vpack.c.b16 %v1306, %v1300
        %v1493 = vpack.c.b16 %v1313, %v1307
        %v1494 = vpack.c.b16 %v1314, %v1308
        %v1495 = vpack.c.b16 %v1315, %v1309
        %v1496 = vpack.c.b16 %v1316, %v1310
        %v1497 = vpack.c.b16 %v1317, %v1311
        %v1498 = vpack.c.b16 %v1318, %v1312
        %v1499 = vpack.c.b16 %v1325, %v1319
        %v1500 = vpack.c.b16 %v1326, %v1320
        %v1501 = vpack.c.b16 %v1327, %v1321
        %v1502 = vpack.c.b16 %v1328, %v1322
        %v1503 = vpack.c.b16 %v1329, %v1323
        %v1504 = vpack.c.b16 %v1330, %v1324
        %v1505 = vpack.c.b16 %v1337, %v1331
        %v1506 = vpack.c.b16 %v1338, %v1332
        %v1507 = vpack.c.b16 %v1339, %v1333
        %v1508 = vpack.c.b16 %v1340, %v1334
        %v1509 = vpack.c.b16 %v1341, %v1335
        %v1510 = vpack.c.b16 %v1342, %v1336
        %v1511 = vpack.c.b16 %v1349, %v1343
        %v1512 = vpack.c.b16 %v1350, %v1344
        %v1513 = vpack.c.b16 %v1351, %v1345
        %v1514 = vpack.c.b16 %v1352, %v1346
        %v1515 = vpack.c.b16 %v1353, %v1347
        %v1516 = vpack.c.b16 %v1354, %v1348
        %v1517 = vpack.c.b16 %v1361, %v1355
        %v1518 = vpack.c.b16 %v1362, %v1356
        %v1519 = vpack.c.b16 %v1363, %v1357
        %v1520 = vpack.c.b16 %v1364, %v1358
        %v1521 = vpack.c.b16 %v1365, %v1359
        %v1522 = vpack.c.b16 %v1366, %v1360
        %v1523 = vpack.c.b16 %v1373, %v1367
        %v1524 = vpack.c.b16 %v1374, %v1368
        %v1525 = vpack.c.b16 %v1375, %v1369
        %v1526 = vpack.c.b16 %v1376, %v1370
        %v1527 = vpack.c.b16 %v1377, %v1371
        %v1528 = vpack.c.b16 %v1378, %v1372
        %v1529 = vpack.c.b16 %v1385, %v1379
        %v1530 = vpack.c.b16 %v1386, %v1380
        %v1531 = vpack.c.b16 %v1387, %v1381
        %v1532 = vpack.c.b16 %v1388, %v1382
        %v1533 = vpack.c.b16 %v1389, %v1383
        %v1534 = vpack.c.b16 %v1390, %v1384
        %v1535 = vpack.c.b16 %v1397, %v1391
        %v1536 = vpack.c.b16 %v1398, %v1392
        %v1537 = vpack.c.b16 %v1399, %v1393
        %v1538 = vpack.c.b16 %v1400, %v1394
        %v1539 = vpack.c.b16 %v1401, %v1395
        %v1540 = vpack.c.b16 %v1402, %v1396
        %v1541 = vpack.c.b16 %v1409, %v1403
        %v1542 = vpack.c.b16 %v1410, %v1404
        %v1543 = vpack.c.b16 %v1411, %v1405
        %v1544 = vpack.c.b16 %v1412, %v1406
        %v1545 = vpack.c.b16 %v1413, %v1407
        %v1546 = vpack.c.b16 %v1414, %v1408
        %v1547 = vpack.c.b16 %v1421, %v1415
        %v1548 = vpack.c.b16 %v1422, %v1416
        %v1549 = vpack.c.b16 %v1423, %v1417
        %v1550 = vpack.c.b16 %v1424, %v1418
        %v1551 = vpack.c.b16 %v1425, %v1419
        %v1552 = vpack.c.b16 %v1426, %v1420
        %v1553 = vpack.c.b16 %v1433, %v1427
        %v1554 = vpack.c.b16 %v1434, %v1428
        %v1555 = vpack.c.b16 %v1435, %v1429
        %v1556 = vpack.c.b16 %v1436, %v1430
        %v1557 = vpack.c.b16 %v1437, %v1431
        %v1558 = vpack.c.b16 %v1438, %v1432
        %v1559 = vpack.c.b16 %v1445, %v1439
        %v1560 = vpack.c.b16 %v1446, %v1440
        %v1561 = vpack.c.b16 %v1447, %v1441
        %v1562 = vpack.c.b16 %v1448, %v1442
        %v1563 = vpack.c.b16 %v1449, %v1443
        %v1564 = vpack.c.b16 %v1450, %v1444
        %v1565 = vpack.c.b16 %v1457, %v1451
        %v1566 = vpack.c.b16 %v1458, %v1452
        %v1567 = vpack.c.b16 %v1459, %v1453
        %v1568 = vpack.c.b16 %v1460, %v1454
        %v1569 = vpack.c.b16 %v1461, %v1455
        %v1570 = vpack.c.b16 %v1462, %v1456
        %v1571 = vpack.c.b16 %v1469, %v1463
        %v1572 = vpack.c.b16 %v1470, %v1464
        %v1573 = vpack.c.b16 %v1471, %v1465
        %v1574 = vpack.c.b16 %v1472, %v1466
        %v1575 = vpack.c.b16 %v1473, %v1467
        %v1576 = vpack.c.b16 %v1474, %v1468
        %v1577 = vpack.c.b16 %v1481, %v1475
        %v1578 = vpack.c.b16 %v1482, %v1476
        %v1579 = vpack.c.b16 %v1483, %v1477
        %v1580 = vpack.c.b16 %v1484, %v1478
        %v1581 = vpack.c.b16 %v1485, %v1479
        %v1582 = vpack.c.b16 %v1486, %v1480
        %1679 = vmatprep.subr.bf16.mxu0 %v1488
        %1680 = vmatpush1.bf16.msra.mxu0 %v1487
        %1681 = vmatprep.subr.bf16.mxu0 %v1494
        %1682 = vmatpush1.bf16.msra.mxu0 %v1493
        %1683 = vmatprep.subr.bf16.mxu0 %v1500
        %1684 = vmatpush1.bf16.msra.mxu0 %v1499
        %1685 = vmatprep.subr.bf16.mxu0 %v1506
        %1686 = vmatpush1.bf16.msra.mxu0 %v1505
        %1687 = vmatprep.subr.bf16.mxu0 %v1512
        %1688 = vmatpush1.bf16.msra.mxu0 %v1511
        %1689 = vmatprep.subr.bf16.mxu0 %v1518
        %1690 = vmatpush1.bf16.msra.mxu0 %v1517
        %1691 = vmatprep.subr.bf16.mxu0 %v1524
        %1692 = vmatpush1.bf16.msra.mxu0 %v1523
        %1693 = vmatprep.subr.bf16.mxu0 %v1530
        %1694 = vmatpush1.bf16.msra.mxu0 %v1529
        %1695 = vmatprep.subr.bf16.mxu0 %v1536
        %1696 = vmatpush1.bf16.msra.mxu0 %v1535
        %1697 = vmatprep.subr.bf16.mxu0 %v1542
        %1698 = vmatpush1.bf16.msra.mxu0 %v1541
        %1699 = vmatprep.subr.bf16.mxu0 %v1548
        %1700 = vmatpush1.bf16.msra.mxu0 %v1547
        %1701 = vmatprep.subr.bf16.mxu0 %v1554
        %1702 = vmatpush1.bf16.msra.mxu0 %v1553
        %1703 = vmatprep.subr.bf16.mxu0 %v1560
        %1704 = vmatpush1.bf16.msra.mxu0 %v1559
        %1705 = vmatprep.subr.bf16.mxu0 %v1566
        %1706 = vmatpush1.bf16.msra.mxu0 %v1565
        %1707 = vmatprep.subr.bf16.mxu0 %v1572
        %1708 = vmatpush1.bf16.msra.mxu0 %v1571
        %1709 = vmatprep.subr.bf16.mxu0 %v1578
        %1710 = vmatpush1.bf16.msra.mxu0 %v1577
        %1711 = vmatprep.mubr.bf16.mxu0 %v1198
        %1712 = vmatmul.mubr.bf16.gmra.mrb[0].mxu0 %v1197
        %v1713 = vpop.f32.mrb[0].mxu0
        %v1714 = vadd.f32 0.0, %v1713
        %v1715 = vpop.f32.mrb[0].mxu0
        %v1716 = vadd.f32 0.0, %v1715
        %v1717 = vpop.f32.mrb[0].mxu0
        %v1718 = vpop.f32.mrb[0].mxu0
        %1719 = vdwg.mxu0
        %1720 = vmatprep.subr.bf16.mxu0 %v1490
        %1721 = vmatpush1.bf16.msra.mxu0 %v1489
        %1722 = vmatprep.subr.bf16.mxu0 %v1496
        %1723 = vmatpush1.bf16.msra.mxu0 %v1495
        %1724 = vmatprep.subr.bf16.mxu0 %v1502
        %1725 = vmatpush1.bf16.msra.mxu0 %v1501
        %1726 = vmatprep.subr.bf16.mxu0 %v1508
        %1727 = vmatpush1.bf16.msra.mxu0 %v1507
        %1728 = vmatprep.subr.bf16.mxu0 %v1514
        %1729 = vmatpush1.bf16.msra.mxu0 %v1513
        %1730 = vmatprep.subr.bf16.mxu0 %v1520
        %1731 = vmatpush1.bf16.msra.mxu0 %v1519
        %1732 = vmatprep.subr.bf16.mxu0 %v1526
        %1733 = vmatpush1.bf16.msra.mxu0 %v1525
        %1734 = vmatprep.subr.bf16.mxu0 %v1532
        %1735 = vmatpush1.bf16.msra.mxu0 %v1531
        %1736 = vmatprep.subr.bf16.mxu0 %v1538
        %1737 = vmatpush1.bf16.msra.mxu0 %v1537
        %1738 = vmatprep.subr.bf16.mxu0 %v1544
        %1739 = vmatpush1.bf16.msra.mxu0 %v1543
        %1740 = vmatprep.subr.bf16.mxu0 %v1550
        %1741 = vmatpush1.bf16.msra.mxu0 %v1549
        %1742 = vmatprep.subr.bf16.mxu0 %v1556
        %1743 = vmatpush1.bf16.msra.mxu0 %v1555
        %1744 = vmatprep.subr.bf16.mxu0 %v1562
        %1745 = vmatpush1.bf16.msra.mxu0 %v1561
        %1746 = vmatprep.subr.bf16.mxu0 %v1568
        %1747 = vmatpush1.bf16.msra.mxu0 %v1567
        %1748 = vmatprep.subr.bf16.mxu0 %v1574
        %1749 = vmatpush1.bf16.msra.mxu0 %v1573
        %1750 = vmatprep.subr.bf16.mxu0 %v1580
        %1751 = vmatpush1.bf16.msra.mxu0 %v1579
        %1752 = vmatprep.mubr.bf16.mxu0 %v1198
        %1753 = vmatmul.mubr.bf16.gmra.mrb[0].mxu0 %v1197
        %v1754 = vpop.f32.mrb[0].mxu0
        %v1755 = vadd.f32 0.0, %v1754
        %v1756 = vpop.f32.mrb[0].mxu0
        %v1757 = vadd.f32 0.0, %v1756
        %v1758 = vpop.f32.mrb[0].mxu0
        %v1759 = vpop.f32.mrb[0].mxu0
        %1760 = vdwg.mxu0
        %1761 = vmatprep.subr.bf16.mxu0 %v1492
        %1762 = vmatpush1.bf16.msra.mxu0 %v1491
        %1763 = vmatprep.subr.bf16.mxu0 %v1498
        %1764 = vmatpush1.bf16.msra.mxu0 %v1497
        %1765 = vmatprep.subr.bf16.mxu0 %v1504
        %1766 = vmatpush1.bf16.msra.mxu0 %v1503
        %1767 = vmatprep.subr.bf16.mxu0 %v1510
        %1768 = vmatpush1.bf16.msra.mxu0 %v1509
        %1769 = vmatprep.subr.bf16.mxu0 %v1516
        %1770 = vmatpush1.bf16.msra.mxu0 %v1515
        %1771 = vmatprep.subr.bf16.mxu0 %v1522
        %1772 = vmatpush1.bf16.msra.mxu0 %v1521
        %1773 = vmatprep.subr.bf16.mxu0 %v1528
        %1774 = vmatpush1.bf16.msra.mxu0 %v1527
        %1775 = vmatprep.subr.bf16.mxu0 %v1534
        %1776 = vmatpush1.bf16.msra.mxu0 %v1533
        %1777 = vmatprep.subr.bf16.mxu0 %v1540
        %1778 = vmatpush1.bf16.msra.mxu0 %v1539
        %1779 = vmatprep.subr.bf16.mxu0 %v1546
        %1780 = vmatpush1.bf16.msra.mxu0 %v1545
        %1781 = vmatprep.subr.bf16.mxu0 %v1552
        %1782 = vmatpush1.bf16.msra.mxu0 %v1551
        %1783 = vmatprep.subr.bf16.mxu0 %v1558
        %1784 = vmatpush1.bf16.msra.mxu0 %v1557
        %1785 = vmatprep.subr.bf16.mxu0 %v1564
        %1786 = vmatpush1.bf16.msra.mxu0 %v1563
        %1787 = vmatprep.subr.bf16.mxu0 %v1570
        %1788 = vmatpush1.bf16.msra.mxu0 %v1569
        %1789 = vmatprep.subr.bf16.mxu0 %v1576
        %1790 = vmatpush1.bf16.msra.mxu0 %v1575
        %1791 = vmatprep.subr.bf16.mxu0 %v1582
        %1792 = vmatpush1.bf16.msra.mxu0 %v1581
        %1793 = vmatprep.mubr.bf16.mxu0 %v1198
        %1794 = vmatmul.mubr.bf16.gmra.mrb[0].mxu0 %v1197
        %v1795 = vpop.f32.mrb[0].mxu0
        %v1796 = vadd.f32 0.0, %v1795
        %v1797 = vpop.f32.mrb[0].mxu0
        %v1798 = vadd.f32 0.0, %v1797
        %v1799 = vpop.f32.mrb[0].mxu0
        %v1800 = vpop.f32.mrb[0].mxu0
        %1801 = vdwg.mxu0
        %s1802 = smul.u32 0, 6
        %s1803 = smul.addr %s1802, 8
        %s1804 = scalar_lea.vmem [#allocation2], %s1803
        %v1805 = vld [vmem:[%s1804] sm:$0xff]
        %v1806 = vld [vmem:[%s1804 + $0x8] sm:$0xff]
        %v1807 = vld [vmem:[%s1804 + $0x10] sm:$0xff]
        %v1808 = vld [vmem:[%s1804 + $0x18] sm:$0xff]
        %v1809 = vld [vmem:[%s1804 + $0x20] sm:$0xff]
        %v1810 = vld [vmem:[%s1804 + $0x28] sm:$0xff]
        %v1811 = vadd.f32 %v1805, %v1714
        %v1812 = vadd.f32 %v1806, %v1716
        %v1813 = vadd.f32 %v1807, %v1755
        %v1814 = vadd.f32 %v1808, %v1757
        %v1815 = vxor.u32 %v1811, 2147483648
        %v1816 = vxor.u32 %v1812, 2147483648
        %v1817 = vxor.u32 %v1813, 2147483648
        %v1818 = vxor.u32 %v1814, 2147483648
        %v1819 = vmul.f32 %v1815, 1.442695
        %v1820 = vpow.pop %v1819
        %v1821 = vmul.f32 %v1816, 1.442695
        %v1822 = vpow.pop %v1821
        %v1823 = vmul.f32 %v1817, 1.442695
        %v1824 = vpow.pop %v1823
        %v1825 = vmul.f32 %v1818, 1.442695
        %v1826 = vpow.pop %v1825
        %v1827 = vadd.f32 %v1820, 1.0
        %v1828 = vadd.f32 %v1822, 1.0
        %v1829 = vadd.f32 %v1824, 1.0
        %v1830 = vadd.f32 %v1826, 1.0
        %v1831 = vrcp.pop %v1827
        %v1832 = vmul.f32 1.0, %v1831
        %v1833 = vrcp.pop %v1828
        %v1834 = vmul.f32 1.0, %v1833
        %v1835 = vrcp.pop %v1829
        %v1836 = vmul.f32 1.0, %v1835
        %v1837 = vrcp.pop %v1830
        %v1838 = vmul.f32 1.0, %v1837
        %v1839 = vadd.f32 %v1796, %v1092
        %v1840 = vadd.f32 %v1798, %v1096
        %v1841 = vmul.f32 %v1832, %v1839
        %v1842 = vmul.f32 %v1834, %v1840
        %v1843 = vadd.f32 %v1809, %v1841
        %v1844 = vadd.f32 %v1810, %v1842
        %v1845 = vtanh.pop %v1843
        %v1846 = vtanh.pop %v1844
        %v1847 = vsub.f32 %v1195, %v1845
        %v1848 = vsub.f32 %v1196, %v1846
        %v1849 = vmul.f32 %v1836, %v1847
        %v1850 = vmul.f32 %v1838, %v1848
        %v1851 = vadd.f32 %v1845, %v1849
        %v1852 = vadd.f32 %v1846, %v1850
        %s1853 = smul.u32 %s21, 16
        %p1854 = scmp.lt.s32.totalorder %s1853, 20
        %s1855 = scalar_select %p1854, 1, 0
        %v1856 = vstv %s1855
        %vm1857 = vcmp.eq.s32.totalorder %v1856, 1
        %v1858 = vsel %vm1857, %v1851, %v1195
        %v1859 = vsel %vm1857, %v1852, %v1196
        %v1860 = vpack.c.bf16 %v1858, %v1858
        %v1861 = vpack.c.bf16 %v1859, %v1859
        %1862 = vmatprep.subr.bf16.mxu0 %v1488
        %1863 = vmatpush1.bf16.msra.mxu0 %v1487
        %1864 = vmatprep.subr.bf16.mxu0 %v1494
        %1865 = vmatpush1.bf16.msra.mxu0 %v1493
        %1866 = vmatprep.subr.bf16.mxu0 %v1500
        %1867 = vmatpush1.bf16.msra.mxu0 %v1499
        %1868 = vmatprep.subr.bf16.mxu0 %v1506
        %1869 = vmatpush1.bf16.msra.mxu0 %v1505
        %1870 = vmatprep.subr.bf16.mxu0 %v1512
        %1871 = vmatpush1.bf16.msra.mxu0 %v1511
        %1872 = vmatprep.subr.bf16.mxu0 %v1518
        %1873 = vmatpush1.bf16.msra.mxu0 %v1517
        %1874 = vmatprep.subr.bf16.mxu0 %v1524
        %1875 = vmatpush1.bf16.msra.mxu0 %v1523
        %1876 = vmatprep.subr.bf16.mxu0 %v1530
        %1877 = vmatpush1.bf16.msra.mxu0 %v1529
        %1878 = vmatprep.subr.bf16.mxu0 %v1536
        %1879 = vmatpush1.bf16.msra.mxu0 %v1535
        %1880 = vmatprep.subr.bf16.mxu0 %v1542
        %1881 = vmatpush1.bf16.msra.mxu0 %v1541
        %1882 = vmatprep.subr.bf16.mxu0 %v1548
        %1883 = vmatpush1.bf16.msra.mxu0 %v1547
        %1884 = vmatprep.subr.bf16.mxu0 %v1554
        %1885 = vmatpush1.bf16.msra.mxu0 %v1553
        %1886 = vmatprep.subr.bf16.mxu0 %v1560
        %1887 = vmatpush1.bf16.msra.mxu0 %v1559
        %1888 = vmatprep.subr.bf16.mxu0 %v1566
        %1889 = vmatpush1.bf16.msra.mxu0 %v1565
        %1890 = vmatprep.subr.bf16.mxu0 %v1572
        %1891 = vmatpush1.bf16.msra.mxu0 %v1571
        %1892 = vmatprep.subr.bf16.mxu0 %v1578
        %1893 = vmatpush1.bf16.msra.mxu0 %v1577
        %1894 = vmatprep.mubr.bf16.mxu0 %v1861
        %1895 = vmatmul.mubr.bf16.gmra.mrb[0].mxu0 %v1860
        %v1896 = vpop.f32.mrb[0].mxu0
        %v1897 = vadd.f32 0.0, %v1896
        %v1898 = vpop.f32.mrb[0].mxu0
        %v1899 = vadd.f32 0.0, %v1898
        %v1900 = vpop.f32.mrb[0].mxu0
        %v1901 = vpop.f32.mrb[0].mxu0
        %1902 = vdwg.mxu0
        %1903 = vmatprep.subr.bf16.mxu0 %v1490
        %1904 = vmatpush1.bf16.msra.mxu0 %v1489
        %1905 = vmatprep.subr.bf16.mxu0 %v1496
        %1906 = vmatpush1.bf16.msra.mxu0 %v1495
        %1907 = vmatprep.subr.bf16.mxu0 %v1502
        %1908 = vmatpush1.bf16.msra.mxu0 %v1501
        %1909 = vmatprep.subr.bf16.mxu0 %v1508
        %1910 = vmatpush1.bf16.msra.mxu0 %v1507
        %1911 = vmatprep.subr.bf16.mxu0 %v1514
        %1912 = vmatpush1.bf16.msra.mxu0 %v1513
        %1913 = vmatprep.subr.bf16.mxu0 %v1520
        %1914 = vmatpush1.bf16.msra.mxu0 %v1519
        %1915 = vmatprep.subr.bf16.mxu0 %v1526
        %1916 = vmatpush1.bf16.msra.mxu0 %v1525
        %1917 = vmatprep.subr.bf16.mxu0 %v1532
        %1918 = vmatpush1.bf16.msra.mxu0 %v1531
        %1919 = vmatprep.subr.bf16.mxu0 %v1538
        %1920 = vmatpush1.bf16.msra.mxu0 %v1537
        %1921 = vmatprep.subr.bf16.mxu0 %v1544
        %1922 = vmatpush1.bf16.msra.mxu0 %v1543
        %1923 = vmatprep.subr.bf16.mxu0 %v1550
        %1924 = vmatpush1.bf16.msra.mxu0 %v1549
        %1925 = vmatprep.subr.bf16.mxu0 %v1556
        %1926 = vmatpush1.bf16.msra.mxu0 %v1555
        %1927 = vmatprep.subr.bf16.mxu0 %v1562
        %1928 = vmatpush1.bf16.msra.mxu0 %v1561
        %1929 = vmatprep.subr.bf16.mxu0 %v1568
        %1930 = vmatpush1.bf16.msra.mxu0 %v1567
        %1931 = vmatprep.subr.bf16.mxu0 %v1574
        %1932 = vmatpush1.bf16.msra.mxu0 %v1573
        %1933 = vmatprep.subr.bf16.mxu0 %v1580
        %1934 = vmatpush1.bf16.msra.mxu0 %v1579
        %1935 = vmatprep.mubr.bf16.mxu0 %v1861
        %1936 = vmatmul.mubr.bf16.gmra.mrb[0].mxu0 %v1860
        %v1937 = vpop.f32.mrb[0].mxu0
        %v1938 = vadd.f32 0.0, %v1937
        %v1939 = vpop.f32.mrb[0].mxu0
        %v1940 = vadd.f32 0.0, %v1939
        %v1941 = vpop.f32.mrb[0].mxu0
        %v1942 = vpop.f32.mrb[0].mxu0
        %1943 = vdwg.mxu0
        %1944 = vmatprep.subr.bf16.mxu0 %v1492
        %1945 = vmatpush1.bf16.msra.mxu0 %v1491
        %1946 = vmatprep.subr.bf16.mxu0 %v1498
        %1947 = vmatpush1.bf16.msra.mxu0 %v1497
        %1948 = vmatprep.subr.bf16.mxu0 %v1504
        %1949 = vmatpush1.bf16.msra.mxu0 %v1503
        %1950 = vmatprep.subr.bf16.mxu0 %v1510
        %1951 = vmatpush1.bf16.msra.mxu0 %v1509
        %1952 = vmatprep.subr.bf16.mxu0 %v1516
        %1953 = vmatpush1.bf16.msra.mxu0 %v1515
        %1954 = vmatprep.subr.bf16.mxu0 %v1522
        %1955 = vmatpush1.bf16.msra.mxu0 %v1521
        %1956 = vmatprep.subr.bf16.mxu0 %v1528
        %1957 = vmatpush1.bf16.msra.mxu0 %v1527
        %1958 = vmatprep.subr.bf16.mxu0 %v1534
        %1959 = vmatpush1.bf16.msra.mxu0 %v1533
        %1960 = vmatprep.subr.bf16.mxu0 %v1540
        %1961 = vmatpush1.bf16.msra.mxu0 %v1539
        %1962 = vmatprep.subr.bf16.mxu0 %v1546
        %1963 = vmatpush1.bf16.msra.mxu0 %v1545
        %1964 = vmatprep.subr.bf16.mxu0 %v1552
        %1965 = vmatpush1.bf16.msra.mxu0 %v1551
        %1966 = vmatprep.subr.bf16.mxu0 %v1558
        %1967 = vmatpush1.bf16.msra.mxu0 %v1557
        %1968 = vmatprep.subr.bf16.mxu0 %v1564
        %1969 = vmatpush1.bf16.msra.mxu0 %v1563
        %1970 = vmatprep.subr.bf16.mxu0 %v1570
        %1971 = vmatpush1.bf16.msra.mxu0 %v1569
        %1972 = vmatprep.subr.bf16.mxu0 %v1576
        %1973 = vmatpush1.bf16.msra.mxu0 %v1575
        %1974 = vmatprep.subr.bf16.mxu0 %v1582
        %1975 = vmatpush1.bf16.msra.mxu0 %v1581
        %1976 = vmatprep.mubr.bf16.mxu0 %v1861
        %1977 = vmatmul.mubr.bf16.gmra.mrb[0].mxu0 %v1860
        %v1978 = vpop.f32.mrb[0].mxu0
        %v1979 = vadd.f32 0.0, %v1978
        %v1980 = vpop.f32.mrb[0].mxu0
        %v1981 = vadd.f32 0.0, %v1980
        %v1982 = vpop.f32.mrb[0].mxu0
        %v1983 = vpop.f32.mrb[0].mxu0
        %1984 = vdwg.mxu0
        %s1985 = smul.u32 1, 6
        %s1986 = smul.addr %s1985, 8
        %s1987 = scalar_lea.vmem [#allocation2], %s1986
        %v1988 = vld [vmem:[%s1987] sm:$0xff]
        %v1989 = vld [vmem:[%s1987 + $0x8] sm:$0xff]
        %v1990 = vld [vmem:[%s1987 + $0x10] sm:$0xff]
        %v1991 = vld [vmem:[%s1987 + $0x18] sm:$0xff]
        %v1992 = vld [vmem:[%s1987 + $0x20] sm:$0xff]
        %v1993 = vld [vmem:[%s1987 + $0x28] sm:$0xff]
        %v1994 = vadd.f32 %v1988, %v1897
        %v1995 = vadd.f32 %v1989, %v1899
        %v1996 = vadd.f32 %v1990, %v1938
        %v1997 = vadd.f32 %v1991, %v1940
        %v1998 = vxor.u32 %v1994, 2147483648
        %v1999 = vxor.u32 %v1995, 2147483648
        %v2000 = vxor.u32 %v1996, 2147483648
        %v2001 = vxor.u32 %v1997, 2147483648
        %v2002 = vmul.f32 %v1998, 1.442695
        %v2003 = vpow.pop %v2002
        %v2004 = vmul.f32 %v1999, 1.442695
        %v2005 = vpow.pop %v2004
        %v2006 = vmul.f32 %v2000, 1.442695
        %v2007 = vpow.pop %v2006
        %v2008 = vmul.f32 %v2001, 1.442695
        %v2009 = vpow.pop %v2008
        %v2010 = vadd.f32 %v2003, 1.0
        %v2011 = vadd.f32 %v2005, 1.0
        %v2012 = vadd.f32 %v2007, 1.0
        %v2013 = vadd.f32 %v2009, 1.0
        %v2014 = vrcp.pop %v2010
        %v2015 = vmul.f32 1.0, %v2014
        %v2016 = vrcp.pop %v2011
        %v2017 = vmul.f32 1.0, %v2016
        %v2018 = vrcp.pop %v2012
        %v2019 = vmul.f32 1.0, %v2018
        %v2020 = vrcp.pop %v2013
        %v2021 = vmul.f32 1.0, %v2020
        %v2022 = vadd.f32 %v1979, %v1092
        %v2023 = vadd.f32 %v1981, %v1096
        %v2024 = vmul.f32 %v2015, %v2022
        %v2025 = vmul.f32 %v2017, %v2023
        %v2026 = vadd.f32 %v1992, %v2024
        %v2027 = vadd.f32 %v1993, %v2025
        %v2028 = vtanh.pop %v2026
        %v2029 = vtanh.pop %v2027
        %v2030 = vsub.f32 %v1858, %v2028
        %v2031 = vsub.f32 %v1859, %v2029
        %v2032 = vmul.f32 %v2019, %v2030
        %v2033 = vmul.f32 %v2021, %v2031
        %v2034 = vadd.f32 %v2028, %v2032
        %v2035 = vadd.f32 %v2029, %v2033
        %s2036 = sadd.s32 %s1853, 1
        %p2037 = scmp.lt.s32.totalorder %s2036, 20
        %s2038 = scalar_select %p2037, 1, 0
        %v2039 = vstv %s2038
        %vm2040 = vcmp.eq.s32.totalorder %v2039, 1
        %v2041 = vsel %vm2040, %v2034, %v1858
        %v2042 = vsel %vm2040, %v2035, %v1859
        %v2043 = vpack.c.bf16 %v2041, %v2041
        %v2044 = vpack.c.bf16 %v2042, %v2042
        %2045 = vmatprep.subr.bf16.mxu0 %v1488
        %2046 = vmatpush1.bf16.msra.mxu0 %v1487
        %2047 = vmatprep.subr.bf16.mxu0 %v1494
        %2048 = vmatpush1.bf16.msra.mxu0 %v1493
        %2049 = vmatprep.subr.bf16.mxu0 %v1500
        %2050 = vmatpush1.bf16.msra.mxu0 %v1499
        %2051 = vmatprep.subr.bf16.mxu0 %v1506
        %2052 = vmatpush1.bf16.msra.mxu0 %v1505
        %2053 = vmatprep.subr.bf16.mxu0 %v1512
        %2054 = vmatpush1.bf16.msra.mxu0 %v1511
        %2055 = vmatprep.subr.bf16.mxu0 %v1518
        %2056 = vmatpush1.bf16.msra.mxu0 %v1517
        %2057 = vmatprep.subr.bf16.mxu0 %v1524
        %2058 = vmatpush1.bf16.msra.mxu0 %v1523
        %2059 = vmatprep.subr.bf16.mxu0 %v1530
        %2060 = vmatpush1.bf16.msra.mxu0 %v1529
        %2061 = vmatprep.subr.bf16.mxu0 %v1536
        %2062 = vmatpush1.bf16.msra.mxu0 %v1535
        %2063 = vmatprep.subr.bf16.mxu0 %v1542
        %2064 = vmatpush1.bf16.msra.mxu0 %v1541
        %2065 = vmatprep.subr.bf16.mxu0 %v1548
        %2066 = vmatpush1.bf16.msra.mxu0 %v1547
        %2067 = vmatprep.subr.bf16.mxu0 %v1554
        %2068 = vmatpush1.bf16.msra.mxu0 %v1553
        %2069 = vmatprep.subr.bf16.mxu0 %v1560
        %2070 = vmatpush1.bf16.msra.mxu0 %v1559
        %2071 = vmatprep.subr.bf16.mxu0 %v1566
        %2072 = vmatpush1.bf16.msra.mxu0 %v1565
        %2073 = vmatprep.subr.bf16.mxu0 %v1572
        %2074 = vmatpush1.bf16.msra.mxu0 %v1571
        %2075 = vmatprep.subr.bf16.mxu0 %v1578
        %2076 = vmatpush1.bf16.msra.mxu0 %v1577
        %2077 = vmatprep.mubr.bf16.mxu0 %v2044
        %2078 = vmatmul.mubr.bf16.gmra.mrb[0].mxu0 %v2043
        %v2079 = vpop.f32.mrb[0].mxu0
        %v2080 = vadd.f32 0.0, %v2079
        %v2081 = vpop.f32.mrb[0].mxu0
        %v2082 = vadd.f32 0.0, %v2081
        %v2083 = vpop.f32.mrb[0].mxu0
        %v2084 = vpop.f32.mrb[0].mxu0
        %2085 = vdwg.mxu0
        %2086 = vmatprep.subr.bf16.mxu0 %v1490
        %2087 = vmatpush1.bf16.msra.mxu0 %v1489
        %2088 = vmatprep.subr.bf16.mxu0 %v1496
        %2089 = vmatpush1.bf16.msra.mxu0 %v1495
        %2090 = vmatprep.subr.bf16.mxu0 %v1502
        %2091 = vmatpush1.bf16.msra.mxu0 %v1501
        %2092 = vmatprep.subr.bf16.mxu0 %v1508
        %2093 = vmatpush1.bf16.msra.mxu0 %v1507
        %2094 = vmatprep.subr.bf16.mxu0 %v1514
        %2095 = vmatpush1.bf16.msra.mxu0 %v1513
        %2096 = vmatprep.subr.bf16.mxu0 %v1520
        %2097 = vmatpush1.bf16.msra.mxu0 %v1519
        %2098 = vmatprep.subr.bf16.mxu0 %v1526
        %2099 = vmatpush1.bf16.msra.mxu0 %v1525
        %2100 = vmatprep.subr.bf16.mxu0 %v1532
        %2101 = vmatpush1.bf16.msra.mxu0 %v1531
        %2102 = vmatprep.subr.bf16.mxu0 %v1538
        %2103 = vmatpush1.bf16.msra.mxu0 %v1537
        %2104 = vmatprep.subr.bf16.mxu0 %v1544
        %2105 = vmatpush1.bf16.msra.mxu0 %v1543
        %2106 = vmatprep.subr.bf16.mxu0 %v1550
        %2107 = vmatpush1.bf16.msra.mxu0 %v1549
        %2108 = vmatprep.subr.bf16.mxu0 %v1556
        %2109 = vmatpush1.bf16.msra.mxu0 %v1555
        %2110 = vmatprep.subr.bf16.mxu0 %v1562
        %2111 = vmatpush1.bf16.msra.mxu0 %v1561
        %2112 = vmatprep.subr.bf16.mxu0 %v1568
        %2113 = vmatpush1.bf16.msra.mxu0 %v1567
        %2114 = vmatprep.subr.bf16.mxu0 %v1574
        %2115 = vmatpush1.bf16.msra.mxu0 %v1573
        %2116 = vmatprep.subr.bf16.mxu0 %v1580
        %2117 = vmatpush1.bf16.msra.mxu0 %v1579
        %2118 = vmatprep.mubr.bf16.mxu0 %v2044
        %2119 = vmatmul.mubr.bf16.gmra.mrb[0].mxu0 %v2043
        %v2120 = vpop.f32.mrb[0].mxu0
        %v2121 = vadd.f32 0.0, %v2120
        %v2122 = vpop.f32.mrb[0].mxu0
        %v2123 = vadd.f32 0.0, %v2122
        %v2124 = vpop.f32.mrb[0].mxu0
        %v2125 = vpop.f32.mrb[0].mxu0
        %2126 = vdwg.mxu0
        %2127 = vmatprep.subr.bf16.mxu0 %v1492
        %2128 = vmatpush1.bf16.msra.mxu0 %v1491
        %2129 = vmatprep.subr.bf16.mxu0 %v1498
        %2130 = vmatpush1.bf16.msra.mxu0 %v1497
        %2131 = vmatprep.subr.bf16.mxu0 %v1504
        %2132 = vmatpush1.bf16.msra.mxu0 %v1503
        %2133 = vmatprep.subr.bf16.mxu0 %v1510
        %2134 = vmatpush1.bf16.msra.mxu0 %v1509
        %2135 = vmatprep.subr.bf16.mxu0 %v1516
        %2136 = vmatpush1.bf16.msra.mxu0 %v1515
        %2137 = vmatprep.subr.bf16.mxu0 %v1522
        %2138 = vmatpush1.bf16.msra.mxu0 %v1521
        %2139 = vmatprep.subr.bf16.mxu0 %v1528
        %2140 = vmatpush1.bf16.msra.mxu0 %v1527
        %2141 = vmatprep.subr.bf16.mxu0 %v1534
        %2142 = vmatpush1.bf16.msra.mxu0 %v1533
        %2143 = vmatprep.subr.bf16.mxu0 %v1540
        %2144 = vmatpush1.bf16.msra.mxu0 %v1539
        %2145 = vmatprep.subr.bf16.mxu0 %v1546
        %2146 = vmatpush1.bf16.msra.mxu0 %v1545
        %2147 = vmatprep.subr.bf16.mxu0 %v1552
        %2148 = vmatpush1.bf16.msra.mxu0 %v1551
        %2149 = vmatprep.subr.bf16.mxu0 %v1558
        %2150 = vmatpush1.bf16.msra.mxu0 %v1557
        %2151 = vmatprep.subr.bf16.mxu0 %v1564
        %2152 = vmatpush1.bf16.msra.mxu0 %v1563
        %2153 = vmatprep.subr.bf16.mxu0 %v1570
        %2154 = vmatpush1.bf16.msra.mxu0 %v1569
        %2155 = vmatprep.subr.bf16.mxu0 %v1576
        %2156 = vmatpush1.bf16.msra.mxu0 %v1575
        %2157 = vmatprep.subr.bf16.mxu0 %v1582
        %2158 = vmatpush1.bf16.msra.mxu0 %v1581
        %2159 = vmatprep.mubr.bf16.mxu0 %v2044
        %2160 = vmatmul.mubr.bf16.gmra.mrb[0].mxu0 %v2043
        %v2161 = vpop.f32.mrb[0].mxu0
        %v2162 = vadd.f32 0.0, %v2161
        %v2163 = vpop.f32.mrb[0].mxu0
        %v2164 = vadd.f32 0.0, %v2163
        %v2165 = vpop.f32.mrb[0].mxu0
        %v2166 = vpop.f32.mrb[0].mxu0
        %2167 = vdwg.mxu0
        %s2168 = smul.u32 2, 6
        %s2169 = smul.addr %s2168, 8
        %s2170 = scalar_lea.vmem [#allocation2], %s2169
        %v2171 = vld [vmem:[%s2170] sm:$0xff]
        %v2172 = vld [vmem:[%s2170 + $0x8] sm:$0xff]
        %v2173 = vld [vmem:[%s2170 + $0x10] sm:$0xff]
        %v2174 = vld [vmem:[%s2170 + $0x18] sm:$0xff]
        %v2175 = vld [vmem:[%s2170 + $0x20] sm:$0xff]
        %v2176 = vld [vmem:[%s2170 + $0x28] sm:$0xff]
        %v2177 = vadd.f32 %v2171, %v2080
        %v2178 = vadd.f32 %v2172, %v2082
        %v2179 = vadd.f32 %v2173, %v2121
        %v2180 = vadd.f32 %v2174, %v2123
        %v2181 = vxor.u32 %v2177, 2147483648
        %v2182 = vxor.u32 %v2178, 2147483648
        %v2183 = vxor.u32 %v2179, 2147483648
        %v2184 = vxor.u32 %v2180, 2147483648
        %v2185 = vmul.f32 %v2181, 1.442695
        %v2186 = vpow.pop %v2185
        %v2187 = vmul.f32 %v2182, 1.442695
        %v2188 = vpow.pop %v2187
        %v2189 = vmul.f32 %v2183, 1.442695
        %v2190 = vpow.pop %v2189
        %v2191 = vmul.f32 %v2184, 1.442695
        %v2192 = vpow.pop %v2191
        %v2193 = vadd.f32 %v2186, 1.0
        %v2194 = vadd.f32 %v2188, 1.0
        %v2195 = vadd.f32 %v2190, 1.0
        %v2196 = vadd.f32 %v2192, 1.0
        %v2197 = vrcp.pop %v2193
        %v2198 = vmul.f32 1.0, %v2197
        %v2199 = vrcp.pop %v2194
        %v2200 = vmul.f32 1.0, %v2199
        %v2201 = vrcp.pop %v2195
        %v2202 = vmul.f32 1.0, %v2201
        %v2203 = vrcp.pop %v2196
        %v2204 = vmul.f32 1.0, %v2203
        %v2205 = vadd.f32 %v2162, %v1092
        %v2206 = vadd.f32 %v2164, %v1096
        %v2207 = vmul.f32 %v2198, %v2205
        %v2208 = vmul.f32 %v2200, %v2206
        %v2209 = vadd.f32 %v2175, %v2207
        %v2210 = vadd.f32 %v2176, %v2208
        %v2211 = vtanh.pop %v2209
        %v2212 = vtanh.pop %v2210
        %v2213 = vsub.f32 %v2041, %v2211
        %v2214 = vsub.f32 %v2042, %v2212
        %v2215 = vmul.f32 %v2202, %v2213
        %v2216 = vmul.f32 %v2204, %v2214
        %v2217 = vadd.f32 %v2211, %v2215
        %v2218 = vadd.f32 %v2212, %v2216
        %s2219 = sadd.s32 %s1853, 2
        %p2220 = scmp.lt.s32.totalorder %s2219, 20
        %s2221 = scalar_select %p2220, 1, 0
        %v2222 = vstv %s2221
        %vm2223 = vcmp.eq.s32.totalorder %v2222, 1
        %v2224 = vsel %vm2223, %v2217, %v2041
        %v2225 = vsel %vm2223, %v2218, %v2042
        %v2226 = vpack.c.bf16 %v2224, %v2224
        %v2227 = vpack.c.bf16 %v2225, %v2225
        %2228 = vmatprep.subr.bf16.mxu0 %v1488
        %2229 = vmatpush1.bf16.msra.mxu0 %v1487
        %2230 = vmatprep.subr.bf16.mxu0 %v1494
        %2231 = vmatpush1.bf16.msra.mxu0 %v1493
        %2232 = vmatprep.subr.bf16.mxu0 %v1500
        %2233 = vmatpush1.bf16.msra.mxu0 %v1499
        %2234 = vmatprep.subr.bf16.mxu0 %v1506
        %2235 = vmatpush1.bf16.msra.mxu0 %v1505
        %2236 = vmatprep.subr.bf16.mxu0 %v1512
        %2237 = vmatpush1.bf16.msra.mxu0 %v1511
        %2238 = vmatprep.subr.bf16.mxu0 %v1518
        %2239 = vmatpush1.bf16.msra.mxu0 %v1517
        %2240 = vmatprep.subr.bf16.mxu0 %v1524
        %2241 = vmatpush1.bf16.msra.mxu0 %v1523
        %2242 = vmatprep.subr.bf16.mxu0 %v1530
        %2243 = vmatpush1.bf16.msra.mxu0 %v1529
        %2244 = vmatprep.subr.bf16.mxu0 %v1536
        %2245 = vmatpush1.bf16.msra.mxu0 %v1535
        %2246 = vmatprep.subr.bf16.mxu0 %v1542
        %2247 = vmatpush1.bf16.msra.mxu0 %v1541
        %2248 = vmatprep.subr.bf16.mxu0 %v1548
        %2249 = vmatpush1.bf16.msra.mxu0 %v1547
        %2250 = vmatprep.subr.bf16.mxu0 %v1554
        %2251 = vmatpush1.bf16.msra.mxu0 %v1553
        %2252 = vmatprep.subr.bf16.mxu0 %v1560
        %2253 = vmatpush1.bf16.msra.mxu0 %v1559
        %2254 = vmatprep.subr.bf16.mxu0 %v1566
        %2255 = vmatpush1.bf16.msra.mxu0 %v1565
        %2256 = vmatprep.subr.bf16.mxu0 %v1572
        %2257 = vmatpush1.bf16.msra.mxu0 %v1571
        %2258 = vmatprep.subr.bf16.mxu0 %v1578
        %2259 = vmatpush1.bf16.msra.mxu0 %v1577
        %2260 = vmatprep.mubr.bf16.mxu0 %v2227
        %2261 = vmatmul.mubr.bf16.gmra.mrb[0].mxu0 %v2226
        %v2262 = vpop.f32.mrb[0].mxu0
        %v2263 = vadd.f32 0.0, %v2262
        %v2264 = vpop.f32.mrb[0].mxu0
        %v2265 = vadd.f32 0.0, %v2264
        %v2266 = vpop.f32.mrb[0].mxu0
        %v2267 = vpop.f32.mrb[0].mxu0
        %2268 = vdwg.mxu0
        %2269 = vmatprep.subr.bf16.mxu0 %v1490
        %2270 = vmatpush1.bf16.msra.mxu0 %v1489
        %2271 = vmatprep.subr.bf16.mxu0 %v1496
        %2272 = vmatpush1.bf16.msra.mxu0 %v1495
        %2273 = vmatprep.subr.bf16.mxu0 %v1502
        %2274 = vmatpush1.bf16.msra.mxu0 %v1501
        %2275 = vmatprep.subr.bf16.mxu0 %v1508
        %2276 = vmatpush1.bf16.msra.mxu0 %v1507
        %2277 = vmatprep.subr.bf16.mxu0 %v1514
        %2278 = vmatpush1.bf16.msra.mxu0 %v1513
        %2279 = vmatprep.subr.bf16.mxu0 %v1520
        %2280 = vmatpush1.bf16.msra.mxu0 %v1519
        %2281 = vmatprep.subr.bf16.mxu0 %v1526
        %2282 = vmatpush1.bf16.msra.mxu0 %v1525
        %2283 = vmatprep.subr.bf16.mxu0 %v1532
        %2284 = vmatpush1.bf16.msra.mxu0 %v1531
        %2285 = vmatprep.subr.bf16.mxu0 %v1538
        %2286 = vmatpush1.bf16.msra.mxu0 %v1537
        %2287 = vmatprep.subr.bf16.mxu0 %v1544
        %2288 = vmatpush1.bf16.msra.mxu0 %v1543
        %2289 = vmatprep.subr.bf16.mxu0 %v1550
        %2290 = vmatpush1.bf16.msra.mxu0 %v1549
        %2291 = vmatprep.subr.bf16.mxu0 %v1556
        %2292 = vmatpush1.bf16.msra.mxu0 %v1555
        %2293 = vmatprep.subr.bf16.mxu0 %v1562
        %2294 = vmatpush1.bf16.msra.mxu0 %v1561
        %2295 = vmatprep.subr.bf16.mxu0 %v1568
        %2296 = vmatpush1.bf16.msra.mxu0 %v1567
        %2297 = vmatprep.subr.bf16.mxu0 %v1574
        %2298 = vmatpush1.bf16.msra.mxu0 %v1573
        %2299 = vmatprep.subr.bf16.mxu0 %v1580
        %2300 = vmatpush1.bf16.msra.mxu0 %v1579
        %2301 = vmatprep.mubr.bf16.mxu0 %v2227
        %2302 = vmatmul.mubr.bf16.gmra.mrb[0].mxu0 %v2226
        %v2303 = vpop.f32.mrb[0].mxu0
        %v2304 = vadd.f32 0.0, %v2303
        %v2305 = vpop.f32.mrb[0].mxu0
        %v2306 = vadd.f32 0.0, %v2305
        %v2307 = vpop.f32.mrb[0].mxu0
        %v2308 = vpop.f32.mrb[0].mxu0
        %2309 = vdwg.mxu0
        %2310 = vmatprep.subr.bf16.mxu0 %v1492
        %2311 = vmatpush1.bf16.msra.mxu0 %v1491
        %2312 = vmatprep.subr.bf16.mxu0 %v1498
        %2313 = vmatpush1.bf16.msra.mxu0 %v1497
        %2314 = vmatprep.subr.bf16.mxu0 %v1504
        %2315 = vmatpush1.bf16.msra.mxu0 %v1503
        %2316 = vmatprep.subr.bf16.mxu0 %v1510
        %2317 = vmatpush1.bf16.msra.mxu0 %v1509
        %2318 = vmatprep.subr.bf16.mxu0 %v1516
        %2319 = vmatpush1.bf16.msra.mxu0 %v1515
        %2320 = vmatprep.subr.bf16.mxu0 %v1522
        %2321 = vmatpush1.bf16.msra.mxu0 %v1521
        %2322 = vmatprep.subr.bf16.mxu0 %v1528
        %2323 = vmatpush1.bf16.msra.mxu0 %v1527
        %2324 = vmatprep.subr.bf16.mxu0 %v1534
        %2325 = vmatpush1.bf16.msra.mxu0 %v1533
        %2326 = vmatprep.subr.bf16.mxu0 %v1540
        %2327 = vmatpush1.bf16.msra.mxu0 %v1539
        %2328 = vmatprep.subr.bf16.mxu0 %v1546
        %2329 = vmatpush1.bf16.msra.mxu0 %v1545
        %2330 = vmatprep.subr.bf16.mxu0 %v1552
        %2331 = vmatpush1.bf16.msra.mxu0 %v1551
        %2332 = vmatprep.subr.bf16.mxu0 %v1558
        %2333 = vmatpush1.bf16.msra.mxu0 %v1557
        %2334 = vmatprep.subr.bf16.mxu0 %v1564
        %2335 = vmatpush1.bf16.msra.mxu0 %v1563
        %2336 = vmatprep.subr.bf16.mxu0 %v1570
        %2337 = vmatpush1.bf16.msra.mxu0 %v1569
        %2338 = vmatprep.subr.bf16.mxu0 %v1576
        %2339 = vmatpush1.bf16.msra.mxu0 %v1575
        %2340 = vmatprep.subr.bf16.mxu0 %v1582
        %2341 = vmatpush1.bf16.msra.mxu0 %v1581
        %2342 = vmatprep.mubr.bf16.mxu0 %v2227
        %2343 = vmatmul.mubr.bf16.gmra.mrb[0].mxu0 %v2226
        %v2344 = vpop.f32.mrb[0].mxu0
        %v2345 = vadd.f32 0.0, %v2344
        %v2346 = vpop.f32.mrb[0].mxu0
        %v2347 = vadd.f32 0.0, %v2346
        %v2348 = vpop.f32.mrb[0].mxu0
        %v2349 = vpop.f32.mrb[0].mxu0
        %2350 = vdwg.mxu0
        %s2351 = smul.u32 3, 6
        %s2352 = smul.addr %s2351, 8
        %s2353 = scalar_lea.vmem [#allocation2], %s2352
        %v2354 = vld [vmem:[%s2353] sm:$0xff]
        %v2355 = vld [vmem:[%s2353 + $0x8] sm:$0xff]
        %v2356 = vld [vmem:[%s2353 + $0x10] sm:$0xff]
        %v2357 = vld [vmem:[%s2353 + $0x18] sm:$0xff]
        %v2358 = vld [vmem:[%s2353 + $0x20] sm:$0xff]
        %v2359 = vld [vmem:[%s2353 + $0x28] sm:$0xff]
        %v2360 = vadd.f32 %v2354, %v2263
        %v2361 = vadd.f32 %v2355, %v2265
        %v2362 = vadd.f32 %v2356, %v2304
        %v2363 = vadd.f32 %v2357, %v2306
        %v2364 = vxor.u32 %v2360, 2147483648
        %v2365 = vxor.u32 %v2361, 2147483648
        %v2366 = vxor.u32 %v2362, 2147483648
        %v2367 = vxor.u32 %v2363, 2147483648
        %v2368 = vmul.f32 %v2364, 1.442695
        %v2369 = vpow.pop %v2368
        %v2370 = vmul.f32 %v2365, 1.442695
        %v2371 = vpow.pop %v2370
        %v2372 = vmul.f32 %v2366, 1.442695
        %v2373 = vpow.pop %v2372
        %v2374 = vmul.f32 %v2367, 1.442695
        %v2375 = vpow.pop %v2374
        %v2376 = vadd.f32 %v2369, 1.0
        %v2377 = vadd.f32 %v2371, 1.0
        %v2378 = vadd.f32 %v2373, 1.0
        %v2379 = vadd.f32 %v2375, 1.0
        %v2380 = vrcp.pop %v2376
        %v2381 = vmul.f32 1.0, %v2380
        %v2382 = vrcp.pop %v2377
        %v2383 = vmul.f32 1.0, %v2382
        %v2384 = vrcp.pop %v2378
        %v2385 = vmul.f32 1.0, %v2384
        %v2386 = vrcp.pop %v2379
        %v2387 = vmul.f32 1.0, %v2386
        %v2388 = vadd.f32 %v2345, %v1092
        %v2389 = vadd.f32 %v2347, %v1096
        %v2390 = vmul.f32 %v2381, %v2388
        %v2391 = vmul.f32 %v2383, %v2389
        %v2392 = vadd.f32 %v2358, %v2390
        %v2393 = vadd.f32 %v2359, %v2391
        %v2394 = vtanh.pop %v2392
        %v2395 = vtanh.pop %v2393
        %v2396 = vsub.f32 %v2224, %v2394
        %v2397 = vsub.f32 %v2225, %v2395
        %v2398 = vmul.f32 %v2385, %v2396
        %v2399 = vmul.f32 %v2387, %v2397
        %v2400 = vadd.f32 %v2394, %v2398
        %v2401 = vadd.f32 %v2395, %v2399
        %s2402 = sadd.s32 %s1853, 3
        %p2403 = scmp.lt.s32.totalorder %s2402, 20
        %s2404 = scalar_select %p2403, 1, 0
        %v2405 = vstv %s2404
        %vm2406 = vcmp.eq.s32.totalorder %v2405, 1
        %v2407 = vsel %vm2406, %v2400, %v2224
        %v2408 = vsel %vm2406, %v2401, %v2225
        %v2409 = vpack.c.bf16 %v2407, %v2407
        %v2410 = vpack.c.bf16 %v2408, %v2408
        %2411 = vmatprep.subr.bf16.mxu0 %v1488
        %2412 = vmatpush1.bf16.msra.mxu0 %v1487
        %2413 = vmatprep.subr.bf16.mxu0 %v1494
        %2414 = vmatpush1.bf16.msra.mxu0 %v1493
        %2415 = vmatprep.subr.bf16.mxu0 %v1500
        %2416 = vmatpush1.bf16.msra.mxu0 %v1499
        %2417 = vmatprep.subr.bf16.mxu0 %v1506
        %2418 = vmatpush1.bf16.msra.mxu0 %v1505
        %2419 = vmatprep.subr.bf16.mxu0 %v1512
        %2420 = vmatpush1.bf16.msra.mxu0 %v1511
        %2421 = vmatprep.subr.bf16.mxu0 %v1518
        %2422 = vmatpush1.bf16.msra.mxu0 %v1517
        %2423 = vmatprep.subr.bf16.mxu0 %v1524
        %2424 = vmatpush1.bf16.msra.mxu0 %v1523
        %2425 = vmatprep.subr.bf16.mxu0 %v1530
        %2426 = vmatpush1.bf16.msra.mxu0 %v1529
        %2427 = vmatprep.subr.bf16.mxu0 %v1536
        %2428 = vmatpush1.bf16.msra.mxu0 %v1535
        %2429 = vmatprep.subr.bf16.mxu0 %v1542
        %2430 = vmatpush1.bf16.msra.mxu0 %v1541
        %2431 = vmatprep.subr.bf16.mxu0 %v1548
        %2432 = vmatpush1.bf16.msra.mxu0 %v1547
        %2433 = vmatprep.subr.bf16.mxu0 %v1554
        %2434 = vmatpush1.bf16.msra.mxu0 %v1553
        %2435 = vmatprep.subr.bf16.mxu0 %v1560
        %2436 = vmatpush1.bf16.msra.mxu0 %v1559
        %2437 = vmatprep.subr.bf16.mxu0 %v1566
        %2438 = vmatpush1.bf16.msra.mxu0 %v1565
        %2439 = vmatprep.subr.bf16.mxu0 %v1572
        %2440 = vmatpush1.bf16.msra.mxu0 %v1571
        %2441 = vmatprep.subr.bf16.mxu0 %v1578
        %2442 = vmatpush1.bf16.msra.mxu0 %v1577
        %2443 = vmatprep.mubr.bf16.mxu0 %v2410
        %2444 = vmatmul.mubr.bf16.gmra.mrb[0].mxu0 %v2409
        %v2445 = vpop.f32.mrb[0].mxu0
        %v2446 = vadd.f32 0.0, %v2445
        %v2447 = vpop.f32.mrb[0].mxu0
        %v2448 = vadd.f32 0.0, %v2447
        %v2449 = vpop.f32.mrb[0].mxu0
        %v2450 = vpop.f32.mrb[0].mxu0
        %2451 = vdwg.mxu0
        %2452 = vmatprep.subr.bf16.mxu0 %v1490
        %2453 = vmatpush1.bf16.msra.mxu0 %v1489
        %2454 = vmatprep.subr.bf16.mxu0 %v1496
        %2455 = vmatpush1.bf16.msra.mxu0 %v1495
        %2456 = vmatprep.subr.bf16.mxu0 %v1502
        %2457 = vmatpush1.bf16.msra.mxu0 %v1501
        %2458 = vmatprep.subr.bf16.mxu0 %v1508
        %2459 = vmatpush1.bf16.msra.mxu0 %v1507
        %2460 = vmatprep.subr.bf16.mxu0 %v1514
        %2461 = vmatpush1.bf16.msra.mxu0 %v1513
        %2462 = vmatprep.subr.bf16.mxu0 %v1520
        %2463 = vmatpush1.bf16.msra.mxu0 %v1519
        %2464 = vmatprep.subr.bf16.mxu0 %v1526
        %2465 = vmatpush1.bf16.msra.mxu0 %v1525
        %2466 = vmatprep.subr.bf16.mxu0 %v1532
        %2467 = vmatpush1.bf16.msra.mxu0 %v1531
        %2468 = vmatprep.subr.bf16.mxu0 %v1538
        %2469 = vmatpush1.bf16.msra.mxu0 %v1537
        %2470 = vmatprep.subr.bf16.mxu0 %v1544
        %2471 = vmatpush1.bf16.msra.mxu0 %v1543
        %2472 = vmatprep.subr.bf16.mxu0 %v1550
        %2473 = vmatpush1.bf16.msra.mxu0 %v1549
        %2474 = vmatprep.subr.bf16.mxu0 %v1556
        %2475 = vmatpush1.bf16.msra.mxu0 %v1555
        %2476 = vmatprep.subr.bf16.mxu0 %v1562
        %2477 = vmatpush1.bf16.msra.mxu0 %v1561
        %2478 = vmatprep.subr.bf16.mxu0 %v1568
        %2479 = vmatpush1.bf16.msra.mxu0 %v1567
        %2480 = vmatprep.subr.bf16.mxu0 %v1574
        %2481 = vmatpush1.bf16.msra.mxu0 %v1573
        %2482 = vmatprep.subr.bf16.mxu0 %v1580
        %2483 = vmatpush1.bf16.msra.mxu0 %v1579
        %2484 = vmatprep.mubr.bf16.mxu0 %v2410
        %2485 = vmatmul.mubr.bf16.gmra.mrb[0].mxu0 %v2409
        %v2486 = vpop.f32.mrb[0].mxu0
        %v2487 = vadd.f32 0.0, %v2486
        %v2488 = vpop.f32.mrb[0].mxu0
        %v2489 = vadd.f32 0.0, %v2488
        %v2490 = vpop.f32.mrb[0].mxu0
        %v2491 = vpop.f32.mrb[0].mxu0
        %2492 = vdwg.mxu0
        %2493 = vmatprep.subr.bf16.mxu0 %v1492
        %2494 = vmatpush1.bf16.msra.mxu0 %v1491
        %2495 = vmatprep.subr.bf16.mxu0 %v1498
        %2496 = vmatpush1.bf16.msra.mxu0 %v1497
        %2497 = vmatprep.subr.bf16.mxu0 %v1504
        %2498 = vmatpush1.bf16.msra.mxu0 %v1503
        %2499 = vmatprep.subr.bf16.mxu0 %v1510
        %2500 = vmatpush1.bf16.msra.mxu0 %v1509
        %2501 = vmatprep.subr.bf16.mxu0 %v1516
        %2502 = vmatpush1.bf16.msra.mxu0 %v1515
        %2503 = vmatprep.subr.bf16.mxu0 %v1522
        %2504 = vmatpush1.bf16.msra.mxu0 %v1521
        %2505 = vmatprep.subr.bf16.mxu0 %v1528
        %2506 = vmatpush1.bf16.msra.mxu0 %v1527
        %2507 = vmatprep.subr.bf16.mxu0 %v1534
        %2508 = vmatpush1.bf16.msra.mxu0 %v1533
        %2509 = vmatprep.subr.bf16.mxu0 %v1540
        %2510 = vmatpush1.bf16.msra.mxu0 %v1539
        %2511 = vmatprep.subr.bf16.mxu0 %v1546
        %2512 = vmatpush1.bf16.msra.mxu0 %v1545
        %2513 = vmatprep.subr.bf16.mxu0 %v1552
        %2514 = vmatpush1.bf16.msra.mxu0 %v1551
        %2515 = vmatprep.subr.bf16.mxu0 %v1558
        %2516 = vmatpush1.bf16.msra.mxu0 %v1557
        %2517 = vmatprep.subr.bf16.mxu0 %v1564
        %2518 = vmatpush1.bf16.msra.mxu0 %v1563
        %2519 = vmatprep.subr.bf16.mxu0 %v1570
        %2520 = vmatpush1.bf16.msra.mxu0 %v1569
        %2521 = vmatprep.subr.bf16.mxu0 %v1576
        %2522 = vmatpush1.bf16.msra.mxu0 %v1575
        %2523 = vmatprep.subr.bf16.mxu0 %v1582
        %2524 = vmatpush1.bf16.msra.mxu0 %v1581
        %2525 = vmatprep.mubr.bf16.mxu0 %v2410
        %2526 = vmatmul.mubr.bf16.gmra.mrb[0].mxu0 %v2409
        %v2527 = vpop.f32.mrb[0].mxu0
        %v2528 = vadd.f32 0.0, %v2527
        %v2529 = vpop.f32.mrb[0].mxu0
        %v2530 = vadd.f32 0.0, %v2529
        %v2531 = vpop.f32.mrb[0].mxu0
        %v2532 = vpop.f32.mrb[0].mxu0
        %2533 = vdwg.mxu0
        %s2534 = smul.u32 4, 6
        %s2535 = smul.addr %s2534, 8
        %s2536 = scalar_lea.vmem [#allocation2], %s2535
        %v2537 = vld [vmem:[%s2536] sm:$0xff]
        %v2538 = vld [vmem:[%s2536 + $0x8] sm:$0xff]
        %v2539 = vld [vmem:[%s2536 + $0x10] sm:$0xff]
        %v2540 = vld [vmem:[%s2536 + $0x18] sm:$0xff]
        %v2541 = vld [vmem:[%s2536 + $0x20] sm:$0xff]
        %v2542 = vld [vmem:[%s2536 + $0x28] sm:$0xff]
        %v2543 = vadd.f32 %v2537, %v2446
        %v2544 = vadd.f32 %v2538, %v2448
        %v2545 = vadd.f32 %v2539, %v2487
        %v2546 = vadd.f32 %v2540, %v2489
        %v2547 = vxor.u32 %v2543, 2147483648
        %v2548 = vxor.u32 %v2544, 2147483648
        %v2549 = vxor.u32 %v2545, 2147483648
        %v2550 = vxor.u32 %v2546, 2147483648
        %v2551 = vmul.f32 %v2547, 1.442695
        %v2552 = vpow.pop %v2551
        %v2553 = vmul.f32 %v2548, 1.442695
        %v2554 = vpow.pop %v2553
        %v2555 = vmul.f32 %v2549, 1.442695
        %v2556 = vpow.pop %v2555
        %v2557 = vmul.f32 %v2550, 1.442695
        %v2558 = vpow.pop %v2557
        %v2559 = vadd.f32 %v2552, 1.0
        %v2560 = vadd.f32 %v2554, 1.0
        %v2561 = vadd.f32 %v2556, 1.0
        %v2562 = vadd.f32 %v2558, 1.0
        %v2563 = vrcp.pop %v2559
        %v2564 = vmul.f32 1.0, %v2563
        %v2565 = vrcp.pop %v2560
        %v2566 = vmul.f32 1.0, %v2565
        %v2567 = vrcp.pop %v2561
        %v2568 = vmul.f32 1.0, %v2567
        %v2569 = vrcp.pop %v2562
        %v2570 = vmul.f32 1.0, %v2569
        %v2571 = vadd.f32 %v2528, %v1092
        %v2572 = vadd.f32 %v2530, %v1096
        %v2573 = vmul.f32 %v2564, %v2571
        %v2574 = vmul.f32 %v2566, %v2572
        %v2575 = vadd.f32 %v2541, %v2573
        %v2576 = vadd.f32 %v2542, %v2574
        %v2577 = vtanh.pop %v2575
        %v2578 = vtanh.pop %v2576
        %v2579 = vsub.f32 %v2407, %v2577
        %v2580 = vsub.f32 %v2408, %v2578
        %v2581 = vmul.f32 %v2568, %v2579
        %v2582 = vmul.f32 %v2570, %v2580
        %v2583 = vadd.f32 %v2577, %v2581
        %v2584 = vadd.f32 %v2578, %v2582
        %s2585 = sadd.s32 %s1853, 4
        %p2586 = scmp.lt.s32.totalorder %s2585, 20
        %s2587 = scalar_select %p2586, 1, 0
        %v2588 = vstv %s2587
        %vm2589 = vcmp.eq.s32.totalorder %v2588, 1
        %v2590 = vsel %vm2589, %v2583, %v2407
        %v2591 = vsel %vm2589, %v2584, %v2408
        %v2592 = vpack.c.bf16 %v2590, %v2590
        %v2593 = vpack.c.bf16 %v2591, %v2591
        %2594 = vmatprep.subr.bf16.mxu0 %v1488
        %2595 = vmatpush1.bf16.msra.mxu0 %v1487
        %2596 = vmatprep.subr.bf16.mxu0 %v1494
        %2597 = vmatpush1.bf16.msra.mxu0 %v1493
        %2598 = vmatprep.subr.bf16.mxu0 %v1500
        %2599 = vmatpush1.bf16.msra.mxu0 %v1499
        %2600 = vmatprep.subr.bf16.mxu0 %v1506
        %2601 = vmatpush1.bf16.msra.mxu0 %v1505
        %2602 = vmatprep.subr.bf16.mxu0 %v1512
        %2603 = vmatpush1.bf16.msra.mxu0 %v1511
        %2604 = vmatprep.subr.bf16.mxu0 %v1518
        %2605 = vmatpush1.bf16.msra.mxu0 %v1517
        %2606 = vmatprep.subr.bf16.mxu0 %v1524
        %2607 = vmatpush1.bf16.msra.mxu0 %v1523
        %2608 = vmatprep.subr.bf16.mxu0 %v1530
        %2609 = vmatpush1.bf16.msra.mxu0 %v1529
        %2610 = vmatprep.subr.bf16.mxu0 %v1536
        %2611 = vmatpush1.bf16.msra.mxu0 %v1535
        %2612 = vmatprep.subr.bf16.mxu0 %v1542
        %2613 = vmatpush1.bf16.msra.mxu0 %v1541
        %2614 = vmatprep.subr.bf16.mxu0 %v1548
        %2615 = vmatpush1.bf16.msra.mxu0 %v1547
        %2616 = vmatprep.subr.bf16.mxu0 %v1554
        %2617 = vmatpush1.bf16.msra.mxu0 %v1553
        %2618 = vmatprep.subr.bf16.mxu0 %v1560
        %2619 = vmatpush1.bf16.msra.mxu0 %v1559
        %2620 = vmatprep.subr.bf16.mxu0 %v1566
        %2621 = vmatpush1.bf16.msra.mxu0 %v1565
        %2622 = vmatprep.subr.bf16.mxu0 %v1572
        %2623 = vmatpush1.bf16.msra.mxu0 %v1571
        %2624 = vmatprep.subr.bf16.mxu0 %v1578
        %2625 = vmatpush1.bf16.msra.mxu0 %v1577
        %2626 = vmatprep.mubr.bf16.mxu0 %v2593
        %2627 = vmatmul.mubr.bf16.gmra.mrb[0].mxu0 %v2592
        %v2628 = vpop.f32.mrb[0].mxu0
        %v2629 = vadd.f32 0.0, %v2628
        %v2630 = vpop.f32.mrb[0].mxu0
        %v2631 = vadd.f32 0.0, %v2630
        %v2632 = vpop.f32.mrb[0].mxu0
        %v2633 = vpop.f32.mrb[0].mxu0
        %2634 = vdwg.mxu0
        %2635 = vmatprep.subr.bf16.mxu0 %v1490
        %2636 = vmatpush1.bf16.msra.mxu0 %v1489
        %2637 = vmatprep.subr.bf16.mxu0 %v1496
        %2638 = vmatpush1.bf16.msra.mxu0 %v1495
        %2639 = vmatprep.subr.bf16.mxu0 %v1502
        %2640 = vmatpush1.bf16.msra.mxu0 %v1501
        %2641 = vmatprep.subr.bf16.mxu0 %v1508
        %2642 = vmatpush1.bf16.msra.mxu0 %v1507
        %2643 = vmatprep.subr.bf16.mxu0 %v1514
        %2644 = vmatpush1.bf16.msra.mxu0 %v1513
        %2645 = vmatprep.subr.bf16.mxu0 %v1520
        %2646 = vmatpush1.bf16.msra.mxu0 %v1519
        %2647 = vmatprep.subr.bf16.mxu0 %v1526
        %2648 = vmatpush1.bf16.msra.mxu0 %v1525
        %2649 = vmatprep.subr.bf16.mxu0 %v1532
        %2650 = vmatpush1.bf16.msra.mxu0 %v1531
        %2651 = vmatprep.subr.bf16.mxu0 %v1538
        %2652 = vmatpush1.bf16.msra.mxu0 %v1537
        %2653 = vmatprep.subr.bf16.mxu0 %v1544
        %2654 = vmatpush1.bf16.msra.mxu0 %v1543
        %2655 = vmatprep.subr.bf16.mxu0 %v1550
        %2656 = vmatpush1.bf16.msra.mxu0 %v1549
        %2657 = vmatprep.subr.bf16.mxu0 %v1556
        %2658 = vmatpush1.bf16.msra.mxu0 %v1555
        %2659 = vmatprep.subr.bf16.mxu0 %v1562
        %2660 = vmatpush1.bf16.msra.mxu0 %v1561
        %2661 = vmatprep.subr.bf16.mxu0 %v1568
        %2662 = vmatpush1.bf16.msra.mxu0 %v1567
        %2663 = vmatprep.subr.bf16.mxu0 %v1574
        %2664 = vmatpush1.bf16.msra.mxu0 %v1573
        %2665 = vmatprep.subr.bf16.mxu0 %v1580
        %2666 = vmatpush1.bf16.msra.mxu0 %v1579
        %2667 = vmatprep.mubr.bf16.mxu0 %v2593
        %2668 = vmatmul.mubr.bf16.gmra.mrb[0].mxu0 %v2592
        %v2669 = vpop.f32.mrb[0].mxu0
        %v2670 = vadd.f32 0.0, %v2669
        %v2671 = vpop.f32.mrb[0].mxu0
        %v2672 = vadd.f32 0.0, %v2671
        %v2673 = vpop.f32.mrb[0].mxu0
        %v2674 = vpop.f32.mrb[0].mxu0
        %2675 = vdwg.mxu0
        %2676 = vmatprep.subr.bf16.mxu0 %v1492
        %2677 = vmatpush1.bf16.msra.mxu0 %v1491
        %2678 = vmatprep.subr.bf16.mxu0 %v1498
        %2679 = vmatpush1.bf16.msra.mxu0 %v1497
        %2680 = vmatprep.subr.bf16.mxu0 %v1504
        %2681 = vmatpush1.bf16.msra.mxu0 %v1503
        %2682 = vmatprep.subr.bf16.mxu0 %v1510
        %2683 = vmatpush1.bf16.msra.mxu0 %v1509
        %2684 = vmatprep.subr.bf16.mxu0 %v1516
        %2685 = vmatpush1.bf16.msra.mxu0 %v1515
        %2686 = vmatprep.subr.bf16.mxu0 %v1522
        %2687 = vmatpush1.bf16.msra.mxu0 %v1521
        %2688 = vmatprep.subr.bf16.mxu0 %v1528
        %2689 = vmatpush1.bf16.msra.mxu0 %v1527
        %2690 = vmatprep.subr.bf16.mxu0 %v1534
        %2691 = vmatpush1.bf16.msra.mxu0 %v1533
        %2692 = vmatprep.subr.bf16.mxu0 %v1540
        %2693 = vmatpush1.bf16.msra.mxu0 %v1539
        %2694 = vmatprep.subr.bf16.mxu0 %v1546
        %2695 = vmatpush1.bf16.msra.mxu0 %v1545
        %2696 = vmatprep.subr.bf16.mxu0 %v1552
        %2697 = vmatpush1.bf16.msra.mxu0 %v1551
        %2698 = vmatprep.subr.bf16.mxu0 %v1558
        %2699 = vmatpush1.bf16.msra.mxu0 %v1557
        %2700 = vmatprep.subr.bf16.mxu0 %v1564
        %2701 = vmatpush1.bf16.msra.mxu0 %v1563
        %2702 = vmatprep.subr.bf16.mxu0 %v1570
        %2703 = vmatpush1.bf16.msra.mxu0 %v1569
        %2704 = vmatprep.subr.bf16.mxu0 %v1576
        %2705 = vmatpush1.bf16.msra.mxu0 %v1575
        %2706 = vmatprep.subr.bf16.mxu0 %v1582
        %2707 = vmatpush1.bf16.msra.mxu0 %v1581
        %2708 = vmatprep.mubr.bf16.mxu0 %v2593
        %2709 = vmatmul.mubr.bf16.gmra.mrb[0].mxu0 %v2592
        %v2710 = vpop.f32.mrb[0].mxu0
        %v2711 = vadd.f32 0.0, %v2710
        %v2712 = vpop.f32.mrb[0].mxu0
        %v2713 = vadd.f32 0.0, %v2712
        %v2714 = vpop.f32.mrb[0].mxu0
        %v2715 = vpop.f32.mrb[0].mxu0
        %2716 = vdwg.mxu0
        %s2717 = smul.u32 5, 6
        %s2718 = smul.addr %s2717, 8
        %s2719 = scalar_lea.vmem [#allocation2], %s2718
        %v2720 = vld [vmem:[%s2719] sm:$0xff]
        %v2721 = vld [vmem:[%s2719 + $0x8] sm:$0xff]
        %v2722 = vld [vmem:[%s2719 + $0x10] sm:$0xff]
        %v2723 = vld [vmem:[%s2719 + $0x18] sm:$0xff]
        %v2724 = vld [vmem:[%s2719 + $0x20] sm:$0xff]
        %v2725 = vld [vmem:[%s2719 + $0x28] sm:$0xff]
        %v2726 = vadd.f32 %v2720, %v2629
        %v2727 = vadd.f32 %v2721, %v2631
        %v2728 = vadd.f32 %v2722, %v2670
        %v2729 = vadd.f32 %v2723, %v2672
        %v2730 = vxor.u32 %v2726, 2147483648
        %v2731 = vxor.u32 %v2727, 2147483648
        %v2732 = vxor.u32 %v2728, 2147483648
        %v2733 = vxor.u32 %v2729, 2147483648
        %v2734 = vmul.f32 %v2730, 1.442695
        %v2735 = vpow.pop %v2734
        %v2736 = vmul.f32 %v2731, 1.442695
        %v2737 = vpow.pop %v2736
        %v2738 = vmul.f32 %v2732, 1.442695
        %v2739 = vpow.pop %v2738
        %v2740 = vmul.f32 %v2733, 1.442695
        %v2741 = vpow.pop %v2740
        %v2742 = vadd.f32 %v2735, 1.0
        %v2743 = vadd.f32 %v2737, 1.0
        %v2744 = vadd.f32 %v2739, 1.0
        %v2745 = vadd.f32 %v2741, 1.0
        %v2746 = vrcp.pop %v2742
        %v2747 = vmul.f32 1.0, %v2746
        %v2748 = vrcp.pop %v2743
        %v2749 = vmul.f32 1.0, %v2748
        %v2750 = vrcp.pop %v2744
        %v2751 = vmul.f32 1.0, %v2750
        %v2752 = vrcp.pop %v2745
        %v2753 = vmul.f32 1.0, %v2752
        %v2754 = vadd.f32 %v2711, %v1092
        %v2755 = vadd.f32 %v2713, %v1096
        %v2756 = vmul.f32 %v2747, %v2754
        %v2757 = vmul.f32 %v2749, %v2755
        %v2758 = vadd.f32 %v2724, %v2756
        %v2759 = vadd.f32 %v2725, %v2757
        %v2760 = vtanh.pop %v2758
        %v2761 = vtanh.pop %v2759
        %v2762 = vsub.f32 %v2590, %v2760
        %v2763 = vsub.f32 %v2591, %v2761
        %v2764 = vmul.f32 %v2751, %v2762
        %v2765 = vmul.f32 %v2753, %v2763
        %v2766 = vadd.f32 %v2760, %v2764
        %v2767 = vadd.f32 %v2761, %v2765
        %s2768 = sadd.s32 %s1853, 5
        %p2769 = scmp.lt.s32.totalorder %s2768, 20
        %s2770 = scalar_select %p2769, 1, 0
        %v2771 = vstv %s2770
        %vm2772 = vcmp.eq.s32.totalorder %v2771, 1
        %v2773 = vsel %vm2772, %v2766, %v2590
        %v2774 = vsel %vm2772, %v2767, %v2591
        %v2775 = vpack.c.bf16 %v2773, %v2773
        %v2776 = vpack.c.bf16 %v2774, %v2774
        %2777 = vmatprep.subr.bf16.mxu0 %v1488
        %2778 = vmatpush1.bf16.msra.mxu0 %v1487
        %2779 = vmatprep.subr.bf16.mxu0 %v1494
        %2780 = vmatpush1.bf16.msra.mxu0 %v1493
        %2781 = vmatprep.subr.bf16.mxu0 %v1500
        %2782 = vmatpush1.bf16.msra.mxu0 %v1499
        %2783 = vmatprep.subr.bf16.mxu0 %v1506
        %2784 = vmatpush1.bf16.msra.mxu0 %v1505
        %2785 = vmatprep.subr.bf16.mxu0 %v1512
        %2786 = vmatpush1.bf16.msra.mxu0 %v1511
        %2787 = vmatprep.subr.bf16.mxu0 %v1518
        %2788 = vmatpush1.bf16.msra.mxu0 %v1517
        %2789 = vmatprep.subr.bf16.mxu0 %v1524
        %2790 = vmatpush1.bf16.msra.mxu0 %v1523
        %2791 = vmatprep.subr.bf16.mxu0 %v1530
        %2792 = vmatpush1.bf16.msra.mxu0 %v1529
        %2793 = vmatprep.subr.bf16.mxu0 %v1536
        %2794 = vmatpush1.bf16.msra.mxu0 %v1535
        %2795 = vmatprep.subr.bf16.mxu0 %v1542
        %2796 = vmatpush1.bf16.msra.mxu0 %v1541
        %2797 = vmatprep.subr.bf16.mxu0 %v1548
        %2798 = vmatpush1.bf16.msra.mxu0 %v1547
        %2799 = vmatprep.subr.bf16.mxu0 %v1554
        %2800 = vmatpush1.bf16.msra.mxu0 %v1553
        %2801 = vmatprep.subr.bf16.mxu0 %v1560
        %2802 = vmatpush1.bf16.msra.mxu0 %v1559
        %2803 = vmatprep.subr.bf16.mxu0 %v1566
        %2804 = vmatpush1.bf16.msra.mxu0 %v1565
        %2805 = vmatprep.subr.bf16.mxu0 %v1572
        %2806 = vmatpush1.bf16.msra.mxu0 %v1571
        %2807 = vmatprep.subr.bf16.mxu0 %v1578
        %2808 = vmatpush1.bf16.msra.mxu0 %v1577
        %2809 = vmatprep.mubr.bf16.mxu0 %v2776
        %2810 = vmatmul.mubr.bf16.gmra.mrb[0].mxu0 %v2775
        %v2811 = vpop.f32.mrb[0].mxu0
        %v2812 = vadd.f32 0.0, %v2811
        %v2813 = vpop.f32.mrb[0].mxu0
        %v2814 = vadd.f32 0.0, %v2813
        %v2815 = vpop.f32.mrb[0].mxu0
        %v2816 = vpop.f32.mrb[0].mxu0
        %2817 = vdwg.mxu0
        %2818 = vmatprep.subr.bf16.mxu0 %v1490
        %2819 = vmatpush1.bf16.msra.mxu0 %v1489
        %2820 = vmatprep.subr.bf16.mxu0 %v1496
        %2821 = vmatpush1.bf16.msra.mxu0 %v1495
        %2822 = vmatprep.subr.bf16.mxu0 %v1502
        %2823 = vmatpush1.bf16.msra.mxu0 %v1501
        %2824 = vmatprep.subr.bf16.mxu0 %v1508
        %2825 = vmatpush1.bf16.msra.mxu0 %v1507
        %2826 = vmatprep.subr.bf16.mxu0 %v1514
        %2827 = vmatpush1.bf16.msra.mxu0 %v1513
        %2828 = vmatprep.subr.bf16.mxu0 %v1520
        %2829 = vmatpush1.bf16.msra.mxu0 %v1519
        %2830 = vmatprep.subr.bf16.mxu0 %v1526
        %2831 = vmatpush1.bf16.msra.mxu0 %v1525
        %2832 = vmatprep.subr.bf16.mxu0 %v1532
        %2833 = vmatpush1.bf16.msra.mxu0 %v1531
        %2834 = vmatprep.subr.bf16.mxu0 %v1538
        %2835 = vmatpush1.bf16.msra.mxu0 %v1537
        %2836 = vmatprep.subr.bf16.mxu0 %v1544
        %2837 = vmatpush1.bf16.msra.mxu0 %v1543
        %2838 = vmatprep.subr.bf16.mxu0 %v1550
        %2839 = vmatpush1.bf16.msra.mxu0 %v1549
        %2840 = vmatprep.subr.bf16.mxu0 %v1556
        %2841 = vmatpush1.bf16.msra.mxu0 %v1555
        %2842 = vmatprep.subr.bf16.mxu0 %v1562
        %2843 = vmatpush1.bf16.msra.mxu0 %v1561
        %2844 = vmatprep.subr.bf16.mxu0 %v1568
        %2845 = vmatpush1.bf16.msra.mxu0 %v1567
        %2846 = vmatprep.subr.bf16.mxu0 %v1574
        %2847 = vmatpush1.bf16.msra.mxu0 %v1573
        %2848 = vmatprep.subr.bf16.mxu0 %v1580
        %2849 = vmatpush1.bf16.msra.mxu0 %v1579
        %2850 = vmatprep.mubr.bf16.mxu0 %v2776
        %2851 = vmatmul.mubr.bf16.gmra.mrb[0].mxu0 %v2775
        %v2852 = vpop.f32.mrb[0].mxu0
        %v2853 = vadd.f32 0.0, %v2852
        %v2854 = vpop.f32.mrb[0].mxu0
        %v2855 = vadd.f32 0.0, %v2854
        %v2856 = vpop.f32.mrb[0].mxu0
        %v2857 = vpop.f32.mrb[0].mxu0
        %2858 = vdwg.mxu0
        %2859 = vmatprep.subr.bf16.mxu0 %v1492
        %2860 = vmatpush1.bf16.msra.mxu0 %v1491
        %2861 = vmatprep.subr.bf16.mxu0 %v1498
        %2862 = vmatpush1.bf16.msra.mxu0 %v1497
        %2863 = vmatprep.subr.bf16.mxu0 %v1504
        %2864 = vmatpush1.bf16.msra.mxu0 %v1503
        %2865 = vmatprep.subr.bf16.mxu0 %v1510
        %2866 = vmatpush1.bf16.msra.mxu0 %v1509
        %2867 = vmatprep.subr.bf16.mxu0 %v1516
        %2868 = vmatpush1.bf16.msra.mxu0 %v1515
        %2869 = vmatprep.subr.bf16.mxu0 %v1522
        %2870 = vmatpush1.bf16.msra.mxu0 %v1521
        %2871 = vmatprep.subr.bf16.mxu0 %v1528
        %2872 = vmatpush1.bf16.msra.mxu0 %v1527
        %2873 = vmatprep.subr.bf16.mxu0 %v1534
        %2874 = vmatpush1.bf16.msra.mxu0 %v1533
        %2875 = vmatprep.subr.bf16.mxu0 %v1540
        %2876 = vmatpush1.bf16.msra.mxu0 %v1539
        %2877 = vmatprep.subr.bf16.mxu0 %v1546
        %2878 = vmatpush1.bf16.msra.mxu0 %v1545
        %2879 = vmatprep.subr.bf16.mxu0 %v1552
        %2880 = vmatpush1.bf16.msra.mxu0 %v1551
        %2881 = vmatprep.subr.bf16.mxu0 %v1558
        %2882 = vmatpush1.bf16.msra.mxu0 %v1557
        %2883 = vmatprep.subr.bf16.mxu0 %v1564
        %2884 = vmatpush1.bf16.msra.mxu0 %v1563
        %2885 = vmatprep.subr.bf16.mxu0 %v1570
        %2886 = vmatpush1.bf16.msra.mxu0 %v1569
        %2887 = vmatprep.subr.bf16.mxu0 %v1576
        %2888 = vmatpush1.bf16.msra.mxu0 %v1575
        %2889 = vmatprep.subr.bf16.mxu0 %v1582
        %2890 = vmatpush1.bf16.msra.mxu0 %v1581
        %2891 = vmatprep.mubr.bf16.mxu0 %v2776
        %2892 = vmatmul.mubr.bf16.gmra.mrb[0].mxu0 %v2775
        %v2893 = vpop.f32.mrb[0].mxu0
        %v2894 = vadd.f32 0.0, %v2893
        %v2895 = vpop.f32.mrb[0].mxu0
        %v2896 = vadd.f32 0.0, %v2895
        %v2897 = vpop.f32.mrb[0].mxu0
        %v2898 = vpop.f32.mrb[0].mxu0
        %2899 = vdwg.mxu0
        %s2900 = smul.u32 6, 6
        %s2901 = smul.addr %s2900, 8
        %s2902 = scalar_lea.vmem [#allocation2], %s2901
        %v2903 = vld [vmem:[%s2902] sm:$0xff]
        %v2904 = vld [vmem:[%s2902 + $0x8] sm:$0xff]
        %v2905 = vld [vmem:[%s2902 + $0x10] sm:$0xff]
        %v2906 = vld [vmem:[%s2902 + $0x18] sm:$0xff]
        %v2907 = vld [vmem:[%s2902 + $0x20] sm:$0xff]
        %v2908 = vld [vmem:[%s2902 + $0x28] sm:$0xff]
        %v2909 = vadd.f32 %v2903, %v2812
        %v2910 = vadd.f32 %v2904, %v2814
        %v2911 = vadd.f32 %v2905, %v2853
        %v2912 = vadd.f32 %v2906, %v2855
        %v2913 = vxor.u32 %v2909, 2147483648
        %v2914 = vxor.u32 %v2910, 2147483648
        %v2915 = vxor.u32 %v2911, 2147483648
        %v2916 = vxor.u32 %v2912, 2147483648
        %v2917 = vmul.f32 %v2913, 1.442695
        %v2918 = vpow.pop %v2917
        %v2919 = vmul.f32 %v2914, 1.442695
        %v2920 = vpow.pop %v2919
        %v2921 = vmul.f32 %v2915, 1.442695
        %v2922 = vpow.pop %v2921
        %v2923 = vmul.f32 %v2916, 1.442695
        %v2924 = vpow.pop %v2923
        %v2925 = vadd.f32 %v2918, 1.0
        %v2926 = vadd.f32 %v2920, 1.0
        %v2927 = vadd.f32 %v2922, 1.0
        %v2928 = vadd.f32 %v2924, 1.0
        %v2929 = vrcp.pop %v2925
        %v2930 = vmul.f32 1.0, %v2929
        %v2931 = vrcp.pop %v2926
        %v2932 = vmul.f32 1.0, %v2931
        %v2933 = vrcp.pop %v2927
        %v2934 = vmul.f32 1.0, %v2933
        %v2935 = vrcp.pop %v2928
        %v2936 = vmul.f32 1.0, %v2935
        %v2937 = vadd.f32 %v2894, %v1092
        %v2938 = vadd.f32 %v2896, %v1096
        %v2939 = vmul.f32 %v2930, %v2937
        %v2940 = vmul.f32 %v2932, %v2938
        %v2941 = vadd.f32 %v2907, %v2939
        %v2942 = vadd.f32 %v2908, %v2940
        %v2943 = vtanh.pop %v2941
        %v2944 = vtanh.pop %v2942
        %v2945 = vsub.f32 %v2773, %v2943
        %v2946 = vsub.f32 %v2774, %v2944
        %v2947 = vmul.f32 %v2934, %v2945
        %v2948 = vmul.f32 %v2936, %v2946
        %v2949 = vadd.f32 %v2943, %v2947
        %v2950 = vadd.f32 %v2944, %v2948
        %s2951 = sadd.s32 %s1853, 6
        %p2952 = scmp.lt.s32.totalorder %s2951, 20
        %s2953 = scalar_select %p2952, 1, 0
        %v2954 = vstv %s2953
        %vm2955 = vcmp.eq.s32.totalorder %v2954, 1
        %v2956 = vsel %vm2955, %v2949, %v2773
        %v2957 = vsel %vm2955, %v2950, %v2774
        %v2958 = vpack.c.bf16 %v2956, %v2956
        %v2959 = vpack.c.bf16 %v2957, %v2957
        %2960 = vmatprep.subr.bf16.mxu0 %v1488
        %2961 = vmatpush1.bf16.msra.mxu0 %v1487
        %2962 = vmatprep.subr.bf16.mxu0 %v1494
        %2963 = vmatpush1.bf16.msra.mxu0 %v1493
        %2964 = vmatprep.subr.bf16.mxu0 %v1500
        %2965 = vmatpush1.bf16.msra.mxu0 %v1499
        %2966 = vmatprep.subr.bf16.mxu0 %v1506
        %2967 = vmatpush1.bf16.msra.mxu0 %v1505
        %2968 = vmatprep.subr.bf16.mxu0 %v1512
        %2969 = vmatpush1.bf16.msra.mxu0 %v1511
        %2970 = vmatprep.subr.bf16.mxu0 %v1518
        %2971 = vmatpush1.bf16.msra.mxu0 %v1517
        %2972 = vmatprep.subr.bf16.mxu0 %v1524
        %2973 = vmatpush1.bf16.msra.mxu0 %v1523
        %2974 = vmatprep.subr.bf16.mxu0 %v1530
        %2975 = vmatpush1.bf16.msra.mxu0 %v1529
        %2976 = vmatprep.subr.bf16.mxu0 %v1536
        %2977 = vmatpush1.bf16.msra.mxu0 %v1535
        %2978 = vmatprep.subr.bf16.mxu0 %v1542
        %2979 = vmatpush1.bf16.msra.mxu0 %v1541
        %2980 = vmatprep.subr.bf16.mxu0 %v1548
        %2981 = vmatpush1.bf16.msra.mxu0 %v1547
        %2982 = vmatprep.subr.bf16.mxu0 %v1554
        %2983 = vmatpush1.bf16.msra.mxu0 %v1553
        %2984 = vmatprep.subr.bf16.mxu0 %v1560
        %2985 = vmatpush1.bf16.msra.mxu0 %v1559
        %2986 = vmatprep.subr.bf16.mxu0 %v1566
        %2987 = vmatpush1.bf16.msra.mxu0 %v1565
        %2988 = vmatprep.subr.bf16.mxu0 %v1572
        %2989 = vmatpush1.bf16.msra.mxu0 %v1571
        %2990 = vmatprep.subr.bf16.mxu0 %v1578
        %2991 = vmatpush1.bf16.msra.mxu0 %v1577
        %2992 = vmatprep.mubr.bf16.mxu0 %v2959
        %2993 = vmatmul.mubr.bf16.gmra.mrb[0].mxu0 %v2958
        %v2994 = vpop.f32.mrb[0].mxu0
        %v2995 = vadd.f32 0.0, %v2994
        %v2996 = vpop.f32.mrb[0].mxu0
        %v2997 = vadd.f32 0.0, %v2996
        %v2998 = vpop.f32.mrb[0].mxu0
        %v2999 = vpop.f32.mrb[0].mxu0
        %3000 = vdwg.mxu0
        %3001 = vmatprep.subr.bf16.mxu0 %v1490
        %3002 = vmatpush1.bf16.msra.mxu0 %v1489
        %3003 = vmatprep.subr.bf16.mxu0 %v1496
        %3004 = vmatpush1.bf16.msra.mxu0 %v1495
        %3005 = vmatprep.subr.bf16.mxu0 %v1502
        %3006 = vmatpush1.bf16.msra.mxu0 %v1501
        %3007 = vmatprep.subr.bf16.mxu0 %v1508
        %3008 = vmatpush1.bf16.msra.mxu0 %v1507
        %3009 = vmatprep.subr.bf16.mxu0 %v1514
        %3010 = vmatpush1.bf16.msra.mxu0 %v1513
        %3011 = vmatprep.subr.bf16.mxu0 %v1520
        %3012 = vmatpush1.bf16.msra.mxu0 %v1519
        %3013 = vmatprep.subr.bf16.mxu0 %v1526
        %3014 = vmatpush1.bf16.msra.mxu0 %v1525
        %3015 = vmatprep.subr.bf16.mxu0 %v1532
        %3016 = vmatpush1.bf16.msra.mxu0 %v1531
        %3017 = vmatprep.subr.bf16.mxu0 %v1538
        %3018 = vmatpush1.bf16.msra.mxu0 %v1537
        %3019 = vmatprep.subr.bf16.mxu0 %v1544
        %3020 = vmatpush1.bf16.msra.mxu0 %v1543
        %3021 = vmatprep.subr.bf16.mxu0 %v1550
        %3022 = vmatpush1.bf16.msra.mxu0 %v1549
        %3023 = vmatprep.subr.bf16.mxu0 %v1556
        %3024 = vmatpush1.bf16.msra.mxu0 %v1555
        %3025 = vmatprep.subr.bf16.mxu0 %v1562
        %3026 = vmatpush1.bf16.msra.mxu0 %v1561
        %3027 = vmatprep.subr.bf16.mxu0 %v1568
        %3028 = vmatpush1.bf16.msra.mxu0 %v1567
        %3029 = vmatprep.subr.bf16.mxu0 %v1574
        %3030 = vmatpush1.bf16.msra.mxu0 %v1573
        %3031 = vmatprep.subr.bf16.mxu0 %v1580
        %3032 = vmatpush1.bf16.msra.mxu0 %v1579
        %3033 = vmatprep.mubr.bf16.mxu0 %v2959
        %3034 = vmatmul.mubr.bf16.gmra.mrb[0].mxu0 %v2958
        %v3035 = vpop.f32.mrb[0].mxu0
        %v3036 = vadd.f32 0.0, %v3035
        %v3037 = vpop.f32.mrb[0].mxu0
        %v3038 = vadd.f32 0.0, %v3037
        %v3039 = vpop.f32.mrb[0].mxu0
        %v3040 = vpop.f32.mrb[0].mxu0
        %3041 = vdwg.mxu0
        %3042 = vmatprep.subr.bf16.mxu0 %v1492
        %3043 = vmatpush1.bf16.msra.mxu0 %v1491
        %3044 = vmatprep.subr.bf16.mxu0 %v1498
        %3045 = vmatpush1.bf16.msra.mxu0 %v1497
        %3046 = vmatprep.subr.bf16.mxu0 %v1504
        %3047 = vmatpush1.bf16.msra.mxu0 %v1503
        %3048 = vmatprep.subr.bf16.mxu0 %v1510
        %3049 = vmatpush1.bf16.msra.mxu0 %v1509
        %3050 = vmatprep.subr.bf16.mxu0 %v1516
        %3051 = vmatpush1.bf16.msra.mxu0 %v1515
        %3052 = vmatprep.subr.bf16.mxu0 %v1522
        %3053 = vmatpush1.bf16.msra.mxu0 %v1521
        %3054 = vmatprep.subr.bf16.mxu0 %v1528
        %3055 = vmatpush1.bf16.msra.mxu0 %v1527
        %3056 = vmatprep.subr.bf16.mxu0 %v1534
        %3057 = vmatpush1.bf16.msra.mxu0 %v1533
        %3058 = vmatprep.subr.bf16.mxu0 %v1540
        %3059 = vmatpush1.bf16.msra.mxu0 %v1539
        %3060 = vmatprep.subr.bf16.mxu0 %v1546
        %3061 = vmatpush1.bf16.msra.mxu0 %v1545
        %3062 = vmatprep.subr.bf16.mxu0 %v1552
        %3063 = vmatpush1.bf16.msra.mxu0 %v1551
        %3064 = vmatprep.subr.bf16.mxu0 %v1558
        %3065 = vmatpush1.bf16.msra.mxu0 %v1557
        %3066 = vmatprep.subr.bf16.mxu0 %v1564
        %3067 = vmatpush1.bf16.msra.mxu0 %v1563
        %3068 = vmatprep.subr.bf16.mxu0 %v1570
        %3069 = vmatpush1.bf16.msra.mxu0 %v1569
        %3070 = vmatprep.subr.bf16.mxu0 %v1576
        %3071 = vmatpush1.bf16.msra.mxu0 %v1575
        %3072 = vmatprep.subr.bf16.mxu0 %v1582
        %3073 = vmatpush1.bf16.msra.mxu0 %v1581
        %3074 = vmatprep.mubr.bf16.mxu0 %v2959
        %3075 = vmatmul.mubr.bf16.gmra.mrb[0].mxu0 %v2958
        %v3076 = vpop.f32.mrb[0].mxu0
        %v3077 = vadd.f32 0.0, %v3076
        %v3078 = vpop.f32.mrb[0].mxu0
        %v3079 = vadd.f32 0.0, %v3078
        %v3080 = vpop.f32.mrb[0].mxu0
        %v3081 = vpop.f32.mrb[0].mxu0
        %3082 = vdwg.mxu0
        %s3083 = smul.u32 7, 6
        %s3084 = smul.addr %s3083, 8
        %s3085 = scalar_lea.vmem [#allocation2], %s3084
        %v3086 = vld [vmem:[%s3085] sm:$0xff]
        %v3087 = vld [vmem:[%s3085 + $0x8] sm:$0xff]
        %v3088 = vld [vmem:[%s3085 + $0x10] sm:$0xff]
        %v3089 = vld [vmem:[%s3085 + $0x18] sm:$0xff]
        %v3090 = vld [vmem:[%s3085 + $0x20] sm:$0xff]
        %v3091 = vld [vmem:[%s3085 + $0x28] sm:$0xff]
        %v3092 = vadd.f32 %v3086, %v2995
        %v3093 = vadd.f32 %v3087, %v2997
        %v3094 = vadd.f32 %v3088, %v3036
        %v3095 = vadd.f32 %v3089, %v3038
        %v3096 = vxor.u32 %v3092, 2147483648
        %v3097 = vxor.u32 %v3093, 2147483648
        %v3098 = vxor.u32 %v3094, 2147483648
        %v3099 = vxor.u32 %v3095, 2147483648
        %v3100 = vmul.f32 %v3096, 1.442695
        %v3101 = vpow.pop %v3100
        %v3102 = vmul.f32 %v3097, 1.442695
        %v3103 = vpow.pop %v3102
        %v3104 = vmul.f32 %v3098, 1.442695
        %v3105 = vpow.pop %v3104
        %v3106 = vmul.f32 %v3099, 1.442695
        %v3107 = vpow.pop %v3106
        %v3108 = vadd.f32 %v3101, 1.0
        %v3109 = vadd.f32 %v3103, 1.0
        %v3110 = vadd.f32 %v3105, 1.0
        %v3111 = vadd.f32 %v3107, 1.0
        %v3112 = vrcp.pop %v3108
        %v3113 = vmul.f32 1.0, %v3112
        %v3114 = vrcp.pop %v3109
        %v3115 = vmul.f32 1.0, %v3114
        %v3116 = vrcp.pop %v3110
        %v3117 = vmul.f32 1.0, %v3116
        %v3118 = vrcp.pop %v3111
        %v3119 = vmul.f32 1.0, %v3118
        %v3120 = vadd.f32 %v3077, %v1092
        %v3121 = vadd.f32 %v3079, %v1096
        %v3122 = vmul.f32 %v3113, %v3120
        %v3123 = vmul.f32 %v3115, %v3121
        %v3124 = vadd.f32 %v3090, %v3122
        %v3125 = vadd.f32 %v3091, %v3123
        %v3126 = vtanh.pop %v3124
        %v3127 = vtanh.pop %v3125
        %v3128 = vsub.f32 %v2956, %v3126
        %v3129 = vsub.f32 %v2957, %v3127
        %v3130 = vmul.f32 %v3117, %v3128
        %v3131 = vmul.f32 %v3119, %v3129
        %v3132 = vadd.f32 %v3126, %v3130
        %v3133 = vadd.f32 %v3127, %v3131
        %s3134 = sadd.s32 %s1853, 7
        %p3135 = scmp.lt.s32.totalorder %s3134, 20
        %s3136 = scalar_select %p3135, 1, 0
        %v3137 = vstv %s3136
        %vm3138 = vcmp.eq.s32.totalorder %v3137, 1
        %v3139 = vsel %vm3138, %v3132, %v2956
        %v3140 = vsel %vm3138, %v3133, %v2957
        %v3141 = vpack.c.bf16 %v3139, %v3139
        %v3142 = vpack.c.bf16 %v3140, %v3140
        %3143 = vmatprep.subr.bf16.mxu0 %v1488
        %3144 = vmatpush1.bf16.msra.mxu0 %v1487
        %3145 = vmatprep.subr.bf16.mxu0 %v1494
        %3146 = vmatpush1.bf16.msra.mxu0 %v1493
        %3147 = vmatprep.subr.bf16.mxu0 %v1500
        %3148 = vmatpush1.bf16.msra.mxu0 %v1499
        %3149 = vmatprep.subr.bf16.mxu0 %v1506
        %3150 = vmatpush1.bf16.msra.mxu0 %v1505
        %3151 = vmatprep.subr.bf16.mxu0 %v1512
        %3152 = vmatpush1.bf16.msra.mxu0 %v1511
        %3153 = vmatprep.subr.bf16.mxu0 %v1518
        %3154 = vmatpush1.bf16.msra.mxu0 %v1517
        %3155 = vmatprep.subr.bf16.mxu0 %v1524
        %3156 = vmatpush1.bf16.msra.mxu0 %v1523
        %3157 = vmatprep.subr.bf16.mxu0 %v1530
        %3158 = vmatpush1.bf16.msra.mxu0 %v1529
        %3159 = vmatprep.subr.bf16.mxu0 %v1536
        %3160 = vmatpush1.bf16.msra.mxu0 %v1535
        %3161 = vmatprep.subr.bf16.mxu0 %v1542
        %3162 = vmatpush1.bf16.msra.mxu0 %v1541
        %3163 = vmatprep.subr.bf16.mxu0 %v1548
        %3164 = vmatpush1.bf16.msra.mxu0 %v1547
        %3165 = vmatprep.subr.bf16.mxu0 %v1554
        %3166 = vmatpush1.bf16.msra.mxu0 %v1553
        %3167 = vmatprep.subr.bf16.mxu0 %v1560
        %3168 = vmatpush1.bf16.msra.mxu0 %v1559
        %3169 = vmatprep.subr.bf16.mxu0 %v1566
        %3170 = vmatpush1.bf16.msra.mxu0 %v1565
        %3171 = vmatprep.subr.bf16.mxu0 %v1572
        %3172 = vmatpush1.bf16.msra.mxu0 %v1571
        %3173 = vmatprep.subr.bf16.mxu0 %v1578
        %3174 = vmatpush1.bf16.msra.mxu0 %v1577
        %3175 = vmatprep.mubr.bf16.mxu0 %v3142
        %3176 = vmatmul.mubr.bf16.gmra.mrb[0].mxu0 %v3141
        %v3177 = vpop.f32.mrb[0].mxu0
        %v3178 = vadd.f32 0.0, %v3177
        %v3179 = vpop.f32.mrb[0].mxu0
        %v3180 = vadd.f32 0.0, %v3179
        %v3181 = vpop.f32.mrb[0].mxu0
        %v3182 = vpop.f32.mrb[0].mxu0
        %3183 = vdwg.mxu0
        %3184 = vmatprep.subr.bf16.mxu0 %v1490
        %3185 = vmatpush1.bf16.msra.mxu0 %v1489
        %3186 = vmatprep.subr.bf16.mxu0 %v1496
        %3187 = vmatpush1.bf16.msra.mxu0 %v1495
        %3188 = vmatprep.subr.bf16.mxu0 %v1502
        %3189 = vmatpush1.bf16.msra.mxu0 %v1501
        %3190 = vmatprep.subr.bf16.mxu0 %v1508
        %3191 = vmatpush1.bf16.msra.mxu0 %v1507
        %3192 = vmatprep.subr.bf16.mxu0 %v1514
        %3193 = vmatpush1.bf16.msra.mxu0 %v1513
        %3194 = vmatprep.subr.bf16.mxu0 %v1520
        %3195 = vmatpush1.bf16.msra.mxu0 %v1519
        %3196 = vmatprep.subr.bf16.mxu0 %v1526
        %3197 = vmatpush1.bf16.msra.mxu0 %v1525
        %3198 = vmatprep.subr.bf16.mxu0 %v1532
        %3199 = vmatpush1.bf16.msra.mxu0 %v1531
        %3200 = vmatprep.subr.bf16.mxu0 %v1538
        %3201 = vmatpush1.bf16.msra.mxu0 %v1537
        %3202 = vmatprep.subr.bf16.mxu0 %v1544
        %3203 = vmatpush1.bf16.msra.mxu0 %v1543
        %3204 = vmatprep.subr.bf16.mxu0 %v1550
        %3205 = vmatpush1.bf16.msra.mxu0 %v1549
        %3206 = vmatprep.subr.bf16.mxu0 %v1556
        %3207 = vmatpush1.bf16.msra.mxu0 %v1555
        %3208 = vmatprep.subr.bf16.mxu0 %v1562
        %3209 = vmatpush1.bf16.msra.mxu0 %v1561
        %3210 = vmatprep.subr.bf16.mxu0 %v1568
        %3211 = vmatpush1.bf16.msra.mxu0 %v1567
        %3212 = vmatprep.subr.bf16.mxu0 %v1574
        %3213 = vmatpush1.bf16.msra.mxu0 %v1573
        %3214 = vmatprep.subr.bf16.mxu0 %v1580
        %3215 = vmatpush1.bf16.msra.mxu0 %v1579
        %3216 = vmatprep.mubr.bf16.mxu0 %v3142
        %3217 = vmatmul.mubr.bf16.gmra.mrb[0].mxu0 %v3141
        %v3218 = vpop.f32.mrb[0].mxu0
        %v3219 = vadd.f32 0.0, %v3218
        %v3220 = vpop.f32.mrb[0].mxu0
        %v3221 = vadd.f32 0.0, %v3220
        %v3222 = vpop.f32.mrb[0].mxu0
        %v3223 = vpop.f32.mrb[0].mxu0
        %3224 = vdwg.mxu0
        %3225 = vmatprep.subr.bf16.mxu0 %v1492
        %3226 = vmatpush1.bf16.msra.mxu0 %v1491
        %3227 = vmatprep.subr.bf16.mxu0 %v1498
        %3228 = vmatpush1.bf16.msra.mxu0 %v1497
        %3229 = vmatprep.subr.bf16.mxu0 %v1504
        %3230 = vmatpush1.bf16.msra.mxu0 %v1503
        %3231 = vmatprep.subr.bf16.mxu0 %v1510
        %3232 = vmatpush1.bf16.msra.mxu0 %v1509
        %3233 = vmatprep.subr.bf16.mxu0 %v1516
        %3234 = vmatpush1.bf16.msra.mxu0 %v1515
        %3235 = vmatprep.subr.bf16.mxu0 %v1522
        %3236 = vmatpush1.bf16.msra.mxu0 %v1521
        %3237 = vmatprep.subr.bf16.mxu0 %v1528
        %3238 = vmatpush1.bf16.msra.mxu0 %v1527
        %3239 = vmatprep.subr.bf16.mxu0 %v1534
        %3240 = vmatpush1.bf16.msra.mxu0 %v1533
        %3241 = vmatprep.subr.bf16.mxu0 %v1540
        %3242 = vmatpush1.bf16.msra.mxu0 %v1539
        %3243 = vmatprep.subr.bf16.mxu0 %v1546
        %3244 = vmatpush1.bf16.msra.mxu0 %v1545
        %3245 = vmatprep.subr.bf16.mxu0 %v1552
        %3246 = vmatpush1.bf16.msra.mxu0 %v1551
        %3247 = vmatprep.subr.bf16.mxu0 %v1558
        %3248 = vmatpush1.bf16.msra.mxu0 %v1557
        %3249 = vmatprep.subr.bf16.mxu0 %v1564
        %3250 = vmatpush1.bf16.msra.mxu0 %v1563
        %3251 = vmatprep.subr.bf16.mxu0 %v1570
        %3252 = vmatpush1.bf16.msra.mxu0 %v1569
        %3253 = vmatprep.subr.bf16.mxu0 %v1576
        %3254 = vmatpush1.bf16.msra.mxu0 %v1575
        %3255 = vmatprep.subr.bf16.mxu0 %v1582
        %3256 = vmatpush1.bf16.msra.mxu0 %v1581
        %3257 = vmatprep.mubr.bf16.mxu0 %v3142
        %3258 = vmatmul.mubr.bf16.gmra.mrb[0].mxu0 %v3141
        %v3259 = vpop.f32.mrb[0].mxu0
        %v3260 = vadd.f32 0.0, %v3259
        %v3261 = vpop.f32.mrb[0].mxu0
        %v3262 = vadd.f32 0.0, %v3261
        %v3263 = vpop.f32.mrb[0].mxu0
        %v3264 = vpop.f32.mrb[0].mxu0
        %3265 = vdwg.mxu0
        %s3266 = smul.u32 8, 6
        %s3267 = smul.addr %s3266, 8
        %s3268 = scalar_lea.vmem [#allocation2], %s3267
        %v3269 = vld [vmem:[%s3268] sm:$0xff]
        %v3270 = vld [vmem:[%s3268 + $0x8] sm:$0xff]
        %v3271 = vld [vmem:[%s3268 + $0x10] sm:$0xff]
        %v3272 = vld [vmem:[%s3268 + $0x18] sm:$0xff]
        %v3273 = vld [vmem:[%s3268 + $0x20] sm:$0xff]
        %v3274 = vld [vmem:[%s3268 + $0x28] sm:$0xff]
        %v3275 = vadd.f32 %v3269, %v3178
        %v3276 = vadd.f32 %v3270, %v3180
        %v3277 = vadd.f32 %v3271, %v3219
        %v3278 = vadd.f32 %v3272, %v3221
        %v3279 = vxor.u32 %v3275, 2147483648
        %v3280 = vxor.u32 %v3276, 2147483648
        %v3281 = vxor.u32 %v3277, 2147483648
        %v3282 = vxor.u32 %v3278, 2147483648
        %v3283 = vmul.f32 %v3279, 1.442695
        %v3284 = vpow.pop %v3283
        %v3285 = vmul.f32 %v3280, 1.442695
        %v3286 = vpow.pop %v3285
        %v3287 = vmul.f32 %v3281, 1.442695
        %v3288 = vpow.pop %v3287
        %v3289 = vmul.f32 %v3282, 1.442695
        %v3290 = vpow.pop %v3289
        %v3291 = vadd.f32 %v3284, 1.0
        %v3292 = vadd.f32 %v3286, 1.0
        %v3293 = vadd.f32 %v3288, 1.0
        %v3294 = vadd.f32 %v3290, 1.0
        %v3295 = vrcp.pop %v3291
        %v3296 = vmul.f32 1.0, %v3295
        %v3297 = vrcp.pop %v3292
        %v3298 = vmul.f32 1.0, %v3297
        %v3299 = vrcp.pop %v3293
        %v3300 = vmul.f32 1.0, %v3299
        %v3301 = vrcp.pop %v3294
        %v3302 = vmul.f32 1.0, %v3301
        %v3303 = vadd.f32 %v3260, %v1092
        %v3304 = vadd.f32 %v3262, %v1096
        %v3305 = vmul.f32 %v3296, %v3303
        %v3306 = vmul.f32 %v3298, %v3304
        %v3307 = vadd.f32 %v3273, %v3305
        %v3308 = vadd.f32 %v3274, %v3306
        %v3309 = vtanh.pop %v3307
        %v3310 = vtanh.pop %v3308
        %v3311 = vsub.f32 %v3139, %v3309
        %v3312 = vsub.f32 %v3140, %v3310
        %v3313 = vmul.f32 %v3300, %v3311
        %v3314 = vmul.f32 %v3302, %v3312
        %v3315 = vadd.f32 %v3309, %v3313
        %v3316 = vadd.f32 %v3310, %v3314
        %s3317 = sadd.s32 %s1853, 8
        %p3318 = scmp.lt.s32.totalorder %s3317, 20
        %s3319 = scalar_select %p3318, 1, 0
        %v3320 = vstv %s3319
        %vm3321 = vcmp.eq.s32.totalorder %v3320, 1
        %v3322 = vsel %vm3321, %v3315, %v3139
        %v3323 = vsel %vm3321, %v3316, %v3140
        %v3324 = vpack.c.bf16 %v3322, %v3322
        %v3325 = vpack.c.bf16 %v3323, %v3323
        %3326 = vmatprep.subr.bf16.mxu0 %v1488
        %3327 = vmatpush1.bf16.msra.mxu0 %v1487
        %3328 = vmatprep.subr.bf16.mxu0 %v1494
        %3329 = vmatpush1.bf16.msra.mxu0 %v1493
        %3330 = vmatprep.subr.bf16.mxu0 %v1500
        %3331 = vmatpush1.bf16.msra.mxu0 %v1499
        %3332 = vmatprep.subr.bf16.mxu0 %v1506
        %3333 = vmatpush1.bf16.msra.mxu0 %v1505
        %3334 = vmatprep.subr.bf16.mxu0 %v1512
        %3335 = vmatpush1.bf16.msra.mxu0 %v1511
        %3336 = vmatprep.subr.bf16.mxu0 %v1518
        %3337 = vmatpush1.bf16.msra.mxu0 %v1517
        %3338 = vmatprep.subr.bf16.mxu0 %v1524
        %3339 = vmatpush1.bf16.msra.mxu0 %v1523
        %3340 = vmatprep.subr.bf16.mxu0 %v1530
        %3341 = vmatpush1.bf16.msra.mxu0 %v1529
        %3342 = vmatprep.subr.bf16.mxu0 %v1536
        %3343 = vmatpush1.bf16.msra.mxu0 %v1535
        %3344 = vmatprep.subr.bf16.mxu0 %v1542
        %3345 = vmatpush1.bf16.msra.mxu0 %v1541
        %3346 = vmatprep.subr.bf16.mxu0 %v1548
        %3347 = vmatpush1.bf16.msra.mxu0 %v1547
        %3348 = vmatprep.subr.bf16.mxu0 %v1554
        %3349 = vmatpush1.bf16.msra.mxu0 %v1553
        %3350 = vmatprep.subr.bf16.mxu0 %v1560
        %3351 = vmatpush1.bf16.msra.mxu0 %v1559
        %3352 = vmatprep.subr.bf16.mxu0 %v1566
        %3353 = vmatpush1.bf16.msra.mxu0 %v1565
        %3354 = vmatprep.subr.bf16.mxu0 %v1572
        %3355 = vmatpush1.bf16.msra.mxu0 %v1571
        %3356 = vmatprep.subr.bf16.mxu0 %v1578
        %3357 = vmatpush1.bf16.msra.mxu0 %v1577
        %3358 = vmatprep.mubr.bf16.mxu0 %v3325
        %3359 = vmatmul.mubr.bf16.gmra.mrb[0].mxu0 %v3324
        %v3360 = vpop.f32.mrb[0].mxu0
        %v3361 = vadd.f32 0.0, %v3360
        %v3362 = vpop.f32.mrb[0].mxu0
        %v3363 = vadd.f32 0.0, %v3362
        %v3364 = vpop.f32.mrb[0].mxu0
        %v3365 = vpop.f32.mrb[0].mxu0
        %3366 = vdwg.mxu0
        %3367 = vmatprep.subr.bf16.mxu0 %v1490
        %3368 = vmatpush1.bf16.msra.mxu0 %v1489
        %3369 = vmatprep.subr.bf16.mxu0 %v1496
        %3370 = vmatpush1.bf16.msra.mxu0 %v1495
        %3371 = vmatprep.subr.bf16.mxu0 %v1502
        %3372 = vmatpush1.bf16.msra.mxu0 %v1501
        %3373 = vmatprep.subr.bf16.mxu0 %v1508
        %3374 = vmatpush1.bf16.msra.mxu0 %v1507
        %3375 = vmatprep.subr.bf16.mxu0 %v1514
        %3376 = vmatpush1.bf16.msra.mxu0 %v1513
        %3377 = vmatprep.subr.bf16.mxu0 %v1520
        %3378 = vmatpush1.bf16.msra.mxu0 %v1519
        %3379 = vmatprep.subr.bf16.mxu0 %v1526
        %3380 = vmatpush1.bf16.msra.mxu0 %v1525
        %3381 = vmatprep.subr.bf16.mxu0 %v1532
        %3382 = vmatpush1.bf16.msra.mxu0 %v1531
        %3383 = vmatprep.subr.bf16.mxu0 %v1538
        %3384 = vmatpush1.bf16.msra.mxu0 %v1537
        %3385 = vmatprep.subr.bf16.mxu0 %v1544
        %3386 = vmatpush1.bf16.msra.mxu0 %v1543
        %3387 = vmatprep.subr.bf16.mxu0 %v1550
        %3388 = vmatpush1.bf16.msra.mxu0 %v1549
        %3389 = vmatprep.subr.bf16.mxu0 %v1556
        %3390 = vmatpush1.bf16.msra.mxu0 %v1555
        %3391 = vmatprep.subr.bf16.mxu0 %v1562
        %3392 = vmatpush1.bf16.msra.mxu0 %v1561
        %3393 = vmatprep.subr.bf16.mxu0 %v1568
        %3394 = vmatpush1.bf16.msra.mxu0 %v1567
        %3395 = vmatprep.subr.bf16.mxu0 %v1574
        %3396 = vmatpush1.bf16.msra.mxu0 %v1573
        %3397 = vmatprep.subr.bf16.mxu0 %v1580
        %3398 = vmatpush1.bf16.msra.mxu0 %v1579
        %3399 = vmatprep.mubr.bf16.mxu0 %v3325
        %3400 = vmatmul.mubr.bf16.gmra.mrb[0].mxu0 %v3324
        %v3401 = vpop.f32.mrb[0].mxu0
        %v3402 = vadd.f32 0.0, %v3401
        %v3403 = vpop.f32.mrb[0].mxu0
        %v3404 = vadd.f32 0.0, %v3403
        %v3405 = vpop.f32.mrb[0].mxu0
        %v3406 = vpop.f32.mrb[0].mxu0
        %3407 = vdwg.mxu0
        %3408 = vmatprep.subr.bf16.mxu0 %v1492
        %3409 = vmatpush1.bf16.msra.mxu0 %v1491
        %3410 = vmatprep.subr.bf16.mxu0 %v1498
        %3411 = vmatpush1.bf16.msra.mxu0 %v1497
        %3412 = vmatprep.subr.bf16.mxu0 %v1504
        %3413 = vmatpush1.bf16.msra.mxu0 %v1503
        %3414 = vmatprep.subr.bf16.mxu0 %v1510
        %3415 = vmatpush1.bf16.msra.mxu0 %v1509
        %3416 = vmatprep.subr.bf16.mxu0 %v1516
        %3417 = vmatpush1.bf16.msra.mxu0 %v1515
        %3418 = vmatprep.subr.bf16.mxu0 %v1522
        %3419 = vmatpush1.bf16.msra.mxu0 %v1521
        %3420 = vmatprep.subr.bf16.mxu0 %v1528
        %3421 = vmatpush1.bf16.msra.mxu0 %v1527
        %3422 = vmatprep.subr.bf16.mxu0 %v1534
        %3423 = vmatpush1.bf16.msra.mxu0 %v1533
        %3424 = vmatprep.subr.bf16.mxu0 %v1540
        %3425 = vmatpush1.bf16.msra.mxu0 %v1539
        %3426 = vmatprep.subr.bf16.mxu0 %v1546
        %3427 = vmatpush1.bf16.msra.mxu0 %v1545
        %3428 = vmatprep.subr.bf16.mxu0 %v1552
        %3429 = vmatpush1.bf16.msra.mxu0 %v1551
        %3430 = vmatprep.subr.bf16.mxu0 %v1558
        %3431 = vmatpush1.bf16.msra.mxu0 %v1557
        %3432 = vmatprep.subr.bf16.mxu0 %v1564
        %3433 = vmatpush1.bf16.msra.mxu0 %v1563
        %3434 = vmatprep.subr.bf16.mxu0 %v1570
        %3435 = vmatpush1.bf16.msra.mxu0 %v1569
        %3436 = vmatprep.subr.bf16.mxu0 %v1576
        %3437 = vmatpush1.bf16.msra.mxu0 %v1575
        %3438 = vmatprep.subr.bf16.mxu0 %v1582
        %3439 = vmatpush1.bf16.msra.mxu0 %v1581
        %3440 = vmatprep.mubr.bf16.mxu0 %v3325
        %3441 = vmatmul.mubr.bf16.gmra.mrb[0].mxu0 %v3324
        %v3442 = vpop.f32.mrb[0].mxu0
        %v3443 = vadd.f32 0.0, %v3442
        %v3444 = vpop.f32.mrb[0].mxu0
        %v3445 = vadd.f32 0.0, %v3444
        %v3446 = vpop.f32.mrb[0].mxu0
        %v3447 = vpop.f32.mrb[0].mxu0
        %3448 = vdwg.mxu0
        %s3449 = smul.u32 9, 6
        %s3450 = smul.addr %s3449, 8
        %s3451 = scalar_lea.vmem [#allocation2], %s3450
        %v3452 = vld [vmem:[%s3451] sm:$0xff]
        %v3453 = vld [vmem:[%s3451 + $0x8] sm:$0xff]
        %v3454 = vld [vmem:[%s3451 + $0x10] sm:$0xff]
        %v3455 = vld [vmem:[%s3451 + $0x18] sm:$0xff]
        %v3456 = vld [vmem:[%s3451 + $0x20] sm:$0xff]
        %v3457 = vld [vmem:[%s3451 + $0x28] sm:$0xff]
        %v3458 = vadd.f32 %v3452, %v3361
        %v3459 = vadd.f32 %v3453, %v3363
        %v3460 = vadd.f32 %v3454, %v3402
        %v3461 = vadd.f32 %v3455, %v3404
        %v3462 = vxor.u32 %v3458, 2147483648
        %v3463 = vxor.u32 %v3459, 2147483648
        %v3464 = vxor.u32 %v3460, 2147483648
        %v3465 = vxor.u32 %v3461, 2147483648
        %v3466 = vmul.f32 %v3462, 1.442695
        %v3467 = vpow.pop %v3466
        %v3468 = vmul.f32 %v3463, 1.442695
        %v3469 = vpow.pop %v3468
        %v3470 = vmul.f32 %v3464, 1.442695
        %v3471 = vpow.pop %v3470
        %v3472 = vmul.f32 %v3465, 1.442695
        %v3473 = vpow.pop %v3472
        %v3474 = vadd.f32 %v3467, 1.0
        %v3475 = vadd.f32 %v3469, 1.0
        %v3476 = vadd.f32 %v3471, 1.0
        %v3477 = vadd.f32 %v3473, 1.0
        %v3478 = vrcp.pop %v3474
        %v3479 = vmul.f32 1.0, %v3478
        %v3480 = vrcp.pop %v3475
        %v3481 = vmul.f32 1.0, %v3480
        %v3482 = vrcp.pop %v3476
        %v3483 = vmul.f32 1.0, %v3482
        %v3484 = vrcp.pop %v3477
        %v3485 = vmul.f32 1.0, %v3484
        %v3486 = vadd.f32 %v3443, %v1092
        %v3487 = vadd.f32 %v3445, %v1096
        %v3488 = vmul.f32 %v3479, %v3486
        %v3489 = vmul.f32 %v3481, %v3487
        %v3490 = vadd.f32 %v3456, %v3488
        %v3491 = vadd.f32 %v3457, %v3489
        %v3492 = vtanh.pop %v3490
        %v3493 = vtanh.pop %v3491
        %v3494 = vsub.f32 %v3322, %v3492
        %v3495 = vsub.f32 %v3323, %v3493
        %v3496 = vmul.f32 %v3483, %v3494
        %v3497 = vmul.f32 %v3485, %v3495
        %v3498 = vadd.f32 %v3492, %v3496
        %v3499 = vadd.f32 %v3493, %v3497
        %s3500 = sadd.s32 %s1853, 9
        %p3501 = scmp.lt.s32.totalorder %s3500, 20
        %s3502 = scalar_select %p3501, 1, 0
        %v3503 = vstv %s3502
        %vm3504 = vcmp.eq.s32.totalorder %v3503, 1
        %v3505 = vsel %vm3504, %v3498, %v3322
        %v3506 = vsel %vm3504, %v3499, %v3323
        %v3507 = vpack.c.bf16 %v3505, %v3505
        %v3508 = vpack.c.bf16 %v3506, %v3506
        %3509 = vmatprep.subr.bf16.mxu0 %v1488
        %3510 = vmatpush1.bf16.msra.mxu0 %v1487
        %3511 = vmatprep.subr.bf16.mxu0 %v1494
        %3512 = vmatpush1.bf16.msra.mxu0 %v1493
        %3513 = vmatprep.subr.bf16.mxu0 %v1500
        %3514 = vmatpush1.bf16.msra.mxu0 %v1499
        %3515 = vmatprep.subr.bf16.mxu0 %v1506
        %3516 = vmatpush1.bf16.msra.mxu0 %v1505
        %3517 = vmatprep.subr.bf16.mxu0 %v1512
        %3518 = vmatpush1.bf16.msra.mxu0 %v1511
        %3519 = vmatprep.subr.bf16.mxu0 %v1518
        %3520 = vmatpush1.bf16.msra.mxu0 %v1517
        %3521 = vmatprep.subr.bf16.mxu0 %v1524
        %3522 = vmatpush1.bf16.msra.mxu0 %v1523
        %3523 = vmatprep.subr.bf16.mxu0 %v1530
        %3524 = vmatpush1.bf16.msra.mxu0 %v1529
        %3525 = vmatprep.subr.bf16.mxu0 %v1536
        %3526 = vmatpush1.bf16.msra.mxu0 %v1535
        %3527 = vmatprep.subr.bf16.mxu0 %v1542
        %3528 = vmatpush1.bf16.msra.mxu0 %v1541
        %3529 = vmatprep.subr.bf16.mxu0 %v1548
        %3530 = vmatpush1.bf16.msra.mxu0 %v1547
        %3531 = vmatprep.subr.bf16.mxu0 %v1554
        %3532 = vmatpush1.bf16.msra.mxu0 %v1553
        %3533 = vmatprep.subr.bf16.mxu0 %v1560
        %3534 = vmatpush1.bf16.msra.mxu0 %v1559
        %3535 = vmatprep.subr.bf16.mxu0 %v1566
        %3536 = vmatpush1.bf16.msra.mxu0 %v1565
        %3537 = vmatprep.subr.bf16.mxu0 %v1572
        %3538 = vmatpush1.bf16.msra.mxu0 %v1571
        %3539 = vmatprep.subr.bf16.mxu0 %v1578
        %3540 = vmatpush1.bf16.msra.mxu0 %v1577
        %3541 = vmatprep.mubr.bf16.mxu0 %v3508
        %3542 = vmatmul.mubr.bf16.gmra.mrb[0].mxu0 %v3507
        %v3543 = vpop.f32.mrb[0].mxu0
        %v3544 = vadd.f32 0.0, %v3543
        %v3545 = vpop.f32.mrb[0].mxu0
        %v3546 = vadd.f32 0.0, %v3545
        %v3547 = vpop.f32.mrb[0].mxu0
        %v3548 = vpop.f32.mrb[0].mxu0
        %3549 = vdwg.mxu0
        %3550 = vmatprep.subr.bf16.mxu0 %v1490
        %3551 = vmatpush1.bf16.msra.mxu0 %v1489
        %3552 = vmatprep.subr.bf16.mxu0 %v1496
        %3553 = vmatpush1.bf16.msra.mxu0 %v1495
        %3554 = vmatprep.subr.bf16.mxu0 %v1502
        %3555 = vmatpush1.bf16.msra.mxu0 %v1501
        %3556 = vmatprep.subr.bf16.mxu0 %v1508
        %3557 = vmatpush1.bf16.msra.mxu0 %v1507
        %3558 = vmatprep.subr.bf16.mxu0 %v1514
        %3559 = vmatpush1.bf16.msra.mxu0 %v1513
        %3560 = vmatprep.subr.bf16.mxu0 %v1520
        %3561 = vmatpush1.bf16.msra.mxu0 %v1519
        %3562 = vmatprep.subr.bf16.mxu0 %v1526
        %3563 = vmatpush1.bf16.msra.mxu0 %v1525
        %3564 = vmatprep.subr.bf16.mxu0 %v1532
        %3565 = vmatpush1.bf16.msra.mxu0 %v1531
        %3566 = vmatprep.subr.bf16.mxu0 %v1538
        %3567 = vmatpush1.bf16.msra.mxu0 %v1537
        %3568 = vmatprep.subr.bf16.mxu0 %v1544
        %3569 = vmatpush1.bf16.msra.mxu0 %v1543
        %3570 = vmatprep.subr.bf16.mxu0 %v1550
        %3571 = vmatpush1.bf16.msra.mxu0 %v1549
        %3572 = vmatprep.subr.bf16.mxu0 %v1556
        %3573 = vmatpush1.bf16.msra.mxu0 %v1555
        %3574 = vmatprep.subr.bf16.mxu0 %v1562
        %3575 = vmatpush1.bf16.msra.mxu0 %v1561
        %3576 = vmatprep.subr.bf16.mxu0 %v1568
        %3577 = vmatpush1.bf16.msra.mxu0 %v1567
        %3578 = vmatprep.subr.bf16.mxu0 %v1574
        %3579 = vmatpush1.bf16.msra.mxu0 %v1573
        %3580 = vmatprep.subr.bf16.mxu0 %v1580
        %3581 = vmatpush1.bf16.msra.mxu0 %v1579
        %3582 = vmatprep.mubr.bf16.mxu0 %v3508
        %3583 = vmatmul.mubr.bf16.gmra.mrb[0].mxu0 %v3507
        %v3584 = vpop.f32.mrb[0].mxu0
        %v3585 = vadd.f32 0.0, %v3584
        %v3586 = vpop.f32.mrb[0].mxu0
        %v3587 = vadd.f32 0.0, %v3586
        %v3588 = vpop.f32.mrb[0].mxu0
        %v3589 = vpop.f32.mrb[0].mxu0
        %3590 = vdwg.mxu0
        %3591 = vmatprep.subr.bf16.mxu0 %v1492
        %3592 = vmatpush1.bf16.msra.mxu0 %v1491
        %3593 = vmatprep.subr.bf16.mxu0 %v1498
        %3594 = vmatpush1.bf16.msra.mxu0 %v1497
        %3595 = vmatprep.subr.bf16.mxu0 %v1504
        %3596 = vmatpush1.bf16.msra.mxu0 %v1503
        %3597 = vmatprep.subr.bf16.mxu0 %v1510
        %3598 = vmatpush1.bf16.msra.mxu0 %v1509
        %3599 = vmatprep.subr.bf16.mxu0 %v1516
        %3600 = vmatpush1.bf16.msra.mxu0 %v1515
        %3601 = vmatprep.subr.bf16.mxu0 %v1522
        %3602 = vmatpush1.bf16.msra.mxu0 %v1521
        %3603 = vmatprep.subr.bf16.mxu0 %v1528
        %3604 = vmatpush1.bf16.msra.mxu0 %v1527
        %3605 = vmatprep.subr.bf16.mxu0 %v1534
        %3606 = vmatpush1.bf16.msra.mxu0 %v1533
        %3607 = vmatprep.subr.bf16.mxu0 %v1540
        %3608 = vmatpush1.bf16.msra.mxu0 %v1539
        %3609 = vmatprep.subr.bf16.mxu0 %v1546
        %3610 = vmatpush1.bf16.msra.mxu0 %v1545
        %3611 = vmatprep.subr.bf16.mxu0 %v1552
        %3612 = vmatpush1.bf16.msra.mxu0 %v1551
        %3613 = vmatprep.subr.bf16.mxu0 %v1558
        %3614 = vmatpush1.bf16.msra.mxu0 %v1557
        %3615 = vmatprep.subr.bf16.mxu0 %v1564
        %3616 = vmatpush1.bf16.msra.mxu0 %v1563
        %3617 = vmatprep.subr.bf16.mxu0 %v1570
        %3618 = vmatpush1.bf16.msra.mxu0 %v1569
        %3619 = vmatprep.subr.bf16.mxu0 %v1576
        %3620 = vmatpush1.bf16.msra.mxu0 %v1575
        %3621 = vmatprep.subr.bf16.mxu0 %v1582
        %3622 = vmatpush1.bf16.msra.mxu0 %v1581
        %3623 = vmatprep.mubr.bf16.mxu0 %v3508
        %3624 = vmatmul.mubr.bf16.gmra.mrb[0].mxu0 %v3507
        %v3625 = vpop.f32.mrb[0].mxu0
        %v3626 = vadd.f32 0.0, %v3625
        %v3627 = vpop.f32.mrb[0].mxu0
        %v3628 = vadd.f32 0.0, %v3627
        %v3629 = vpop.f32.mrb[0].mxu0
        %v3630 = vpop.f32.mrb[0].mxu0
        %3631 = vdwg.mxu0
        %s3632 = smul.u32 10, 6
        %s3633 = smul.addr %s3632, 8
        %s3634 = scalar_lea.vmem [#allocation2], %s3633
        %v3635 = vld [vmem:[%s3634] sm:$0xff]
        %v3636 = vld [vmem:[%s3634 + $0x8] sm:$0xff]
        %v3637 = vld [vmem:[%s3634 + $0x10] sm:$0xff]
        %v3638 = vld [vmem:[%s3634 + $0x18] sm:$0xff]
        %v3639 = vld [vmem:[%s3634 + $0x20] sm:$0xff]
        %v3640 = vld [vmem:[%s3634 + $0x28] sm:$0xff]
        %v3641 = vadd.f32 %v3635, %v3544
        %v3642 = vadd.f32 %v3636, %v3546
        %v3643 = vadd.f32 %v3637, %v3585
        %v3644 = vadd.f32 %v3638, %v3587
        %v3645 = vxor.u32 %v3641, 2147483648
        %v3646 = vxor.u32 %v3642, 2147483648
        %v3647 = vxor.u32 %v3643, 2147483648
        %v3648 = vxor.u32 %v3644, 2147483648
        %v3649 = vmul.f32 %v3645, 1.442695
        %v3650 = vpow.pop %v3649
        %v3651 = vmul.f32 %v3646, 1.442695
        %v3652 = vpow.pop %v3651
        %v3653 = vmul.f32 %v3647, 1.442695
        %v3654 = vpow.pop %v3653
        %v3655 = vmul.f32 %v3648, 1.442695
        %v3656 = vpow.pop %v3655
        %v3657 = vadd.f32 %v3650, 1.0
        %v3658 = vadd.f32 %v3652, 1.0
        %v3659 = vadd.f32 %v3654, 1.0
        %v3660 = vadd.f32 %v3656, 1.0
        %v3661 = vrcp.pop %v3657
        %v3662 = vmul.f32 1.0, %v3661
        %v3663 = vrcp.pop %v3658
        %v3664 = vmul.f32 1.0, %v3663
        %v3665 = vrcp.pop %v3659
        %v3666 = vmul.f32 1.0, %v3665
        %v3667 = vrcp.pop %v3660
        %v3668 = vmul.f32 1.0, %v3667
        %v3669 = vadd.f32 %v3626, %v1092
        %v3670 = vadd.f32 %v3628, %v1096
        %v3671 = vmul.f32 %v3662, %v3669
        %v3672 = vmul.f32 %v3664, %v3670
        %v3673 = vadd.f32 %v3639, %v3671
        %v3674 = vadd.f32 %v3640, %v3672
        %v3675 = vtanh.pop %v3673
        %v3676 = vtanh.pop %v3674
        %v3677 = vsub.f32 %v3505, %v3675
        %v3678 = vsub.f32 %v3506, %v3676
        %v3679 = vmul.f32 %v3666, %v3677
        %v3680 = vmul.f32 %v3668, %v3678
        %v3681 = vadd.f32 %v3675, %v3679
        %v3682 = vadd.f32 %v3676, %v3680
        %s3683 = sadd.s32 %s1853, 10
        %p3684 = scmp.lt.s32.totalorder %s3683, 20
        %s3685 = scalar_select %p3684, 1, 0
        %v3686 = vstv %s3685
        %vm3687 = vcmp.eq.s32.totalorder %v3686, 1
        %v3688 = vsel %vm3687, %v3681, %v3505
        %v3689 = vsel %vm3687, %v3682, %v3506
        %v3690 = vpack.c.bf16 %v3688, %v3688
        %v3691 = vpack.c.bf16 %v3689, %v3689
        %3692 = vmatprep.subr.bf16.mxu0 %v1488
        %3693 = vmatpush1.bf16.msra.mxu0 %v1487
        %3694 = vmatprep.subr.bf16.mxu0 %v1494
        %3695 = vmatpush1.bf16.msra.mxu0 %v1493
        %3696 = vmatprep.subr.bf16.mxu0 %v1500
        %3697 = vmatpush1.bf16.msra.mxu0 %v1499
        %3698 = vmatprep.subr.bf16.mxu0 %v1506
        %3699 = vmatpush1.bf16.msra.mxu0 %v1505
        %3700 = vmatprep.subr.bf16.mxu0 %v1512
        %3701 = vmatpush1.bf16.msra.mxu0 %v1511
        %3702 = vmatprep.subr.bf16.mxu0 %v1518
        %3703 = vmatpush1.bf16.msra.mxu0 %v1517
        %3704 = vmatprep.subr.bf16.mxu0 %v1524
        %3705 = vmatpush1.bf16.msra.mxu0 %v1523
        %3706 = vmatprep.subr.bf16.mxu0 %v1530
        %3707 = vmatpush1.bf16.msra.mxu0 %v1529
        %3708 = vmatprep.subr.bf16.mxu0 %v1536
        %3709 = vmatpush1.bf16.msra.mxu0 %v1535
        %3710 = vmatprep.subr.bf16.mxu0 %v1542
        %3711 = vmatpush1.bf16.msra.mxu0 %v1541
        %3712 = vmatprep.subr.bf16.mxu0 %v1548
        %3713 = vmatpush1.bf16.msra.mxu0 %v1547
        %3714 = vmatprep.subr.bf16.mxu0 %v1554
        %3715 = vmatpush1.bf16.msra.mxu0 %v1553
        %3716 = vmatprep.subr.bf16.mxu0 %v1560
        %3717 = vmatpush1.bf16.msra.mxu0 %v1559
        %3718 = vmatprep.subr.bf16.mxu0 %v1566
        %3719 = vmatpush1.bf16.msra.mxu0 %v1565
        %3720 = vmatprep.subr.bf16.mxu0 %v1572
        %3721 = vmatpush1.bf16.msra.mxu0 %v1571
        %3722 = vmatprep.subr.bf16.mxu0 %v1578
        %3723 = vmatpush1.bf16.msra.mxu0 %v1577
        %3724 = vmatprep.mubr.bf16.mxu0 %v3691
        %3725 = vmatmul.mubr.bf16.gmra.mrb[0].mxu0 %v3690
        %v3726 = vpop.f32.mrb[0].mxu0
        %v3727 = vadd.f32 0.0, %v3726
        %v3728 = vpop.f32.mrb[0].mxu0
        %v3729 = vadd.f32 0.0, %v3728
        %v3730 = vpop.f32.mrb[0].mxu0
        %v3731 = vpop.f32.mrb[0].mxu0
        %3732 = vdwg.mxu0
        %3733 = vmatprep.subr.bf16.mxu0 %v1490
        %3734 = vmatpush1.bf16.msra.mxu0 %v1489
        %3735 = vmatprep.subr.bf16.mxu0 %v1496
        %3736 = vmatpush1.bf16.msra.mxu0 %v1495
        %3737 = vmatprep.subr.bf16.mxu0 %v1502
        %3738 = vmatpush1.bf16.msra.mxu0 %v1501
        %3739 = vmatprep.subr.bf16.mxu0 %v1508
        %3740 = vmatpush1.bf16.msra.mxu0 %v1507
        %3741 = vmatprep.subr.bf16.mxu0 %v1514
        %3742 = vmatpush1.bf16.msra.mxu0 %v1513
        %3743 = vmatprep.subr.bf16.mxu0 %v1520
        %3744 = vmatpush1.bf16.msra.mxu0 %v1519
        %3745 = vmatprep.subr.bf16.mxu0 %v1526
        %3746 = vmatpush1.bf16.msra.mxu0 %v1525
        %3747 = vmatprep.subr.bf16.mxu0 %v1532
        %3748 = vmatpush1.bf16.msra.mxu0 %v1531
        %3749 = vmatprep.subr.bf16.mxu0 %v1538
        %3750 = vmatpush1.bf16.msra.mxu0 %v1537
        %3751 = vmatprep.subr.bf16.mxu0 %v1544
        %3752 = vmatpush1.bf16.msra.mxu0 %v1543
        %3753 = vmatprep.subr.bf16.mxu0 %v1550
        %3754 = vmatpush1.bf16.msra.mxu0 %v1549
        %3755 = vmatprep.subr.bf16.mxu0 %v1556
        %3756 = vmatpush1.bf16.msra.mxu0 %v1555
        %3757 = vmatprep.subr.bf16.mxu0 %v1562
        %3758 = vmatpush1.bf16.msra.mxu0 %v1561
        %3759 = vmatprep.subr.bf16.mxu0 %v1568
        %3760 = vmatpush1.bf16.msra.mxu0 %v1567
        %3761 = vmatprep.subr.bf16.mxu0 %v1574
        %3762 = vmatpush1.bf16.msra.mxu0 %v1573
        %3763 = vmatprep.subr.bf16.mxu0 %v1580
        %3764 = vmatpush1.bf16.msra.mxu0 %v1579
        %3765 = vmatprep.mubr.bf16.mxu0 %v3691
        %3766 = vmatmul.mubr.bf16.gmra.mrb[0].mxu0 %v3690
        %v3767 = vpop.f32.mrb[0].mxu0
        %v3768 = vadd.f32 0.0, %v3767
        %v3769 = vpop.f32.mrb[0].mxu0
        %v3770 = vadd.f32 0.0, %v3769
        %v3771 = vpop.f32.mrb[0].mxu0
        %v3772 = vpop.f32.mrb[0].mxu0
        %3773 = vdwg.mxu0
        %3774 = vmatprep.subr.bf16.mxu0 %v1492
        %3775 = vmatpush1.bf16.msra.mxu0 %v1491
        %3776 = vmatprep.subr.bf16.mxu0 %v1498
        %3777 = vmatpush1.bf16.msra.mxu0 %v1497
        %3778 = vmatprep.subr.bf16.mxu0 %v1504
        %3779 = vmatpush1.bf16.msra.mxu0 %v1503
        %3780 = vmatprep.subr.bf16.mxu0 %v1510
        %3781 = vmatpush1.bf16.msra.mxu0 %v1509
        %3782 = vmatprep.subr.bf16.mxu0 %v1516
        %3783 = vmatpush1.bf16.msra.mxu0 %v1515
        %3784 = vmatprep.subr.bf16.mxu0 %v1522
        %3785 = vmatpush1.bf16.msra.mxu0 %v1521
        %3786 = vmatprep.subr.bf16.mxu0 %v1528
        %3787 = vmatpush1.bf16.msra.mxu0 %v1527
        %3788 = vmatprep.subr.bf16.mxu0 %v1534
        %3789 = vmatpush1.bf16.msra.mxu0 %v1533
        %3790 = vmatprep.subr.bf16.mxu0 %v1540
        %3791 = vmatpush1.bf16.msra.mxu0 %v1539
        %3792 = vmatprep.subr.bf16.mxu0 %v1546
        %3793 = vmatpush1.bf16.msra.mxu0 %v1545
        %3794 = vmatprep.subr.bf16.mxu0 %v1552
        %3795 = vmatpush1.bf16.msra.mxu0 %v1551
        %3796 = vmatprep.subr.bf16.mxu0 %v1558
        %3797 = vmatpush1.bf16.msra.mxu0 %v1557
        %3798 = vmatprep.subr.bf16.mxu0 %v1564
        %3799 = vmatpush1.bf16.msra.mxu0 %v1563
        %3800 = vmatprep.subr.bf16.mxu0 %v1570
        %3801 = vmatpush1.bf16.msra.mxu0 %v1569
        %3802 = vmatprep.subr.bf16.mxu0 %v1576
        %3803 = vmatpush1.bf16.msra.mxu0 %v1575
        %3804 = vmatprep.subr.bf16.mxu0 %v1582
        %3805 = vmatpush1.bf16.msra.mxu0 %v1581
        %3806 = vmatprep.mubr.bf16.mxu0 %v3691
        %3807 = vmatmul.mubr.bf16.gmra.mrb[0].mxu0 %v3690
        %v3808 = vpop.f32.mrb[0].mxu0
        %v3809 = vadd.f32 0.0, %v3808
        %v3810 = vpop.f32.mrb[0].mxu0
        %v3811 = vadd.f32 0.0, %v3810
        %v3812 = vpop.f32.mrb[0].mxu0
        %v3813 = vpop.f32.mrb[0].mxu0
        %3814 = vdwg.mxu0
        %s3815 = smul.u32 11, 6
        %s3816 = smul.addr %s3815, 8
        %s3817 = scalar_lea.vmem [#allocation2], %s3816
        %v3818 = vld [vmem:[%s3817] sm:$0xff]
        %v3819 = vld [vmem:[%s3817 + $0x8] sm:$0xff]
        %v3820 = vld [vmem:[%s3817 + $0x10] sm:$0xff]
        %v3821 = vld [vmem:[%s3817 + $0x18] sm:$0xff]
        %v3822 = vld [vmem:[%s3817 + $0x20] sm:$0xff]
        %v3823 = vld [vmem:[%s3817 + $0x28] sm:$0xff]
        %v3824 = vadd.f32 %v3818, %v3727
        %v3825 = vadd.f32 %v3819, %v3729
        %v3826 = vadd.f32 %v3820, %v3768
        %v3827 = vadd.f32 %v3821, %v3770
        %v3828 = vxor.u32 %v3824, 2147483648
        %v3829 = vxor.u32 %v3825, 2147483648
        %v3830 = vxor.u32 %v3826, 2147483648
        %v3831 = vxor.u32 %v3827, 2147483648
        %v3832 = vmul.f32 %v3828, 1.442695
        %v3833 = vpow.pop %v3832
        %v3834 = vmul.f32 %v3829, 1.442695
        %v3835 = vpow.pop %v3834
        %v3836 = vmul.f32 %v3830, 1.442695
        %v3837 = vpow.pop %v3836
        %v3838 = vmul.f32 %v3831, 1.442695
        %v3839 = vpow.pop %v3838
        %v3840 = vadd.f32 %v3833, 1.0
        %v3841 = vadd.f32 %v3835, 1.0
        %v3842 = vadd.f32 %v3837, 1.0
        %v3843 = vadd.f32 %v3839, 1.0
        %v3844 = vrcp.pop %v3840
        %v3845 = vmul.f32 1.0, %v3844
        %v3846 = vrcp.pop %v3841
        %v3847 = vmul.f32 1.0, %v3846
        %v3848 = vrcp.pop %v3842
        %v3849 = vmul.f32 1.0, %v3848
        %v3850 = vrcp.pop %v3843
        %v3851 = vmul.f32 1.0, %v3850
        %v3852 = vadd.f32 %v3809, %v1092
        %v3853 = vadd.f32 %v3811, %v1096
        %v3854 = vmul.f32 %v3845, %v3852
        %v3855 = vmul.f32 %v3847, %v3853
        %v3856 = vadd.f32 %v3822, %v3854
        %v3857 = vadd.f32 %v3823, %v3855
        %v3858 = vtanh.pop %v3856
        %v3859 = vtanh.pop %v3857
        %v3860 = vsub.f32 %v3688, %v3858
        %v3861 = vsub.f32 %v3689, %v3859
        %v3862 = vmul.f32 %v3849, %v3860
        %v3863 = vmul.f32 %v3851, %v3861
        %v3864 = vadd.f32 %v3858, %v3862
        %v3865 = vadd.f32 %v3859, %v3863
        %s3866 = sadd.s32 %s1853, 11
        %p3867 = scmp.lt.s32.totalorder %s3866, 20
        %s3868 = scalar_select %p3867, 1, 0
        %v3869 = vstv %s3868
        %vm3870 = vcmp.eq.s32.totalorder %v3869, 1
        %v3871 = vsel %vm3870, %v3864, %v3688
        %v3872 = vsel %vm3870, %v3865, %v3689
        %v3873 = vpack.c.bf16 %v3871, %v3871
        %v3874 = vpack.c.bf16 %v3872, %v3872
        %3875 = vmatprep.subr.bf16.mxu0 %v1488
        %3876 = vmatpush1.bf16.msra.mxu0 %v1487
        %3877 = vmatprep.subr.bf16.mxu0 %v1494
        %3878 = vmatpush1.bf16.msra.mxu0 %v1493
        %3879 = vmatprep.subr.bf16.mxu0 %v1500
        %3880 = vmatpush1.bf16.msra.mxu0 %v1499
        %3881 = vmatprep.subr.bf16.mxu0 %v1506
        %3882 = vmatpush1.bf16.msra.mxu0 %v1505
        %3883 = vmatprep.subr.bf16.mxu0 %v1512
        %3884 = vmatpush1.bf16.msra.mxu0 %v1511
        %3885 = vmatprep.subr.bf16.mxu0 %v1518
        %3886 = vmatpush1.bf16.msra.mxu0 %v1517
        %3887 = vmatprep.subr.bf16.mxu0 %v1524
        %3888 = vmatpush1.bf16.msra.mxu0 %v1523
        %3889 = vmatprep.subr.bf16.mxu0 %v1530
        %3890 = vmatpush1.bf16.msra.mxu0 %v1529
        %3891 = vmatprep.subr.bf16.mxu0 %v1536
        %3892 = vmatpush1.bf16.msra.mxu0 %v1535
        %3893 = vmatprep.subr.bf16.mxu0 %v1542
        %3894 = vmatpush1.bf16.msra.mxu0 %v1541
        %3895 = vmatprep.subr.bf16.mxu0 %v1548
        %3896 = vmatpush1.bf16.msra.mxu0 %v1547
        %3897 = vmatprep.subr.bf16.mxu0 %v1554
        %3898 = vmatpush1.bf16.msra.mxu0 %v1553
        %3899 = vmatprep.subr.bf16.mxu0 %v1560
        %3900 = vmatpush1.bf16.msra.mxu0 %v1559
        %3901 = vmatprep.subr.bf16.mxu0 %v1566
        %3902 = vmatpush1.bf16.msra.mxu0 %v1565
        %3903 = vmatprep.subr.bf16.mxu0 %v1572
        %3904 = vmatpush1.bf16.msra.mxu0 %v1571
        %3905 = vmatprep.subr.bf16.mxu0 %v1578
        %3906 = vmatpush1.bf16.msra.mxu0 %v1577
        %3907 = vmatprep.mubr.bf16.mxu0 %v3874
        %3908 = vmatmul.mubr.bf16.gmra.mrb[0].mxu0 %v3873
        %v3909 = vpop.f32.mrb[0].mxu0
        %v3910 = vadd.f32 0.0, %v3909
        %v3911 = vpop.f32.mrb[0].mxu0
        %v3912 = vadd.f32 0.0, %v3911
        %v3913 = vpop.f32.mrb[0].mxu0
        %v3914 = vpop.f32.mrb[0].mxu0
        %3915 = vdwg.mxu0
        %3916 = vmatprep.subr.bf16.mxu0 %v1490
        %3917 = vmatpush1.bf16.msra.mxu0 %v1489
        %3918 = vmatprep.subr.bf16.mxu0 %v1496
        %3919 = vmatpush1.bf16.msra.mxu0 %v1495
        %3920 = vmatprep.subr.bf16.mxu0 %v1502
        %3921 = vmatpush1.bf16.msra.mxu0 %v1501
        %3922 = vmatprep.subr.bf16.mxu0 %v1508
        %3923 = vmatpush1.bf16.msra.mxu0 %v1507
        %3924 = vmatprep.subr.bf16.mxu0 %v1514
        %3925 = vmatpush1.bf16.msra.mxu0 %v1513
        %3926 = vmatprep.subr.bf16.mxu0 %v1520
        %3927 = vmatpush1.bf16.msra.mxu0 %v1519
        %3928 = vmatprep.subr.bf16.mxu0 %v1526
        %3929 = vmatpush1.bf16.msra.mxu0 %v1525
        %3930 = vmatprep.subr.bf16.mxu0 %v1532
        %3931 = vmatpush1.bf16.msra.mxu0 %v1531
        %3932 = vmatprep.subr.bf16.mxu0 %v1538
        %3933 = vmatpush1.bf16.msra.mxu0 %v1537
        %3934 = vmatprep.subr.bf16.mxu0 %v1544
        %3935 = vmatpush1.bf16.msra.mxu0 %v1543
        %3936 = vmatprep.subr.bf16.mxu0 %v1550
        %3937 = vmatpush1.bf16.msra.mxu0 %v1549
        %3938 = vmatprep.subr.bf16.mxu0 %v1556
        %3939 = vmatpush1.bf16.msra.mxu0 %v1555
        %3940 = vmatprep.subr.bf16.mxu0 %v1562
        %3941 = vmatpush1.bf16.msra.mxu0 %v1561
        %3942 = vmatprep.subr.bf16.mxu0 %v1568
        %3943 = vmatpush1.bf16.msra.mxu0 %v1567
        %3944 = vmatprep.subr.bf16.mxu0 %v1574
        %3945 = vmatpush1.bf16.msra.mxu0 %v1573
        %3946 = vmatprep.subr.bf16.mxu0 %v1580
        %3947 = vmatpush1.bf16.msra.mxu0 %v1579
        %3948 = vmatprep.mubr.bf16.mxu0 %v3874
        %3949 = vmatmul.mubr.bf16.gmra.mrb[0].mxu0 %v3873
        %v3950 = vpop.f32.mrb[0].mxu0
        %v3951 = vadd.f32 0.0, %v3950
        %v3952 = vpop.f32.mrb[0].mxu0
        %v3953 = vadd.f32 0.0, %v3952
        %v3954 = vpop.f32.mrb[0].mxu0
        %v3955 = vpop.f32.mrb[0].mxu0
        %3956 = vdwg.mxu0
        %3957 = vmatprep.subr.bf16.mxu0 %v1492
        %3958 = vmatpush1.bf16.msra.mxu0 %v1491
        %3959 = vmatprep.subr.bf16.mxu0 %v1498
        %3960 = vmatpush1.bf16.msra.mxu0 %v1497
        %3961 = vmatprep.subr.bf16.mxu0 %v1504
        %3962 = vmatpush1.bf16.msra.mxu0 %v1503
        %3963 = vmatprep.subr.bf16.mxu0 %v1510
        %3964 = vmatpush1.bf16.msra.mxu0 %v1509
        %3965 = vmatprep.subr.bf16.mxu0 %v1516
        %3966 = vmatpush1.bf16.msra.mxu0 %v1515
        %3967 = vmatprep.subr.bf16.mxu0 %v1522
        %3968 = vmatpush1.bf16.msra.mxu0 %v1521
        %3969 = vmatprep.subr.bf16.mxu0 %v1528
        %3970 = vmatpush1.bf16.msra.mxu0 %v1527
        %3971 = vmatprep.subr.bf16.mxu0 %v1534
        %3972 = vmatpush1.bf16.msra.mxu0 %v1533
        %3973 = vmatprep.subr.bf16.mxu0 %v1540
        %3974 = vmatpush1.bf16.msra.mxu0 %v1539
        %3975 = vmatprep.subr.bf16.mxu0 %v1546
        %3976 = vmatpush1.bf16.msra.mxu0 %v1545
        %3977 = vmatprep.subr.bf16.mxu0 %v1552
        %3978 = vmatpush1.bf16.msra.mxu0 %v1551
        %3979 = vmatprep.subr.bf16.mxu0 %v1558
        %3980 = vmatpush1.bf16.msra.mxu0 %v1557
        %3981 = vmatprep.subr.bf16.mxu0 %v1564
        %3982 = vmatpush1.bf16.msra.mxu0 %v1563
        %3983 = vmatprep.subr.bf16.mxu0 %v1570
        %3984 = vmatpush1.bf16.msra.mxu0 %v1569
        %3985 = vmatprep.subr.bf16.mxu0 %v1576
        %3986 = vmatpush1.bf16.msra.mxu0 %v1575
        %3987 = vmatprep.subr.bf16.mxu0 %v1582
        %3988 = vmatpush1.bf16.msra.mxu0 %v1581
        %3989 = vmatprep.mubr.bf16.mxu0 %v3874
        %3990 = vmatmul.mubr.bf16.gmra.mrb[0].mxu0 %v3873
        %v3991 = vpop.f32.mrb[0].mxu0
        %v3992 = vadd.f32 0.0, %v3991
        %v3993 = vpop.f32.mrb[0].mxu0
        %v3994 = vadd.f32 0.0, %v3993
        %v3995 = vpop.f32.mrb[0].mxu0
        %v3996 = vpop.f32.mrb[0].mxu0
        %3997 = vdwg.mxu0
        %s3998 = smul.u32 12, 6
        %s3999 = smul.addr %s3998, 8
        %s4000 = scalar_lea.vmem [#allocation2], %s3999
        %v4001 = vld [vmem:[%s4000] sm:$0xff]
        %v4002 = vld [vmem:[%s4000 + $0x8] sm:$0xff]
        %v4003 = vld [vmem:[%s4000 + $0x10] sm:$0xff]
        %v4004 = vld [vmem:[%s4000 + $0x18] sm:$0xff]
        %v4005 = vld [vmem:[%s4000 + $0x20] sm:$0xff]
        %v4006 = vld [vmem:[%s4000 + $0x28] sm:$0xff]
        %v4007 = vadd.f32 %v4001, %v3910
        %v4008 = vadd.f32 %v4002, %v3912
        %v4009 = vadd.f32 %v4003, %v3951
        %v4010 = vadd.f32 %v4004, %v3953
        %v4011 = vxor.u32 %v4007, 2147483648
        %v4012 = vxor.u32 %v4008, 2147483648
        %v4013 = vxor.u32 %v4009, 2147483648
        %v4014 = vxor.u32 %v4010, 2147483648
        %v4015 = vmul.f32 %v4011, 1.442695
        %v4016 = vpow.pop %v4015
        %v4017 = vmul.f32 %v4012, 1.442695
        %v4018 = vpow.pop %v4017
        %v4019 = vmul.f32 %v4013, 1.442695
        %v4020 = vpow.pop %v4019
        %v4021 = vmul.f32 %v4014, 1.442695
        %v4022 = vpow.pop %v4021
        %v4023 = vadd.f32 %v4016, 1.0
        %v4024 = vadd.f32 %v4018, 1.0
        %v4025 = vadd.f32 %v4020, 1.0
        %v4026 = vadd.f32 %v4022, 1.0
        %v4027 = vrcp.pop %v4023
        %v4028 = vmul.f32 1.0, %v4027
        %v4029 = vrcp.pop %v4024
        %v4030 = vmul.f32 1.0, %v4029
        %v4031 = vrcp.pop %v4025
        %v4032 = vmul.f32 1.0, %v4031
        %v4033 = vrcp.pop %v4026
        %v4034 = vmul.f32 1.0, %v4033
        %v4035 = vadd.f32 %v3992, %v1092
        %v4036 = vadd.f32 %v3994, %v1096
        %v4037 = vmul.f32 %v4028, %v4035
        %v4038 = vmul.f32 %v4030, %v4036
        %v4039 = vadd.f32 %v4005, %v4037
        %v4040 = vadd.f32 %v4006, %v4038
        %v4041 = vtanh.pop %v4039
        %v4042 = vtanh.pop %v4040
        %v4043 = vsub.f32 %v3871, %v4041
        %v4044 = vsub.f32 %v3872, %v4042
        %v4045 = vmul.f32 %v4032, %v4043
        %v4046 = vmul.f32 %v4034, %v4044
        %v4047 = vadd.f32 %v4041, %v4045
        %v4048 = vadd.f32 %v4042, %v4046
        %s4049 = sadd.s32 %s1853, 12
        %p4050 = scmp.lt.s32.totalorder %s4049, 20
        %s4051 = scalar_select %p4050, 1, 0
        %v4052 = vstv %s4051
        %vm4053 = vcmp.eq.s32.totalorder %v4052, 1
        %v4054 = vsel %vm4053, %v4047, %v3871
        %v4055 = vsel %vm4053, %v4048, %v3872
        %v4056 = vpack.c.bf16 %v4054, %v4054
        %v4057 = vpack.c.bf16 %v4055, %v4055
        %4058 = vmatprep.subr.bf16.mxu0 %v1488
        %4059 = vmatpush1.bf16.msra.mxu0 %v1487
        %4060 = vmatprep.subr.bf16.mxu0 %v1494
        %4061 = vmatpush1.bf16.msra.mxu0 %v1493
        %4062 = vmatprep.subr.bf16.mxu0 %v1500
        %4063 = vmatpush1.bf16.msra.mxu0 %v1499
        %4064 = vmatprep.subr.bf16.mxu0 %v1506
        %4065 = vmatpush1.bf16.msra.mxu0 %v1505
        %4066 = vmatprep.subr.bf16.mxu0 %v1512
        %4067 = vmatpush1.bf16.msra.mxu0 %v1511
        %4068 = vmatprep.subr.bf16.mxu0 %v1518
        %4069 = vmatpush1.bf16.msra.mxu0 %v1517
        %4070 = vmatprep.subr.bf16.mxu0 %v1524
        %4071 = vmatpush1.bf16.msra.mxu0 %v1523
        %4072 = vmatprep.subr.bf16.mxu0 %v1530
        %4073 = vmatpush1.bf16.msra.mxu0 %v1529
        %4074 = vmatprep.subr.bf16.mxu0 %v1536
        %4075 = vmatpush1.bf16.msra.mxu0 %v1535
        %4076 = vmatprep.subr.bf16.mxu0 %v1542
        %4077 = vmatpush1.bf16.msra.mxu0 %v1541
        %4078 = vmatprep.subr.bf16.mxu0 %v1548
        %4079 = vmatpush1.bf16.msra.mxu0 %v1547
        %4080 = vmatprep.subr.bf16.mxu0 %v1554
        %4081 = vmatpush1.bf16.msra.mxu0 %v1553
        %4082 = vmatprep.subr.bf16.mxu0 %v1560
        %4083 = vmatpush1.bf16.msra.mxu0 %v1559
        %4084 = vmatprep.subr.bf16.mxu0 %v1566
        %4085 = vmatpush1.bf16.msra.mxu0 %v1565
        %4086 = vmatprep.subr.bf16.mxu0 %v1572
        %4087 = vmatpush1.bf16.msra.mxu0 %v1571
        %4088 = vmatprep.subr.bf16.mxu0 %v1578
        %4089 = vmatpush1.bf16.msra.mxu0 %v1577
        %4090 = vmatprep.mubr.bf16.mxu0 %v4057
        %4091 = vmatmul.mubr.bf16.gmra.mrb[0].mxu0 %v4056
        %v4092 = vpop.f32.mrb[0].mxu0
        %v4093 = vadd.f32 0.0, %v4092
        %v4094 = vpop.f32.mrb[0].mxu0
        %v4095 = vadd.f32 0.0, %v4094
        %v4096 = vpop.f32.mrb[0].mxu0
        %v4097 = vpop.f32.mrb[0].mxu0
        %4098 = vdwg.mxu0
        %4099 = vmatprep.subr.bf16.mxu0 %v1490
        %4100 = vmatpush1.bf16.msra.mxu0 %v1489
        %4101 = vmatprep.subr.bf16.mxu0 %v1496
        %4102 = vmatpush1.bf16.msra.mxu0 %v1495
        %4103 = vmatprep.subr.bf16.mxu0 %v1502
        %4104 = vmatpush1.bf16.msra.mxu0 %v1501
        %4105 = vmatprep.subr.bf16.mxu0 %v1508
        %4106 = vmatpush1.bf16.msra.mxu0 %v1507
        %4107 = vmatprep.subr.bf16.mxu0 %v1514
        %4108 = vmatpush1.bf16.msra.mxu0 %v1513
        %4109 = vmatprep.subr.bf16.mxu0 %v1520
        %4110 = vmatpush1.bf16.msra.mxu0 %v1519
        %4111 = vmatprep.subr.bf16.mxu0 %v1526
        %4112 = vmatpush1.bf16.msra.mxu0 %v1525
        %4113 = vmatprep.subr.bf16.mxu0 %v1532
        %4114 = vmatpush1.bf16.msra.mxu0 %v1531
        %4115 = vmatprep.subr.bf16.mxu0 %v1538
        %4116 = vmatpush1.bf16.msra.mxu0 %v1537
        %4117 = vmatprep.subr.bf16.mxu0 %v1544
        %4118 = vmatpush1.bf16.msra.mxu0 %v1543
        %4119 = vmatprep.subr.bf16.mxu0 %v1550
        %4120 = vmatpush1.bf16.msra.mxu0 %v1549
        %4121 = vmatprep.subr.bf16.mxu0 %v1556
        %4122 = vmatpush1.bf16.msra.mxu0 %v1555
        %4123 = vmatprep.subr.bf16.mxu0 %v1562
        %4124 = vmatpush1.bf16.msra.mxu0 %v1561
        %4125 = vmatprep.subr.bf16.mxu0 %v1568
        %4126 = vmatpush1.bf16.msra.mxu0 %v1567
        %4127 = vmatprep.subr.bf16.mxu0 %v1574
        %4128 = vmatpush1.bf16.msra.mxu0 %v1573
        %4129 = vmatprep.subr.bf16.mxu0 %v1580
        %4130 = vmatpush1.bf16.msra.mxu0 %v1579
        %4131 = vmatprep.mubr.bf16.mxu0 %v4057
        %4132 = vmatmul.mubr.bf16.gmra.mrb[0].mxu0 %v4056
        %v4133 = vpop.f32.mrb[0].mxu0
        %v4134 = vadd.f32 0.0, %v4133
        %v4135 = vpop.f32.mrb[0].mxu0
        %v4136 = vadd.f32 0.0, %v4135
        %v4137 = vpop.f32.mrb[0].mxu0
        %v4138 = vpop.f32.mrb[0].mxu0
        %4139 = vdwg.mxu0
        %4140 = vmatprep.subr.bf16.mxu0 %v1492
        %4141 = vmatpush1.bf16.msra.mxu0 %v1491
        %4142 = vmatprep.subr.bf16.mxu0 %v1498
        %4143 = vmatpush1.bf16.msra.mxu0 %v1497
        %4144 = vmatprep.subr.bf16.mxu0 %v1504
        %4145 = vmatpush1.bf16.msra.mxu0 %v1503
        %4146 = vmatprep.subr.bf16.mxu0 %v1510
        %4147 = vmatpush1.bf16.msra.mxu0 %v1509
        %4148 = vmatprep.subr.bf16.mxu0 %v1516
        %4149 = vmatpush1.bf16.msra.mxu0 %v1515
        %4150 = vmatprep.subr.bf16.mxu0 %v1522
        %4151 = vmatpush1.bf16.msra.mxu0 %v1521
        %4152 = vmatprep.subr.bf16.mxu0 %v1528
        %4153 = vmatpush1.bf16.msra.mxu0 %v1527
        %4154 = vmatprep.subr.bf16.mxu0 %v1534
        %4155 = vmatpush1.bf16.msra.mxu0 %v1533
        %4156 = vmatprep.subr.bf16.mxu0 %v1540
        %4157 = vmatpush1.bf16.msra.mxu0 %v1539
        %4158 = vmatprep.subr.bf16.mxu0 %v1546
        %4159 = vmatpush1.bf16.msra.mxu0 %v1545
        %4160 = vmatprep.subr.bf16.mxu0 %v1552
        %4161 = vmatpush1.bf16.msra.mxu0 %v1551
        %4162 = vmatprep.subr.bf16.mxu0 %v1558
        %4163 = vmatpush1.bf16.msra.mxu0 %v1557
        %4164 = vmatprep.subr.bf16.mxu0 %v1564
        %4165 = vmatpush1.bf16.msra.mxu0 %v1563
        %4166 = vmatprep.subr.bf16.mxu0 %v1570
        %4167 = vmatpush1.bf16.msra.mxu0 %v1569
        %4168 = vmatprep.subr.bf16.mxu0 %v1576
        %4169 = vmatpush1.bf16.msra.mxu0 %v1575
        %4170 = vmatprep.subr.bf16.mxu0 %v1582
        %4171 = vmatpush1.bf16.msra.mxu0 %v1581
        %4172 = vmatprep.mubr.bf16.mxu0 %v4057
        %4173 = vmatmul.mubr.bf16.gmra.mrb[0].mxu0 %v4056
        %v4174 = vpop.f32.mrb[0].mxu0
        %v4175 = vadd.f32 0.0, %v4174
        %v4176 = vpop.f32.mrb[0].mxu0
        %v4177 = vadd.f32 0.0, %v4176
        %v4178 = vpop.f32.mrb[0].mxu0
        %v4179 = vpop.f32.mrb[0].mxu0
        %4180 = vdwg.mxu0
        %s4181 = smul.u32 13, 6
        %s4182 = smul.addr %s4181, 8
        %s4183 = scalar_lea.vmem [#allocation2], %s4182
        %v4184 = vld [vmem:[%s4183] sm:$0xff]
        %v4185 = vld [vmem:[%s4183 + $0x8] sm:$0xff]
        %v4186 = vld [vmem:[%s4183 + $0x10] sm:$0xff]
        %v4187 = vld [vmem:[%s4183 + $0x18] sm:$0xff]
        %v4188 = vld [vmem:[%s4183 + $0x20] sm:$0xff]
        %v4189 = vld [vmem:[%s4183 + $0x28] sm:$0xff]
        %v4190 = vadd.f32 %v4184, %v4093
        %v4191 = vadd.f32 %v4185, %v4095
        %v4192 = vadd.f32 %v4186, %v4134
        %v4193 = vadd.f32 %v4187, %v4136
        %v4194 = vxor.u32 %v4190, 2147483648
        %v4195 = vxor.u32 %v4191, 2147483648
        %v4196 = vxor.u32 %v4192, 2147483648
        %v4197 = vxor.u32 %v4193, 2147483648
        %v4198 = vmul.f32 %v4194, 1.442695
        %v4199 = vpow.pop %v4198
        %v4200 = vmul.f32 %v4195, 1.442695
        %v4201 = vpow.pop %v4200
        %v4202 = vmul.f32 %v4196, 1.442695
        %v4203 = vpow.pop %v4202
        %v4204 = vmul.f32 %v4197, 1.442695
        %v4205 = vpow.pop %v4204
        %v4206 = vadd.f32 %v4199, 1.0
        %v4207 = vadd.f32 %v4201, 1.0
        %v4208 = vadd.f32 %v4203, 1.0
        %v4209 = vadd.f32 %v4205, 1.0
        %v4210 = vrcp.pop %v4206
        %v4211 = vmul.f32 1.0, %v4210
        %v4212 = vrcp.pop %v4207
        %v4213 = vmul.f32 1.0, %v4212
        %v4214 = vrcp.pop %v4208
        %v4215 = vmul.f32 1.0, %v4214
        %v4216 = vrcp.pop %v4209
        %v4217 = vmul.f32 1.0, %v4216
        %v4218 = vadd.f32 %v4175, %v1092
        %v4219 = vadd.f32 %v4177, %v1096
        %v4220 = vmul.f32 %v4211, %v4218
        %v4221 = vmul.f32 %v4213, %v4219
        %v4222 = vadd.f32 %v4188, %v4220
        %v4223 = vadd.f32 %v4189, %v4221
        %v4224 = vtanh.pop %v4222
        %v4225 = vtanh.pop %v4223
        %v4226 = vsub.f32 %v4054, %v4224
        %v4227 = vsub.f32 %v4055, %v4225
        %v4228 = vmul.f32 %v4215, %v4226
        %v4229 = vmul.f32 %v4217, %v4227
        %v4230 = vadd.f32 %v4224, %v4228
        %v4231 = vadd.f32 %v4225, %v4229
        %s4232 = sadd.s32 %s1853, 13
        %p4233 = scmp.lt.s32.totalorder %s4232, 20
        %s4234 = scalar_select %p4233, 1, 0
        %v4235 = vstv %s4234
        %vm4236 = vcmp.eq.s32.totalorder %v4235, 1
        %v4237 = vsel %vm4236, %v4230, %v4054
        %v4238 = vsel %vm4236, %v4231, %v4055
        %v4239 = vpack.c.bf16 %v4237, %v4237
        %v4240 = vpack.c.bf16 %v4238, %v4238
        %4241 = vmatprep.subr.bf16.mxu0 %v1488
        %4242 = vmatpush1.bf16.msra.mxu0 %v1487
        %4243 = vmatprep.subr.bf16.mxu0 %v1494
        %4244 = vmatpush1.bf16.msra.mxu0 %v1493
        %4245 = vmatprep.subr.bf16.mxu0 %v1500
        %4246 = vmatpush1.bf16.msra.mxu0 %v1499
        %4247 = vmatprep.subr.bf16.mxu0 %v1506
        %4248 = vmatpush1.bf16.msra.mxu0 %v1505
        %4249 = vmatprep.subr.bf16.mxu0 %v1512
        %4250 = vmatpush1.bf16.msra.mxu0 %v1511
        %4251 = vmatprep.subr.bf16.mxu0 %v1518
        %4252 = vmatpush1.bf16.msra.mxu0 %v1517
        %4253 = vmatprep.subr.bf16.mxu0 %v1524
        %4254 = vmatpush1.bf16.msra.mxu0 %v1523
        %4255 = vmatprep.subr.bf16.mxu0 %v1530
        %4256 = vmatpush1.bf16.msra.mxu0 %v1529
        %4257 = vmatprep.subr.bf16.mxu0 %v1536
        %4258 = vmatpush1.bf16.msra.mxu0 %v1535
        %4259 = vmatprep.subr.bf16.mxu0 %v1542
        %4260 = vmatpush1.bf16.msra.mxu0 %v1541
        %4261 = vmatprep.subr.bf16.mxu0 %v1548
        %4262 = vmatpush1.bf16.msra.mxu0 %v1547
        %4263 = vmatprep.subr.bf16.mxu0 %v1554
        %4264 = vmatpush1.bf16.msra.mxu0 %v1553
        %4265 = vmatprep.subr.bf16.mxu0 %v1560
        %4266 = vmatpush1.bf16.msra.mxu0 %v1559
        %4267 = vmatprep.subr.bf16.mxu0 %v1566
        %4268 = vmatpush1.bf16.msra.mxu0 %v1565
        %4269 = vmatprep.subr.bf16.mxu0 %v1572
        %4270 = vmatpush1.bf16.msra.mxu0 %v1571
        %4271 = vmatprep.subr.bf16.mxu0 %v1578
        %4272 = vmatpush1.bf16.msra.mxu0 %v1577
        %4273 = vmatprep.mubr.bf16.mxu0 %v4240
        %4274 = vmatmul.mubr.bf16.gmra.mrb[0].mxu0 %v4239
        %v4275 = vpop.f32.mrb[0].mxu0
        %v4276 = vadd.f32 0.0, %v4275
        %v4277 = vpop.f32.mrb[0].mxu0
        %v4278 = vadd.f32 0.0, %v4277
        %v4279 = vpop.f32.mrb[0].mxu0
        %v4280 = vpop.f32.mrb[0].mxu0
        %4281 = vdwg.mxu0
        %4282 = vmatprep.subr.bf16.mxu0 %v1490
        %4283 = vmatpush1.bf16.msra.mxu0 %v1489
        %4284 = vmatprep.subr.bf16.mxu0 %v1496
        %4285 = vmatpush1.bf16.msra.mxu0 %v1495
        %4286 = vmatprep.subr.bf16.mxu0 %v1502
        %4287 = vmatpush1.bf16.msra.mxu0 %v1501
        %4288 = vmatprep.subr.bf16.mxu0 %v1508
        %4289 = vmatpush1.bf16.msra.mxu0 %v1507
        %4290 = vmatprep.subr.bf16.mxu0 %v1514
        %4291 = vmatpush1.bf16.msra.mxu0 %v1513
        %4292 = vmatprep.subr.bf16.mxu0 %v1520
        %4293 = vmatpush1.bf16.msra.mxu0 %v1519
        %4294 = vmatprep.subr.bf16.mxu0 %v1526
        %4295 = vmatpush1.bf16.msra.mxu0 %v1525
        %4296 = vmatprep.subr.bf16.mxu0 %v1532
        %4297 = vmatpush1.bf16.msra.mxu0 %v1531
        %4298 = vmatprep.subr.bf16.mxu0 %v1538
        %4299 = vmatpush1.bf16.msra.mxu0 %v1537
        %4300 = vmatprep.subr.bf16.mxu0 %v1544
        %4301 = vmatpush1.bf16.msra.mxu0 %v1543
        %4302 = vmatprep.subr.bf16.mxu0 %v1550
        %4303 = vmatpush1.bf16.msra.mxu0 %v1549
        %4304 = vmatprep.subr.bf16.mxu0 %v1556
        %4305 = vmatpush1.bf16.msra.mxu0 %v1555
        %4306 = vmatprep.subr.bf16.mxu0 %v1562
        %4307 = vmatpush1.bf16.msra.mxu0 %v1561
        %4308 = vmatprep.subr.bf16.mxu0 %v1568
        %4309 = vmatpush1.bf16.msra.mxu0 %v1567
        %4310 = vmatprep.subr.bf16.mxu0 %v1574
        %4311 = vmatpush1.bf16.msra.mxu0 %v1573
        %4312 = vmatprep.subr.bf16.mxu0 %v1580
        %4313 = vmatpush1.bf16.msra.mxu0 %v1579
        %4314 = vmatprep.mubr.bf16.mxu0 %v4240
        %4315 = vmatmul.mubr.bf16.gmra.mrb[0].mxu0 %v4239
        %v4316 = vpop.f32.mrb[0].mxu0
        %v4317 = vadd.f32 0.0, %v4316
        %v4318 = vpop.f32.mrb[0].mxu0
        %v4319 = vadd.f32 0.0, %v4318
        %v4320 = vpop.f32.mrb[0].mxu0
        %v4321 = vpop.f32.mrb[0].mxu0
        %4322 = vdwg.mxu0
        %4323 = vmatprep.subr.bf16.mxu0 %v1492
        %4324 = vmatpush1.bf16.msra.mxu0 %v1491
        %4325 = vmatprep.subr.bf16.mxu0 %v1498
        %4326 = vmatpush1.bf16.msra.mxu0 %v1497
        %4327 = vmatprep.subr.bf16.mxu0 %v1504
        %4328 = vmatpush1.bf16.msra.mxu0 %v1503
        %4329 = vmatprep.subr.bf16.mxu0 %v1510
        %4330 = vmatpush1.bf16.msra.mxu0 %v1509
        %4331 = vmatprep.subr.bf16.mxu0 %v1516
        %4332 = vmatpush1.bf16.msra.mxu0 %v1515
        %4333 = vmatprep.subr.bf16.mxu0 %v1522
        %4334 = vmatpush1.bf16.msra.mxu0 %v1521
        %4335 = vmatprep.subr.bf16.mxu0 %v1528
        %4336 = vmatpush1.bf16.msra.mxu0 %v1527
        %4337 = vmatprep.subr.bf16.mxu0 %v1534
        %4338 = vmatpush1.bf16.msra.mxu0 %v1533
        %4339 = vmatprep.subr.bf16.mxu0 %v1540
        %4340 = vmatpush1.bf16.msra.mxu0 %v1539
        %4341 = vmatprep.subr.bf16.mxu0 %v1546
        %4342 = vmatpush1.bf16.msra.mxu0 %v1545
        %4343 = vmatprep.subr.bf16.mxu0 %v1552
        %4344 = vmatpush1.bf16.msra.mxu0 %v1551
        %4345 = vmatprep.subr.bf16.mxu0 %v1558
        %4346 = vmatpush1.bf16.msra.mxu0 %v1557
        %4347 = vmatprep.subr.bf16.mxu0 %v1564
        %4348 = vmatpush1.bf16.msra.mxu0 %v1563
        %4349 = vmatprep.subr.bf16.mxu0 %v1570
        %4350 = vmatpush1.bf16.msra.mxu0 %v1569
        %4351 = vmatprep.subr.bf16.mxu0 %v1576
        %4352 = vmatpush1.bf16.msra.mxu0 %v1575
        %4353 = vmatprep.subr.bf16.mxu0 %v1582
        %4354 = vmatpush1.bf16.msra.mxu0 %v1581
        %4355 = vmatprep.mubr.bf16.mxu0 %v4240
        %4356 = vmatmul.mubr.bf16.gmra.mrb[0].mxu0 %v4239
        %v4357 = vpop.f32.mrb[0].mxu0
        %v4358 = vadd.f32 0.0, %v4357
        %v4359 = vpop.f32.mrb[0].mxu0
        %v4360 = vadd.f32 0.0, %v4359
        %v4361 = vpop.f32.mrb[0].mxu0
        %v4362 = vpop.f32.mrb[0].mxu0
        %4363 = vdwg.mxu0
        %s4364 = smul.u32 14, 6
        %s4365 = smul.addr %s4364, 8
        %s4366 = scalar_lea.vmem [#allocation2], %s4365
        %v4367 = vld [vmem:[%s4366] sm:$0xff]
        %v4368 = vld [vmem:[%s4366 + $0x8] sm:$0xff]
        %v4369 = vld [vmem:[%s4366 + $0x10] sm:$0xff]
        %v4370 = vld [vmem:[%s4366 + $0x18] sm:$0xff]
        %v4371 = vld [vmem:[%s4366 + $0x20] sm:$0xff]
        %v4372 = vld [vmem:[%s4366 + $0x28] sm:$0xff]
        %v4373 = vadd.f32 %v4367, %v4276
        %v4374 = vadd.f32 %v4368, %v4278
        %v4375 = vadd.f32 %v4369, %v4317
        %v4376 = vadd.f32 %v4370, %v4319
        %v4377 = vxor.u32 %v4373, 2147483648
        %v4378 = vxor.u32 %v4374, 2147483648
        %v4379 = vxor.u32 %v4375, 2147483648
        %v4380 = vxor.u32 %v4376, 2147483648
        %v4381 = vmul.f32 %v4377, 1.442695
        %v4382 = vpow.pop %v4381
        %v4383 = vmul.f32 %v4378, 1.442695
        %v4384 = vpow.pop %v4383
        %v4385 = vmul.f32 %v4379, 1.442695
        %v4386 = vpow.pop %v4385
        %v4387 = vmul.f32 %v4380, 1.442695
        %v4388 = vpow.pop %v4387
        %v4389 = vadd.f32 %v4382, 1.0
        %v4390 = vadd.f32 %v4384, 1.0
        %v4391 = vadd.f32 %v4386, 1.0
        %v4392 = vadd.f32 %v4388, 1.0
        %v4393 = vrcp.pop %v4389
        %v4394 = vmul.f32 1.0, %v4393
        %v4395 = vrcp.pop %v4390
        %v4396 = vmul.f32 1.0, %v4395
        %v4397 = vrcp.pop %v4391
        %v4398 = vmul.f32 1.0, %v4397
        %v4399 = vrcp.pop %v4392
        %v4400 = vmul.f32 1.0, %v4399
        %v4401 = vadd.f32 %v4358, %v1092
        %v4402 = vadd.f32 %v4360, %v1096
        %v4403 = vmul.f32 %v4394, %v4401
        %v4404 = vmul.f32 %v4396, %v4402
        %v4405 = vadd.f32 %v4371, %v4403
        %v4406 = vadd.f32 %v4372, %v4404
        %v4407 = vtanh.pop %v4405
        %v4408 = vtanh.pop %v4406
        %v4409 = vsub.f32 %v4237, %v4407
        %v4410 = vsub.f32 %v4238, %v4408
        %v4411 = vmul.f32 %v4398, %v4409
        %v4412 = vmul.f32 %v4400, %v4410
        %v4413 = vadd.f32 %v4407, %v4411
        %v4414 = vadd.f32 %v4408, %v4412
        %s4415 = sadd.s32 %s1853, 14
        %p4416 = scmp.lt.s32.totalorder %s4415, 20
        %s4417 = scalar_select %p4416, 1, 0
        %v4418 = vstv %s4417
        %vm4419 = vcmp.eq.s32.totalorder %v4418, 1
        %v4420 = vsel %vm4419, %v4413, %v4237
        %v4421 = vsel %vm4419, %v4414, %v4238
        %v4422 = vpack.c.bf16 %v4420, %v4420
        %v4423 = vpack.c.bf16 %v4421, %v4421
        %4424 = vmatprep.subr.bf16.mxu0 %v1488
        %4425 = vmatpush1.bf16.msra.mxu0 %v1487
        %4426 = vmatprep.subr.bf16.mxu0 %v1494
        %4427 = vmatpush1.bf16.msra.mxu0 %v1493
        %4428 = vmatprep.subr.bf16.mxu0 %v1500
        %4429 = vmatpush1.bf16.msra.mxu0 %v1499
        %4430 = vmatprep.subr.bf16.mxu0 %v1506
        %4431 = vmatpush1.bf16.msra.mxu0 %v1505
        %4432 = vmatprep.subr.bf16.mxu0 %v1512
        %4433 = vmatpush1.bf16.msra.mxu0 %v1511
        %4434 = vmatprep.subr.bf16.mxu0 %v1518
        %4435 = vmatpush1.bf16.msra.mxu0 %v1517
        %4436 = vmatprep.subr.bf16.mxu0 %v1524
        %4437 = vmatpush1.bf16.msra.mxu0 %v1523
        %4438 = vmatprep.subr.bf16.mxu0 %v1530
        %4439 = vmatpush1.bf16.msra.mxu0 %v1529
        %4440 = vmatprep.subr.bf16.mxu0 %v1536
        %4441 = vmatpush1.bf16.msra.mxu0 %v1535
        %4442 = vmatprep.subr.bf16.mxu0 %v1542
        %4443 = vmatpush1.bf16.msra.mxu0 %v1541
        %4444 = vmatprep.subr.bf16.mxu0 %v1548
        %4445 = vmatpush1.bf16.msra.mxu0 %v1547
        %4446 = vmatprep.subr.bf16.mxu0 %v1554
        %4447 = vmatpush1.bf16.msra.mxu0 %v1553
        %4448 = vmatprep.subr.bf16.mxu0 %v1560
        %4449 = vmatpush1.bf16.msra.mxu0 %v1559
        %4450 = vmatprep.subr.bf16.mxu0 %v1566
        %4451 = vmatpush1.bf16.msra.mxu0 %v1565
        %4452 = vmatprep.subr.bf16.mxu0 %v1572
        %4453 = vmatpush1.bf16.msra.mxu0 %v1571
        %4454 = vmatprep.subr.bf16.mxu0 %v1578
        %4455 = vmatpush1.bf16.msra.mxu0 %v1577
        %4456 = vmatprep.mubr.bf16.mxu0 %v4423
        %4457 = vmatmul.mubr.bf16.gmra.mrb[0].mxu0 %v4422
        %v4458 = vpop.f32.mrb[0].mxu0
        %v4459 = vadd.f32 0.0, %v4458
        %v4460 = vpop.f32.mrb[0].mxu0
        %v4461 = vadd.f32 0.0, %v4460
        %v4462 = vpop.f32.mrb[0].mxu0
        %v4463 = vpop.f32.mrb[0].mxu0
        %4464 = vdwg.mxu0
        %4465 = vmatprep.subr.bf16.mxu0 %v1490
        %4466 = vmatpush1.bf16.msra.mxu0 %v1489
        %4467 = vmatprep.subr.bf16.mxu0 %v1496
        %4468 = vmatpush1.bf16.msra.mxu0 %v1495
        %4469 = vmatprep.subr.bf16.mxu0 %v1502
        %4470 = vmatpush1.bf16.msra.mxu0 %v1501
        %4471 = vmatprep.subr.bf16.mxu0 %v1508
        %4472 = vmatpush1.bf16.msra.mxu0 %v1507
        %4473 = vmatprep.subr.bf16.mxu0 %v1514
        %4474 = vmatpush1.bf16.msra.mxu0 %v1513
        %4475 = vmatprep.subr.bf16.mxu0 %v1520
        %4476 = vmatpush1.bf16.msra.mxu0 %v1519
        %4477 = vmatprep.subr.bf16.mxu0 %v1526
        %4478 = vmatpush1.bf16.msra.mxu0 %v1525
        %4479 = vmatprep.subr.bf16.mxu0 %v1532
        %4480 = vmatpush1.bf16.msra.mxu0 %v1531
        %4481 = vmatprep.subr.bf16.mxu0 %v1538
        %4482 = vmatpush1.bf16.msra.mxu0 %v1537
        %4483 = vmatprep.subr.bf16.mxu0 %v1544
        %4484 = vmatpush1.bf16.msra.mxu0 %v1543
        %4485 = vmatprep.subr.bf16.mxu0 %v1550
        %4486 = vmatpush1.bf16.msra.mxu0 %v1549
        %4487 = vmatprep.subr.bf16.mxu0 %v1556
        %4488 = vmatpush1.bf16.msra.mxu0 %v1555
        %4489 = vmatprep.subr.bf16.mxu0 %v1562
        %4490 = vmatpush1.bf16.msra.mxu0 %v1561
        %4491 = vmatprep.subr.bf16.mxu0 %v1568
        %4492 = vmatpush1.bf16.msra.mxu0 %v1567
        %4493 = vmatprep.subr.bf16.mxu0 %v1574
        %4494 = vmatpush1.bf16.msra.mxu0 %v1573
        %4495 = vmatprep.subr.bf16.mxu0 %v1580
        %4496 = vmatpush1.bf16.msra.mxu0 %v1579
        %4497 = vmatprep.mubr.bf16.mxu0 %v4423
        %4498 = vmatmul.mubr.bf16.gmra.mrb[0].mxu0 %v4422
        %v4499 = vpop.f32.mrb[0].mxu0
        %v4500 = vadd.f32 0.0, %v4499
        %v4501 = vpop.f32.mrb[0].mxu0
        %v4502 = vadd.f32 0.0, %v4501
        %v4503 = vpop.f32.mrb[0].mxu0
        %v4504 = vpop.f32.mrb[0].mxu0
        %4505 = vdwg.mxu0
        %4506 = vmatprep.subr.bf16.mxu0 %v1492
        %4507 = vmatpush1.bf16.msra.mxu0 %v1491
        %4508 = vmatprep.subr.bf16.mxu0 %v1498
        %4509 = vmatpush1.bf16.msra.mxu0 %v1497
        %4510 = vmatprep.subr.bf16.mxu0 %v1504
        %4511 = vmatpush1.bf16.msra.mxu0 %v1503
        %4512 = vmatprep.subr.bf16.mxu0 %v1510
        %4513 = vmatpush1.bf16.msra.mxu0 %v1509
        %4514 = vmatprep.subr.bf16.mxu0 %v1516
        %4515 = vmatpush1.bf16.msra.mxu0 %v1515
        %4516 = vmatprep.subr.bf16.mxu0 %v1522
        %4517 = vmatpush1.bf16.msra.mxu0 %v1521
        %4518 = vmatprep.subr.bf16.mxu0 %v1528
        %4519 = vmatpush1.bf16.msra.mxu0 %v1527
        %4520 = vmatprep.subr.bf16.mxu0 %v1534
        %4521 = vmatpush1.bf16.msra.mxu0 %v1533
        %4522 = vmatprep.subr.bf16.mxu0 %v1540
        %4523 = vmatpush1.bf16.msra.mxu0 %v1539
        %4524 = vmatprep.subr.bf16.mxu0 %v1546
        %4525 = vmatpush1.bf16.msra.mxu0 %v1545
        %4526 = vmatprep.subr.bf16.mxu0 %v1552
        %4527 = vmatpush1.bf16.msra.mxu0 %v1551
        %4528 = vmatprep.subr.bf16.mxu0 %v1558
        %4529 = vmatpush1.bf16.msra.mxu0 %v1557
        %4530 = vmatprep.subr.bf16.mxu0 %v1564
        %4531 = vmatpush1.bf16.msra.mxu0 %v1563
        %4532 = vmatprep.subr.bf16.mxu0 %v1570
        %4533 = vmatpush1.bf16.msra.mxu0 %v1569
        %4534 = vmatprep.subr.bf16.mxu0 %v1576
        %4535 = vmatpush1.bf16.msra.mxu0 %v1575
        %4536 = vmatprep.subr.bf16.mxu0 %v1582
        %4537 = vmatpush1.bf16.msra.mxu0 %v1581
        %4538 = vmatprep.mubr.bf16.mxu0 %v4423
        %4539 = vmatmul.mubr.bf16.gmra.mrb[0].mxu0 %v4422
        %v4540 = vpop.f32.mrb[0].mxu0
        %v4541 = vadd.f32 0.0, %v4540
        %v4542 = vpop.f32.mrb[0].mxu0
        %v4543 = vadd.f32 0.0, %v4542
        %v4544 = vpop.f32.mrb[0].mxu0
        %v4545 = vpop.f32.mrb[0].mxu0
        %4546 = vdwg.mxu0
        %s4547 = smul.u32 15, 6
        %s4548 = smul.addr %s4547, 8
        %s4549 = scalar_lea.vmem [#allocation2], %s4548
        %v4550 = vld [vmem:[%s4549] sm:$0xff]
        %v4551 = vld [vmem:[%s4549 + $0x8] sm:$0xff]
        %v4552 = vld [vmem:[%s4549 + $0x10] sm:$0xff]
        %v4553 = vld [vmem:[%s4549 + $0x18] sm:$0xff]
        %v4554 = vld [vmem:[%s4549 + $0x20] sm:$0xff]
        %v4555 = vld [vmem:[%s4549 + $0x28] sm:$0xff]
        %v4556 = vadd.f32 %v4550, %v4459
        %v4557 = vadd.f32 %v4551, %v4461
        %v4558 = vadd.f32 %v4552, %v4500
        %v4559 = vadd.f32 %v4553, %v4502
        %v4560 = vxor.u32 %v4556, 2147483648
        %v4561 = vxor.u32 %v4557, 2147483648
        %v4562 = vxor.u32 %v4558, 2147483648
        %v4563 = vxor.u32 %v4559, 2147483648
        %v4564 = vmul.f32 %v4560, 1.442695
        %v4565 = vpow.pop %v4564
        %v4566 = vmul.f32 %v4561, 1.442695
        %v4567 = vpow.pop %v4566
        %v4568 = vmul.f32 %v4562, 1.442695
        %v4569 = vpow.pop %v4568
        %v4570 = vmul.f32 %v4563, 1.442695
        %v4571 = vpow.pop %v4570
        %v4572 = vadd.f32 %v4565, 1.0
        %v4573 = vadd.f32 %v4567, 1.0
        %v4574 = vadd.f32 %v4569, 1.0
        %v4575 = vadd.f32 %v4571, 1.0
        %v4576 = vrcp.pop %v4572
        %v4577 = vmul.f32 1.0, %v4576
        %v4578 = vrcp.pop %v4573
        %v4579 = vmul.f32 1.0, %v4578
        %v4580 = vrcp.pop %v4574
        %v4581 = vmul.f32 1.0, %v4580
        %v4582 = vrcp.pop %v4575
        %v4583 = vmul.f32 1.0, %v4582
        %v4584 = vadd.f32 %v4541, %v1092
        %v4585 = vadd.f32 %v4543, %v1096
        %v4586 = vmul.f32 %v4577, %v4584
        %v4587 = vmul.f32 %v4579, %v4585
        %v4588 = vadd.f32 %v4554, %v4586
        %v4589 = vadd.f32 %v4555, %v4587
        %v4590 = vtanh.pop %v4588
        %v4591 = vtanh.pop %v4589
        %v4592 = vsub.f32 %v4420, %v4590
        %v4593 = vsub.f32 %v4421, %v4591
        %v4594 = vmul.f32 %v4581, %v4592
        %v4595 = vmul.f32 %v4583, %v4593
        %v4596 = vadd.f32 %v4590, %v4594
        %v4597 = vadd.f32 %v4591, %v4595
        %s4598 = sadd.s32 %s1853, 15
        %p4599 = scmp.lt.s32.totalorder %s4598, 20
        %s4600 = scalar_select %p4599, 1, 0
        %v4601 = vstv %s4600
        %vm4602 = vcmp.eq.s32.totalorder %v4601, 1
        %v4603 = vsel %vm4602, %v4596, %v4420
        %v4604 = vsel %vm4602, %v4597, %v4421
        %4605 = vst [vmem:[#allocation9] sm:$0xff] %v4603
        %4606 = vst [vmem:[#allocation9 + $0x8] sm:$0xff] %v4604
        // Predicated region
        $region57: #{tpu_custom_call.1} parent=39 // pred_check
          %p4607 = pneg %p144
        $region58: #{tpu_custom_call.1} parent=39 // pred_check_branch
          %4609 = sbr.rel (%p4607) target = $region60
        $region59: #{tpu_custom_call.1} parent=39 // pred_region
          %s4611 = ssub.s32 256, 256
          %4612 = vsyncadd [#allocation5], %s4611
          %s4614 = sshll.u32 [#allocation9], 4
          %s4615 = int_to_ptr.vmem [resolvable:$true] %s4614
          %4617 = dma.vmem_to_hbm [thread:$0]  %s4615, 256, %s5, [#allocation5]
        $region60: #{tpu_custom_call.1} parent=39 // pred_fallthru
          _
        // Predicated region
        $region61: #{tpu_custom_call.1} parent=39 // pred_check
          %p4618 = pneg %p144
        $region62: #{tpu_custom_call.1} parent=39 // pred_check_branch
          %4620 = sbr.rel (%p4618) target = $region64
        $region63: #{tpu_custom_call.1} parent=39 // pred_region
          %4621 = dma.done [#allocation5], 256
        $region64: #{tpu_custom_call.1} parent=39 // pred_fallthru
          _
      $region40: #{tpu_custom_call.1} parent=5 // pred_fallthru
        _
      %p4622 = scmp.le.s32.totalorder 2, %s16
      // Predicated region
      $region65: #{tpu_custom_call.1} parent=5 // pred_check
        %p4623 = pneg %p4622
      $region66: #{tpu_custom_call.1} parent=5 // pred_check_branch
        %4625 = sbr.rel (%p4623) target = $region68
      $region67: #{tpu_custom_call.1} parent=5 // pred_region
        %s4626 = ssub.s32 %s16, 2
      $region68: #{tpu_custom_call.1} parent=5 // pred_fallthru
        _
    $region6: #{tpu_custom_call.1} parent=1 // loop_footer
      %s20 = sadd.s32 1, %s16
    $region7: #{tpu_custom_call.1} parent=1 // loop_footer_branch
      %15 = sbr.rel target = $region3
    $region8: #{tpu_custom_call.1} parent=1 // loop_exit
      _
    %4627 = vsyncpa [#allocation4], 1
    %s4628 = scalar_lea.sflag [#allocation4], 1
    %4629 = vsyncpa %s4628, 1
    %4630 = vsyncpa [#allocation7], 1
    %4631 = vsyncpa [#allocation5], 1
    %s4632 = scalar_lea.sflag [#allocation5], 1
    %4633 = vsyncpa %s4632, 1

</llo_original>
